<compile_context>
chip_gen: v6e
topology: v6e:2x2x1
jax: 0.10.0
libtpu: 0.0.40
codegen_flags: <defaults>
</compile_context>

<pallas_src>
import functools

import jax
import jax.numpy as jnp
from jax.experimental import pallas as pl
from jax.experimental.pallas import tpu as pltpu

_LANE = 128      # vreg lane width
_SUBLANE = 8     # f32 sublane granule


def _round_up(v, m):
    return -(-v // m) * m


def ae_kernel(x_ref, w1_ref, b1_ref, w2_ref, b2_ref,
              w3_ref, b3_ref, w4_ref, b4_ref, o_ref):
    """Fused encoder->decoder MLP on one row-tile of flattened images.

    All four matmuls run with bf16 operands on the MXU (f32 accumulation);
    bias adds / ReLU / sigmoid stay in f32 on the VPU/EUP.
    """
    x = x_ref[...]
    xb = x if x.dtype == jnp.bfloat16 else x.astype(jnp.bfloat16)

    # ---- encoder ----
    h1 = jnp.dot(xb, w1_ref[...], preferred_element_type=jnp.float32)
    h1 = jnp.maximum(h1 + b1_ref[...], 0.0)
    z = jnp.dot(h1.astype(jnp.bfloat16), w2_ref[...],
                preferred_element_type=jnp.float32) + b2_ref[...]

    # ---- decoder ----
    h2 = jnp.dot(z.astype(jnp.bfloat16), w3_ref[...],
                 preferred_element_type=jnp.float32)
    h2 = jnp.maximum(h2 + b3_ref[...], 0.0)
    y = jnp.dot(h2.astype(jnp.bfloat16), w4_ref[...],
                preferred_element_type=jnp.float32) + b4_ref[...]

    # sigmoid(y) == 0.5*(tanh(y/2)+1): one EUP op per element instead of
    # exp + divide, keeping the transcendental slot off the critical path.
    o_ref[...] = (0.5 * (jnp.tanh(0.5 * y) + 1.0)).astype(o_ref.dtype)


def _vmem_budget_and_cores():
    """Per-generation VMEM budget (bytes) and TensorCore count heuristic."""
    vmem = None
    cores = None
    try:
        info = pltpu.get_tpu_info()
        vmem = int(getattr(info, "vmem_capacity_bytes", 0) or 0)
        for name in ("num_cores", "num_tensorcores", "tensorcores_per_chip"):
            v = getattr(info, name, None)
            if v:
                cores = int(v)
                break
    except Exception:
        pass
    if not vmem or vmem <= 0:
        # Unknown hardware: 48 MiB is safe on every generation (v7x physical
        # VMEM is 64 MiB; v5e/v6e have 128 MiB).
        return 48 << 20, (cores or 1)
    # Leave headroom under physical VMEM for compiler scratch / spills.
    budget = min(int(vmem * 0.75), vmem - (8 << 20))
    budget = max(budget, 32 << 20)
    if cores is None:
        # 64 MiB per-core VMEM => v7x-class chip with 2 TensorCores.
        cores = 2 if vmem <= (64 << 20) else 1
    return budget, cores


def _choose_tile_m(n, max_rows, num_cores):
    """Pick the row tile: biggest that fits the VMEM budget, divides n when
    possible (no wrapper pad), and leaves >=2 grid steps per TensorCore on
    multi-TC chips so DMA overlaps compute."""
    max_rows = max(_SUBLANE, (max_rows // _SUBLANE) * _SUBLANE)
    min_steps = 2 * num_cores if num_cores > 1 else 1

    # Tiny batches: one full block (block_shape == full dim, no (8,128) issue,
    # no padding). Splitting them only underfills the MXU.
    if n <= max_rows and n < min_steps * 2 * _SUBLANE:
        return n
    # Single-TC chips: the grid is a sequential loop; never split what fits.
    if num_cores <= 1 and n <= max_rows:
        return n

    cap = min(max_rows, n)
    if min_steps > 1:
        cap = min(cap, max(_SUBLANE, n // min_steps))
    cap = max(_SUBLANE, (cap // _SUBLANE) * _SUBLANE)

    # Prefer a tile that divides n exactly -> no wrapper-side pad copy.
    for t in range(cap, _SUBLANE - 1, -_SUBLANE):
        if n % t == 0:
            return t
    return cap  # fallback: caller pads n up to a multiple of cap


def prepare_params(params):
    """One-time parameter preparation (call once per model, NOT per forward):
    pad latent and output feature dims to 128-lane multiples (zero padding
    leaves the math identical) and convert weights to bf16 MXU operands."""
    w1, b1, w2, b2, w3, b3, w4, b4 = params
    lat = w2.shape[1]
    d_out = w4.shape[1]
    lat_p = _round_up(lat, _LANE)
    d_p = _round_up(d_out, _LANE)
    if lat_p != lat:
        w2 = jnp.pad(w2, ((0, 0), (0, lat_p - lat)))
        b2 = jnp.pad(b2, ((0, 0), (0, lat_p - lat)))
        w3 = jnp.pad(w3, ((0, lat_p - lat), (0, 0)))
    if d_p != d_out:
        w4 = jnp.pad(w4, ((0, 0), (0, d_p - d_out)))
        b4 = jnp.pad(b4, ((0, 0), (0, d_p - d_out)))
    w1b, w2b, w3b, w4b = (w.astype(jnp.bfloat16) for w in (w1, w2, w3, w4))
    return (w1b, b1.astype(jnp.float32), w2b, b2.astype(jnp.float32),
            w3b, b3.astype(jnp.float32), w4b, b4.astype(jnp.float32))


def ae_forward(x, params, *, single_buffer_weights=True):
    """x: (bs, seq, C, side, side) -> same shape (AE.forward).

    `params` must come from prepare_params(). If x is bf16 the kernel keeps
    bf16 rows in and out (halving the binding HBM traffic); f32 x stays f32.
    """
    bs, seq_len, n_channels, side, side2 = x.shape
    assert side == side2
    n = bs * seq_len
    d = n_channels * side * side

    w1, b1, w2, b2, w3, b3, w4, b4 = params
    assert w1.shape[0] == d, "params do not match the input feature dim"
    hid = w1.shape[1]
    lat_p = w2.shape[1]
    d_p = w4.shape[1]

    # glue: flatten images to rows (matches torch .view(-1, C, side, side)
    # followed by an in-encoder flatten).
    x_flat = x.reshape(n, d)
    io_item = jnp.dtype(x.dtype).itemsize

    budget, num_cores = _vmem_budget_and_cores()

    # --- one VMEM budget drives both tile choice and vmem_limit_bytes ---
    wbuf = 1 if single_buffer_weights else 2
    weight_bytes = wbuf * 2 * (d * hid + hid * lat_p + lat_p * hid + hid * d_p)
    bias_bytes = wbuf * 4 * (hid + lat_p + hid + d_p)
    fixed_bytes = weight_bytes + bias_bytes + (4 << 20)     # + compiler scratch
    # per-row cost: double-buffered in/out row tiles + f32/bf16 intermediates
    row_bytes = (2 * d + 2 * d_p) * io_item \
        + 4 * (2 * hid + lat_p + d_p) + 2 * (d + 2 * hid)
    max_rows = max(_SUBLANE, (budget - fixed_bytes) // row_bytes)

    tile_m = _choose_tile_m(n, max_rows, num_cores)

    n_pad = n if n % tile_m == 0 else _round_up(n, tile_m)
    if n_pad != n:
        # TODO(synk): mask the ragged tail inside the kernel instead of this
        # wrapper-side pad (extra HBM pass); only hit when no divisor tile fits
        # the VMEM budget.
        x_flat = jnp.pad(x_flat, ((0, n_pad - n), (0, 0)))
    grid = (n_pad // tile_m,)

    footprint = fixed_bytes + tile_m * row_bytes
    vmem_limit = int(min(budget, max(32 << 20, footprint * 3 // 2)))

    # Weights / biases: same full block at every grid step (resident in VMEM);
    # single-buffered so they do not pay the double-buffer footprint.
    def fixed(shape):
        if single_buffer_weights:
            return pl.BlockSpec(shape, lambda i: (0,) * len(shape),
                                pipeline_mode=pl.Buffered(1))
        return pl.BlockSpec(shape, lambda i: (0,) * len(shape))

    out = pl.pallas_call(
        ae_kernel,
        out_shape=jax.ShapeDtypeStruct((n_pad, d_p), x.dtype),
        grid_spec=pltpu.PrefetchScalarGridSpec(
            num_scalar_prefetch=0,
            grid=grid,
            in_specs=[
                pl.BlockSpec((tile_m, d), lambda i: (i, 0)),   # x rows
                fixed((d, hid)), fixed((1, hid)),              # enc layer 1
                fixed((hid, lat_p)), fixed((1, lat_p)),        # enc layer 2 (mu)
                fixed((lat_p, hid)), fixed((1, hid)),          # dec layer 1
                fixed((hid, d_p)), fixed((1, d_p)),            # dec layer 2
            ],
            out_specs=pl.BlockSpec((tile_m, d_p), lambda i: (i, 0)),
        ),
        compiler_params=pltpu.CompilerParams(
            dimension_semantics=("parallel",),
            vmem_limit_bytes=vmem_limit),
    )(x_flat, w1, b1, w2, b2, w3, b3, w4, b4)

    if n_pad != n:
        out = out[:n]
    if d_p != d:
        out = out[:, :d]
    return out.reshape(bs, seq_len, n_channels, side, side)


def init_params(key, d, hid, lat):
    ks = jax.random.split(key, 4)

    def lin(k, fan_in, fan_out):
        w = jax.random.normal(k, (fan_in, fan_out), jnp.float32) * (1.0 / jnp.sqrt(fan_in))
        b = jnp.zeros((1, fan_out), jnp.float32)
        return w, b

    w1, b1 = lin(ks[0], d, hid)
    w2, b2 = lin(ks[1], hid, lat)
    w3, b3 = lin(ks[2], lat, hid)
    w4, b4 = lin(ks[3], hid, d)
    return (w1, b1, w2, b2, w3, b3, w4, b4)


def ae_reference(x, params):
    """Plain-JAX f32 reference for sanity checking."""
    bs, seq, c, s, _ = x.shape
    w1, b1, w2, b2, w3, b3, w4, b4 = params
    xf = x.reshape(bs * seq, c * s * s)
    h1 = jnp.maximum(xf @ w1 + b1, 0.0)
    z = h1 @ w2 + b2
    h2 = jnp.maximum(z @ w3 + b3, 0.0)
    y = jax.nn.sigmoid(h2 @ w4 + b4)
    return y.reshape(bs, seq, c, s, s)


if __name__ == "__main__":
    key = jax.random.PRNGKey(0)
    k_x, k_p = jax.random.split(key)

    # Small shapes consistent with the module's 5-D input convention.
    bs, seq_len, n_channels, side = 2, 8, 4, 16
    hidden, latent = 128, 32
    d = n_channels * side * side

    x = jax.random.normal(k_x, (bs, seq_len, n_channels, side, side), jnp.float32)
    raw_params = init_params(k_p, d, hidden, latent)
    params = prepare_params(raw_params)   # one-time bf16 cast + lane padding

    try:
        fwd = jax.jit(functools.partial(ae_forward, single_buffer_weights=True))
        out = jax.block_until_ready(fwd(x, params))
    except Exception:
        # Fallback if single-buffered constant blocks are rejected by this
        # jax/Mosaic build: default double-buffering (still correct).
        fwd = jax.jit(functools.partial(ae_forward, single_buffer_weights=False))
        out = jax.block_until_ready(fwd(x, params))

    ref = ae_reference(x, raw_params)
    assert out.shape == (bs, seq_len, n_channels, side, side)
    # bf16 MXU operands (f32 accumulation): tolerance loosened vs the f32 ref.
    assert jnp.allclose(out, ref, atol=5e-2, rtol=5e-2), \
        float(jnp.max(jnp.abs(out - ref)))

    # TODO(synk): Gaussian_Encoder / Gaussian_Decoder definitions were not
    # provided in the source; a deterministic MLP Gaussian-mu AE stands in.
    print("KERNEL_OK")
</pallas_src>

<mosaic_0001>
module attributes {stable_mosaic.version = 11 : i64} {
  func.func @ae_kernel(%arg0: i32, %arg1: memref<16x1024xf32, #tpu.memory_space<vmem>>, %arg2: memref<1024x128xbf16, #tpu.memory_space<vmem>>, %arg3: memref<1x128xf32, #tpu.memory_space<vmem>>, %arg4: memref<128x128xbf16, #tpu.memory_space<vmem>>, %arg5: memref<1x128xf32, #tpu.memory_space<vmem>>, %arg6: memref<128x128xbf16, #tpu.memory_space<vmem>>, %arg7: memref<1x128xf32, #tpu.memory_space<vmem>>, %arg8: memref<128x1024xbf16, #tpu.memory_space<vmem>>, %arg9: memref<1x1024xf32, #tpu.memory_space<vmem>>, %arg10: memref<16x1024xf32, #tpu.memory_space<vmem>>) attributes {dimension_semantics = [#tpu.dimension_semantics<parallel>], iteration_bounds = array<i64: 1>, scalar_prefetch = 0 : i64, scratch_operands = 0 : i64, tpu.core_type = #tpu.core_type<tc>, window_params = [{transform_indices = @transform_0, window_bounds = array<i64: 16, 1024>}, {pipeline_mode = #tpu.pipeline_mode<synchronous>, transform_indices = @transform_1, window_bounds = array<i64: 1024, 128>}, {pipeline_mode = #tpu.pipeline_mode<synchronous>, transform_indices = @transform_2, window_bounds = array<i64: 1, 128>}, {pipeline_mode = #tpu.pipeline_mode<synchronous>, transform_indices = @transform_3, window_bounds = array<i64: 128, 128>}, {pipeline_mode = #tpu.pipeline_mode<synchronous>, transform_indices = @transform_4, window_bounds = array<i64: 1, 128>}, {pipeline_mode = #tpu.pipeline_mode<synchronous>, transform_indices = @transform_5, window_bounds = array<i64: 128, 128>}, {pipeline_mode = #tpu.pipeline_mode<synchronous>, transform_indices = @transform_6, window_bounds = array<i64: 1, 128>}, {pipeline_mode = #tpu.pipeline_mode<synchronous>, transform_indices = @transform_7, window_bounds = array<i64: 128, 1024>}, {pipeline_mode = #tpu.pipeline_mode<synchronous>, transform_indices = @transform_8, window_bounds = array<i64: 1, 1024>}, {transform_indices = @transform_9, window_bounds = array<i64: 16, 1024>}]} {
    %c0 = arith.constant 0 : index
    %c0_0 = arith.constant 0 : index
    %0 = vector.load %arg1[%c0, %c0_0] : memref<16x1024xf32, #tpu.memory_space<vmem>>, vector<16x1024xf32>
    %1 = arith.truncf %0 : vector<16x1024xf32> to vector<16x1024xbf16>
    %c0_1 = arith.constant 0 : index
    %c0_2 = arith.constant 0 : index
    %2 = vector.load %arg2[%c0_1, %c0_2] : memref<1024x128xbf16, #tpu.memory_space<vmem>>, vector<1024x128xbf16>
    %cst = arith.constant dense<0.000000e+00> : vector<16x128xf32>
    %3 = tpu.matmul %1, %2, %cst {dimension_numbers = #tpu.dot_dimension_numbers<[1], [0], [0], [1], [0, 0, 1, 1], [], []>} : vector<16x1024xbf16>, vector<1024x128xbf16>, vector<16x128xf32> -> vector<16x128xf32>
    %c0_3 = arith.constant 0 : index
    %c0_4 = arith.constant 0 : index
    %4 = vector.load %arg3[%c0_3, %c0_4] : memref<1x128xf32, #tpu.memory_space<vmem>>, vector<1x128xf32>
    %5 = vector.broadcast %4 : vector<1x128xf32> to vector<16x128xf32>
    %6 = arith.addf %3, %5 : vector<16x128xf32>
    %cst_5 = arith.constant 0.000000e+00 : f32
    %7 = vector.broadcast %cst_5 : f32 to vector<16x128xf32>
    %8 = arith.maximumf %6, %7 : vector<16x128xf32>
    %9 = arith.truncf %8 : vector<16x128xf32> to vector<16x128xbf16>
    %c0_6 = arith.constant 0 : index
    %c0_7 = arith.constant 0 : index
    %10 = vector.load %arg4[%c0_6, %c0_7] : memref<128x128xbf16, #tpu.memory_space<vmem>>, vector<128x128xbf16>
    %cst_8 = arith.constant dense<0.000000e+00> : vector<16x128xf32>
    %11 = tpu.matmul %9, %10, %cst_8 {dimension_numbers = #tpu.dot_dimension_numbers<[1], [0], [0], [1], [0, 0, 1, 1], [], []>} : vector<16x128xbf16>, vector<128x128xbf16>, vector<16x128xf32> -> vector<16x128xf32>
    %c0_9 = arith.constant 0 : index
    %c0_10 = arith.constant 0 : index
    %12 = vector.load %arg5[%c0_9, %c0_10] : memref<1x128xf32, #tpu.memory_space<vmem>>, vector<1x128xf32>
    %13 = vector.broadcast %12 : vector<1x128xf32> to vector<16x128xf32>
    %14 = arith.addf %11, %13 : vector<16x128xf32>
    %15 = arith.truncf %14 : vector<16x128xf32> to vector<16x128xbf16>
    %c0_11 = arith.constant 0 : index
    %c0_12 = arith.constant 0 : index
    %16 = vector.load %arg6[%c0_11, %c0_12] : memref<128x128xbf16, #tpu.memory_space<vmem>>, vector<128x128xbf16>
    %cst_13 = arith.constant dense<0.000000e+00> : vector<16x128xf32>
    %17 = tpu.matmul %15, %16, %cst_13 {dimension_numbers = #tpu.dot_dimension_numbers<[1], [0], [0], [1], [0, 0, 1, 1], [], []>} : vector<16x128xbf16>, vector<128x128xbf16>, vector<16x128xf32> -> vector<16x128xf32>
    %c0_14 = arith.constant 0 : index
    %c0_15 = arith.constant 0 : index
    %18 = vector.load %arg7[%c0_14, %c0_15] : memref<1x128xf32, #tpu.memory_space<vmem>>, vector<1x128xf32>
    %19 = vector.broadcast %18 : vector<1x128xf32> to vector<16x128xf32>
    %20 = arith.addf %17, %19 : vector<16x128xf32>
    %cst_16 = arith.constant 0.000000e+00 : f32
    %21 = vector.broadcast %cst_16 : f32 to vector<16x128xf32>
    %22 = arith.maximumf %20, %21 : vector<16x128xf32>
    %23 = arith.truncf %22 : vector<16x128xf32> to vector<16x128xbf16>
    %c0_17 = arith.constant 0 : index
    %c0_18 = arith.constant 0 : index
    %24 = vector.load %arg8[%c0_17, %c0_18] : memref<128x1024xbf16, #tpu.memory_space<vmem>>, vector<128x1024xbf16>
    %cst_19 = arith.constant dense<0.000000e+00> : vector<16x1024xf32>
    %25 = tpu.matmul %23, %24, %cst_19 {dimension_numbers = #tpu.dot_dimension_numbers<[1], [0], [0], [1], [0, 0, 1, 1], [], []>} : vector<16x128xbf16>, vector<128x1024xbf16>, vector<16x1024xf32> -> vector<16x1024xf32>
    %c0_20 = arith.constant 0 : index
    %c0_21 = arith.constant 0 : index
    %26 = vector.load %arg9[%c0_20, %c0_21] : memref<1x1024xf32, #tpu.memory_space<vmem>>, vector<1x1024xf32>
    %27 = vector.broadcast %26 : vector<1x1024xf32> to vector<16x1024xf32>
    %28 = arith.addf %25, %27 : vector<16x1024xf32>
    %cst_22 = arith.constant 5.000000e-01 : f32
    %29 = vector.broadcast %cst_22 : f32 to vector<16x1024xf32>
    %30 = arith.mulf %29, %28 : vector<16x1024xf32>
    %31 = math.tanh %30 : vector<16x1024xf32>
    %cst_23 = arith.constant 1.000000e+00 : f32
    %32 = vector.broadcast %cst_23 : f32 to vector<16x1024xf32>
    %33 = arith.addf %31, %32 : vector<16x1024xf32>
    %cst_24 = arith.constant 5.000000e-01 : f32
    %34 = vector.broadcast %cst_24 : f32 to vector<16x1024xf32>
    %35 = arith.mulf %34, %33 : vector<16x1024xf32>
    %c0_25 = arith.constant 0 : index
    %c0_26 = arith.constant 0 : index
    %36 = vector.load %arg10[%c0_25, %c0_26] : memref<16x1024xf32, #tpu.memory_space<vmem>>, vector<16x1024xf32>
    tpu.vector_store %arg10[%c0_25, %c0_26], %35 {strides = array<i32>} : memref<16x1024xf32, #tpu.memory_space<vmem>>, vector<16x1024xf32>,
    return
  }
  func.func @transform_0(%arg0: i32) -> (i32, i32) {
    %c0_i32 = arith.constant 0 : i32
    %c0_i32_0 = arith.constant 0 : i32
    return %arg0, %c0_i32 : i32, i32
  }
  func.func @transform_1(%arg0: i32) -> (i32, i32) {
    %c0_i32 = arith.constant 0 : i32
    %c0_i32_0 = arith.constant 0 : i32
    %c0_i32_1 = arith.constant 0 : i32
    return %c0_i32, %c0_i32_0 : i32, i32
  }
  func.func @transform_2(%arg0: i32) -> (i32, i32) {
    %c0_i32 = arith.constant 0 : i32
    %c0_i32_0 = arith.constant 0 : i32
    %c0_i32_1 = arith.constant 0 : i32
    return %c0_i32, %c0_i32_0 : i32, i32
  }
  func.func @transform_3(%arg0: i32) -> (i32, i32) {
    %c0_i32 = arith.constant 0 : i32
    %c0_i32_0 = arith.constant 0 : i32
    %c0_i32_1 = arith.constant 0 : i32
    return %c0_i32, %c0_i32_0 : i32, i32
  }
  func.func @transform_4(%arg0: i32) -> (i32, i32) {
    %c0_i32 = arith.constant 0 : i32
    %c0_i32_0 = arith.constant 0 : i32
    %c0_i32_1 = arith.constant 0 : i32
    return %c0_i32, %c0_i32_0 : i32, i32
  }
  func.func @transform_5(%arg0: i32) -> (i32, i32) {
    %c0_i32 = arith.constant 0 : i32
    %c0_i32_0 = arith.constant 0 : i32
    %c0_i32_1 = arith.constant 0 : i32
    return %c0_i32, %c0_i32_0 : i32, i32
  }
  func.func @transform_6(%arg0: i32) -> (i32, i32) {
    %c0_i32 = arith.constant 0 : i32
    %c0_i32_0 = arith.constant 0 : i32
    %c0_i32_1 = arith.constant 0 : i32
    return %c0_i32, %c0_i32_0 : i32, i32
  }
  func.func @transform_7(%arg0: i32) -> (i32, i32) {
    %c0_i32 = arith.constant 0 : i32
    %c0_i32_0 = arith.constant 0 : i32
    %c0_i32_1 = arith.constant 0 : i32
    return %c0_i32, %c0_i32_0 : i32, i32
  }
  func.func @transform_8(%arg0: i32) -> (i32, i32) {
    %c0_i32 = arith.constant 0 : i32
    %c0_i32_0 = arith.constant 0 : i32
    %c0_i32_1 = arith.constant 0 : i32
    return %c0_i32, %c0_i32_0 : i32, i32
  }
  func.func @transform_9(%arg0: i32) -> (i32, i32) {
    %c0_i32 = arith.constant 0 : i32
    %c0_i32_0 = arith.constant 0 : i32
    return %arg0, %c0_i32 : i32, i32
  }
}

module attributes {stable_mosaic.version = 11 : i64} {
  func.func @ae_kernel(%arg0: i32, %arg1: memref<16x1024xf32, #tpu.memory_space<vmem>>, %arg2: memref<1024x128xbf16, #tpu.memory_space<vmem>>, %arg3: memref<1x128xf32, #tpu.memory_space<vmem>>, %arg4: memref<128x128xbf16, #tpu.memory_space<vmem>>, %arg5: memref<1x128xf32, #tpu.memory_space<vmem>>, %arg6: memref<128x128xbf16, #tpu.memory_space<vmem>>, %arg7: memref<1x128xf32, #tpu.memory_space<vmem>>, %arg8: memref<128x1024xbf16, #tpu.memory_space<vmem>>, %arg9: memref<1x1024xf32, #tpu.memory_space<vmem>>, %arg10: memref<16x1024xf32, #tpu.memory_space<vmem>>) attributes {dimension_semantics = [#tpu.dimension_semantics<parallel>], iteration_bounds = array<i64: 1>, scalar_prefetch = 0 : i64, scratch_operands = 0 : i64, tpu.core_type = #tpu.core_type<tc>, window_params = [{transform_indices = @transform_0, window_bounds = array<i64: 16, 1024>}, {pipeline_mode = #tpu.pipeline_mode<synchronous>, transform_indices = @transform_1, window_bounds = array<i64: 1024, 128>}, {pipeline_mode = #tpu.pipeline_mode<synchronous>, transform_indices = @transform_2, window_bounds = array<i64: 1, 128>}, {pipeline_mode = #tpu.pipeline_mode<synchronous>, transform_indices = @transform_3, window_bounds = array<i64: 128, 128>}, {pipeline_mode = #tpu.pipeline_mode<synchronous>, transform_indices = @transform_4, window_bounds = array<i64: 1, 128>}, {pipeline_mode = #tpu.pipeline_mode<synchronous>, transform_indices = @transform_5, window_bounds = array<i64: 128, 128>}, {pipeline_mode = #tpu.pipeline_mode<synchronous>, transform_indices = @transform_6, window_bounds = array<i64: 1, 128>}, {pipeline_mode = #tpu.pipeline_mode<synchronous>, transform_indices = @transform_7, window_bounds = array<i64: 128, 1024>}, {pipeline_mode = #tpu.pipeline_mode<synchronous>, transform_indices = @transform_8, window_bounds = array<i64: 1, 1024>}, {transform_indices = @transform_9, window_bounds = array<i64: 16, 1024>}]} {
    %c0 = arith.constant 0 : index
    %c0_0 = arith.constant 0 : index
    %0 = vector.load %arg1[%c0, %c0_0] : memref<16x1024xf32, #tpu.memory_space<vmem>>, vector<16x1024xf32>
    %1 = arith.truncf %0 : vector<16x1024xf32> to vector<16x1024xbf16>
    %c0_1 = arith.constant 0 : index
    %c0_2 = arith.constant 0 : index
    %2 = vector.load %arg2[%c0_1, %c0_2] : memref<1024x128xbf16, #tpu.memory_space<vmem>>, vector<1024x128xbf16>
    %cst = arith.constant dense<0.000000e+00> : vector<16x128xf32>
    %3 = tpu.matmul %1, %2, %cst {dimension_numbers = #tpu.dot_dimension_numbers<[1], [0], [0], [1], [0, 0, 1, 1], [], []>} : vector<16x1024xbf16>, vector<1024x128xbf16>, vector<16x128xf32> -> vector<16x128xf32>
    %c0_3 = arith.constant 0 : index
    %c0_4 = arith.constant 0 : index
    %4 = vector.load %arg3[%c0_3, %c0_4] : memref<1x128xf32, #tpu.memory_space<vmem>>, vector<1x128xf32>
    %5 = vector.broadcast %4 : vector<1x128xf32> to vector<16x128xf32>
    %6 = arith.addf %3, %5 : vector<16x128xf32>
    %cst_5 = arith.constant 0.000000e+00 : f32
    %7 = vector.broadcast %cst_5 : f32 to vector<16x128xf32>
    %8 = arith.maximumf %6, %7 : vector<16x128xf32>
    %9 = arith.truncf %8 : vector<16x128xf32> to vector<16x128xbf16>
    %c0_6 = arith.constant 0 : index
    %c0_7 = arith.constant 0 : index
    %10 = vector.load %arg4[%c0_6, %c0_7] : memref<128x128xbf16, #tpu.memory_space<vmem>>, vector<128x128xbf16>
    %cst_8 = arith.constant dense<0.000000e+00> : vector<16x128xf32>
    %11 = tpu.matmul %9, %10, %cst_8 {dimension_numbers = #tpu.dot_dimension_numbers<[1], [0], [0], [1], [0, 0, 1, 1], [], []>} : vector<16x128xbf16>, vector<128x128xbf16>, vector<16x128xf32> -> vector<16x128xf32>
    %c0_9 = arith.constant 0 : index
    %c0_10 = arith.constant 0 : index
    %12 = vector.load %arg5[%c0_9, %c0_10] : memref<1x128xf32, #tpu.memory_space<vmem>>, vector<1x128xf32>
    %13 = vector.broadcast %12 : vector<1x128xf32> to vector<16x128xf32>
    %14 = arith.addf %11, %13 : vector<16x128xf32>
    %15 = arith.truncf %14 : vector<16x128xf32> to vector<16x128xbf16>
    %c0_11 = arith.constant 0 : index
    %c0_12 = arith.constant 0 : index
    %16 = vector.load %arg6[%c0_11, %c0_12] : memref<128x128xbf16, #tpu.memory_space<vmem>>, vector<128x128xbf16>
    %cst_13 = arith.constant dense<0.000000e+00> : vector<16x128xf32>
    %17 = tpu.matmul %15, %16, %cst_13 {dimension_numbers = #tpu.dot_dimension_numbers<[1], [0], [0], [1], [0, 0, 1, 1], [], []>} : vector<16x128xbf16>, vector<128x128xbf16>, vector<16x128xf32> -> vector<16x128xf32>
    %c0_14 = arith.constant 0 : index
    %c0_15 = arith.constant 0 : index
    %18 = vector.load %arg7[%c0_14, %c0_15] : memref<1x128xf32, #tpu.memory_space<vmem>>, vector<1x128xf32>
    %19 = vector.broadcast %18 : vector<1x128xf32> to vector<16x128xf32>
    %20 = arith.addf %17, %19 : vector<16x128xf32>
    %cst_16 = arith.constant 0.000000e+00 : f32
    %21 = vector.broadcast %cst_16 : f32 to vector<16x128xf32>
    %22 = arith.maximumf %20, %21 : vector<16x128xf32>
    %23 = arith.truncf %22 : vector<16x128xf32> to vector<16x128xbf16>
    %c0_17 = arith.constant 0 : index
    %c0_18 = arith.constant 0 : index
    %24 = vector.load %arg8[%c0_17, %c0_18] : memref<128x1024xbf16, #tpu.memory_space<vmem>>, vector<128x1024xbf16>
    %cst_19 = arith.constant dense<0.000000e+00> : vector<16x1024xf32>
    %25 = tpu.matmul %23, %24, %cst_19 {dimension_numbers = #tpu.dot_dimension_numbers<[1], [0], [0], [1], [0, 0, 1, 1], [], []>} : vector<16x128xbf16>, vector<128x1024xbf16>, vector<16x1024xf32> -> vector<16x1024xf32>
    %c0_20 = arith.constant 0 : index
    %c0_21 = arith.constant 0 : index
    %26 = vector.load %arg9[%c0_20, %c0_21] : memref<1x1024xf32, #tpu.memory_space<vmem>>, vector<1x1024xf32>
    %27 = vector.broadcast %26 : vector<1x1024xf32> to vector<16x1024xf32>
    %28 = arith.addf %25, %27 : vector<16x1024xf32>
    %cst_22 = arith.constant 5.000000e-01 : f32
    %29 = vector.broadcast %cst_22 : f32 to vector<16x1024xf32>
    %30 = arith.mulf %29, %28 : vector<16x1024xf32>
    %31 = math.tanh %30 : vector<16x1024xf32>
    %cst_23 = arith.constant 1.000000e+00 : f32
    %32 = vector.broadcast %cst_23 : f32 to vector<16x1024xf32>
    %33 = arith.addf %31, %32 : vector<16x1024xf32>
    %cst_24 = arith.constant 5.000000e-01 : f32
    %34 = vector.broadcast %cst_24 : f32 to vector<16x1024xf32>
    %35 = arith.mulf %34, %33 : vector<16x1024xf32>
    %c0_25 = arith.constant 0 : index
    %c0_26 = arith.constant 0 : index
    %36 = vector.load %arg10[%c0_25, %c0_26] : memref<16x1024xf32, #tpu.memory_space<vmem>>, vector<16x1024xf32>
    tpu.vector_store %arg10[%c0_25, %c0_26], %35 {strides = array<i32>} : memref<16x1024xf32, #tpu.memory_space<vmem>>, vector<16x1024xf32>,
    return
  }
  func.func @transform_0(%arg0: i32) -> (i32, i32) {
    %c0_i32 = arith.constant 0 : i32
    %c0_i32_0 = arith.constant 0 : i32
    return %arg0, %c0_i32 : i32, i32
  }
  func.func @transform_1(%arg0: i32) -> (i32, i32) {
    %c0_i32 = arith.constant 0 : i32
    %c0_i32_0 = arith.constant 0 : i32
    %c0_i32_1 = arith.constant 0 : i32
    return %c0_i32, %c0_i32_0 : i32, i32
  }
  func.func @transform_2(%arg0: i32) -> (i32, i32) {
    %c0_i32 = arith.constant 0 : i32
    %c0_i32_0 = arith.constant 0 : i32
    %c0_i32_1 = arith.constant 0 : i32
    return %c0_i32, %c0_i32_0 : i32, i32
  }
  func.func @transform_3(%arg0: i32) -> (i32, i32) {
    %c0_i32 = arith.constant 0 : i32
    %c0_i32_0 = arith.constant 0 : i32
    %c0_i32_1 = arith.constant 0 : i32
    return %c0_i32, %c0_i32_0 : i32, i32
  }
  func.func @transform_4(%arg0: i32) -> (i32, i32) {
    %c0_i32 = arith.constant 0 : i32
    %c0_i32_0 = arith.constant 0 : i32
    %c0_i32_1 = arith.constant 0 : i32
    return %c0_i32, %c0_i32_0 : i32, i32
  }
  func.func @transform_5(%arg0: i32) -> (i32, i32) {
    %c0_i32 = arith.constant 0 : i32
    %c0_i32_0 = arith.constant 0 : i32
    %c0_i32_1 = arith.constant 0 : i32
    return %c0_i32, %c0_i32_0 : i32, i32
  }
  func.func @transform_6(%arg0: i32) -> (i32, i32) {
    %c0_i32 = arith.constant 0 : i32
    %c0_i32_0 = arith.constant 0 : i32
    %c0_i32_1 = arith.constant 0 : i32
    return %c0_i32, %c0_i32_0 : i32, i32
  }
  func.func @transform_7(%arg0: i32) -> (i32, i32) {
    %c0_i32 = arith.constant 0 : i32
    %c0_i32_0 = arith.constant 0 : i32
    %c0_i32_1 = arith.constant 0 : i32
    return %c0_i32, %c0_i32_0 : i32, i32
  }
  func.func @transform_8(%arg0: i32) -> (i32, i32) {
    %c0_i32 = arith.constant 0 : i32
    %c0_i32_0 = arith.constant 0 : i32
    %c0_i32_1 = arith.constant 0 : i32
    return %c0_i32, %c0_i32_0 : i32, i32
  }
  func.func @transform_9(%arg0: i32) -> (i32, i32) {
    %c0_i32 = arith.constant 0 : i32
    %c0_i32_0 = arith.constant 0 : i32
    return %arg0, %c0_i32 : i32, i32
  }
}

</mosaic_0001>

<llo_original>
// kernel: ae_forward.1
$region0: #{ae_forward.1}
  #allocation0 [shape = 'u32[]', space=smem, size = 0x4, offset = 0x4, fixed_abs, tag = 'smem constant byte address 0x4 - core index']
  #allocation1 [shape = 'u32[144,128]{1,0:T(1,128)}', space=vmem, size = 0x12000, scoped, tag = 'internal scratch']
  %s0 = inlined_call_operand.vmem [shape: f32[16,1024], index: 0, kind: input, shape index: {}]
  %s1 = inlined_call_operand.vmem [shape: bf16[1024,128], index: 1, kind: input, shape index: {}]
  %s2 = inlined_call_operand.hbm [shape: f32[1,128], index: 2, kind: input, shape index: {}]
  %s3 = inlined_call_operand.vmem [shape: bf16[128,128], index: 3, kind: input, shape index: {}]
  %s4 = inlined_call_operand.hbm [shape: f32[1,128], index: 4, kind: input, shape index: {}]
  %s5 = inlined_call_operand.vmem [shape: bf16[128,128], index: 5, kind: input, shape index: {}]
  %s6 = inlined_call_operand.hbm [shape: f32[1,128], index: 6, kind: input, shape index: {}]
  %s7 = inlined_call_operand.vmem [shape: bf16[128,1024], index: 7, kind: input, shape index: {}]
  %s8 = inlined_call_operand.vmem [shape: f32[1,1024], index: 8, kind: input, shape index: {}]
  %s9 = inlined_call_operand.vmem [shape: f32[16,1024], index: 9, kind: output, shape index: {}]
  %s10 = sld [smem:[#allocation0]]
  $region58: #{ae_forward.1} parent=0
    _
  %s12 = ssub.s32 1, %s10
  %s13 = scalar_select 0, %s12, %s10
  $region1: #{ae_forward.1} parent=0
    #allocation2 [shape = 'u8[512]{0}', space=vmem, size = 0x400, scoped, tag = 'input window, operand 2, single buffered']
    #allocation3 [shape = 's32[1]{0}', space=sflag, size = 0x4, scoped, tag = 'scoped memory for ae_forward.1']
    #allocation4 [shape = 'u8[512]{0}', space=vmem, size = 0x400, scoped, tag = 'input window, operand 4, single buffered']
    #allocation5 [shape = 's32[1]{0}', space=sflag, size = 0x4, scoped, tag = 'scoped memory for ae_forward.1']
    #allocation6 [shape = 'u8[512]{0}', space=vmem, size = 0x400, scoped, tag = 'input window, operand 6, single buffered']
    %14 = vsyncpa [#allocation3], 0
    %15 = vsyncpa [#allocation5], 0
    // Predicated region
    $region2: #{ae_forward.1} parent=1 // pred_check
      _
    $region3: #{ae_forward.1} parent=1 // pred_check_branch
      %17 = sbr.rel (0) target = $region5
    $region4: #{ae_forward.1} parent=1 // pred_region
      _
    $region5: #{ae_forward.1} parent=1 // pred_fallthru
      _
    // Predicated region
    $region6: #{ae_forward.1} parent=1 // pred_check
      _
    $region7: #{ae_forward.1} parent=1 // pred_check_branch
      %19 = sbr.rel (0) target = $region9
    $region8: #{ae_forward.1} parent=1 // pred_region
      _
    $region9: #{ae_forward.1} parent=1 // pred_fallthru
      _
    // Predicated region
    $region10: #{ae_forward.1} parent=1 // pred_check
      _
    $region11: #{ae_forward.1} parent=1 // pred_check_branch
      %21 = sbr.rel (0) target = $region13
    $region12: #{ae_forward.1} parent=1 // pred_region
      %s23 = ssub.s32 16, 16
      %24 = vsyncadd [#allocation3], %s23
      %s26 = sshll.u32 [#allocation2], 4
      %s27 = int_to_ptr.vmem [resolvable:$true] %s26
      %29 = dma.hbm_to_vmem [thread:$0]  %s2, 16, %s27, [#allocation3]
    $region13: #{ae_forward.1} parent=1 // pred_fallthru
      _
    // Predicated region
    $region14: #{ae_forward.1} parent=1 // pred_check
      _
    $region15: #{ae_forward.1} parent=1 // pred_check_branch
      %31 = sbr.rel (0) target = $region17
    $region16: #{ae_forward.1} parent=1 // pred_region
      _
    $region17: #{ae_forward.1} parent=1 // pred_fallthru
      _
    // Predicated region
    $region18: #{ae_forward.1} parent=1 // pred_check
      _
    $region19: #{ae_forward.1} parent=1 // pred_check_branch
      %33 = sbr.rel (0) target = $region21
    $region20: #{ae_forward.1} parent=1 // pred_region
      %s35 = ssub.s32 16, 16
      %36 = vsyncadd [#allocation5], %s35
      %s38 = sshll.u32 [#allocation4], 4
      %s39 = int_to_ptr.vmem [resolvable:$true] %s38
      %41 = dma.hbm_to_vmem [thread:$0]  %s4, 16, %s39, [#allocation5]
    $region21: #{ae_forward.1} parent=1 // pred_fallthru
      _
    // Predicated region
    $region22: #{ae_forward.1} parent=1 // pred_check
      _
    $region23: #{ae_forward.1} parent=1 // pred_check_branch
      %43 = sbr.rel (0) target = $region25
    $region24: #{ae_forward.1} parent=1 // pred_region
      _
    $region25: #{ae_forward.1} parent=1 // pred_fallthru
      _
    // Predicated region
    $region26: #{ae_forward.1} parent=1 // pred_check
      _
    $region27: #{ae_forward.1} parent=1 // pred_check_branch
      %45 = sbr.rel (0) target = $region29
    $region28: #{ae_forward.1} parent=1 // pred_region
      %s47 = ssub.s32 16, 16
      %48 = vsyncadd [#allocation5], %s47
      %s50 = sshll.u32 [#allocation6], 4
      %s51 = int_to_ptr.vmem [resolvable:$true] %s50
      %53 = dma.hbm_to_vmem [thread:$0]  %s6, 16, %s51, [#allocation5]
    $region29: #{ae_forward.1} parent=1 // pred_fallthru
      _
    // Predicated region
    $region30: #{ae_forward.1} parent=1 // pred_check
      _
    $region31: #{ae_forward.1} parent=1 // pred_check_branch
      %55 = sbr.rel (0) target = $region33
    $region32: #{ae_forward.1} parent=1 // pred_region
      _
    $region33: #{ae_forward.1} parent=1 // pred_fallthru
      _
    // Predicated region
    $region34: #{ae_forward.1} parent=1 // pred_check
      _
    $region35: #{ae_forward.1} parent=1 // pred_check_branch
      %57 = sbr.rel (0) target = $region37
    $region36: #{ae_forward.1} parent=1 // pred_region
      _
    $region37: #{ae_forward.1} parent=1 // pred_fallthru
      _
    // Predicated region
    $region38: #{ae_forward.1} parent=1 // pred_check
      _
    $region39: #{ae_forward.1} parent=1 // pred_check_branch
      %59 = sbr.rel (0) target = $region41
    $region40: #{ae_forward.1} parent=1 // pred_region
      %60 = dma.done [#allocation3], 16
    $region41: #{ae_forward.1} parent=1 // pred_fallthru
      _
    // Predicated region
    $region42: #{ae_forward.1} parent=1 // pred_check
      _
    $region43: #{ae_forward.1} parent=1 // pred_check_branch
      %62 = sbr.rel (0) target = $region45
    $region44: #{ae_forward.1} parent=1 // pred_region
      %63 = dma.done [#allocation5], 16
    $region45: #{ae_forward.1} parent=1 // pred_fallthru
      _
    // Predicated region
    $region46: #{ae_forward.1} parent=1 // pred_check
      _
    $region47: #{ae_forward.1} parent=1 // pred_check_branch
      %65 = sbr.rel (0) target = $region49
    $region48: #{ae_forward.1} parent=1 // pred_region
      %66 = dma.done [#allocation5], 16
    $region49: #{ae_forward.1} parent=1 // pred_fallthru
      _
    %v68 = vld [vmem:[%s0] sm:$0xff]
    %v69 = vld [vmem:[%s0 + $0x8] sm:$0xff]
    %v70 = vld [vmem:[%s0 + $0x10] sm:$0xff]
    %v71 = vld [vmem:[%s0 + $0x18] sm:$0xff]
    %v72 = vld [vmem:[%s0 + $0x20] sm:$0xff]
    %v73 = vld [vmem:[%s0 + $0x28] sm:$0xff]
    %v74 = vld [vmem:[%s0 + $0x30] sm:$0xff]
    %v75 = vld [vmem:[%s0 + $0x38] sm:$0xff]
    %v76 = vld [vmem:[%s0 + $0x40] sm:$0xff]
    %v77 = vld [vmem:[%s0 + $0x48] sm:$0xff]
    %v78 = vld [vmem:[%s0 + $0x50] sm:$0xff]
    %v79 = vld [vmem:[%s0 + $0x58] sm:$0xff]
    %v80 = vld [vmem:[%s0 + $0x60] sm:$0xff]
    %v81 = vld [vmem:[%s0 + $0x68] sm:$0xff]
    %v82 = vld [vmem:[%s0 + $0x70] sm:$0xff]
    %v83 = vld [vmem:[%s0 + $0x78] sm:$0xff]
    %v84 = vpack.c.bf16 %v76, %v68
    %v85 = vpack.c.bf16 %v77, %v69
    %v86 = vpack.c.bf16 %v78, %v70
    %v87 = vpack.c.bf16 %v79, %v71
    %v88 = vpack.c.bf16 %v80, %v72
    %v89 = vpack.c.bf16 %v81, %v73
    %v90 = vpack.c.bf16 %v82, %v74
    %v91 = vpack.c.bf16 %v83, %v75
    %v92 = vld [vmem:[%s1] sm:$0xf]
    %v93 = vld [vmem:[%s1 + $0x4] sm:$0xf]
    %v94 = vld [vmem:[%s1 + $0x8] sm:$0xf]
    %v95 = vld [vmem:[%s1 + $0xc] sm:$0xf]
    %v96 = vld [vmem:[%s1 + $0x10] sm:$0xf]
    %v97 = vld [vmem:[%s1 + $0x14] sm:$0xf]
    %v98 = vld [vmem:[%s1 + $0x18] sm:$0xf]
    %v99 = vld [vmem:[%s1 + $0x1c] sm:$0xf]
    %v100 = vld [vmem:[%s1 + $0x20] sm:$0xf]
    %v101 = vld [vmem:[%s1 + $0x24] sm:$0xf]
    %v102 = vld [vmem:[%s1 + $0x28] sm:$0xf]
    %v103 = vld [vmem:[%s1 + $0x2c] sm:$0xf]
    %v104 = vld [vmem:[%s1 + $0x30] sm:$0xf]
    %v105 = vld [vmem:[%s1 + $0x34] sm:$0xf]
    %v106 = vld [vmem:[%s1 + $0x38] sm:$0xf]
    %v107 = vld [vmem:[%s1 + $0x3c] sm:$0xf]
    %v108 = vld [vmem:[%s1 + $0x40] sm:$0xf]
    %v109 = vld [vmem:[%s1 + $0x44] sm:$0xf]
    %v110 = vld [vmem:[%s1 + $0x48] sm:$0xf]
    %v111 = vld [vmem:[%s1 + $0x4c] sm:$0xf]
    %v112 = vld [vmem:[%s1 + $0x50] sm:$0xf]
    %v113 = vld [vmem:[%s1 + $0x54] sm:$0xf]
    %v114 = vld [vmem:[%s1 + $0x58] sm:$0xf]
    %v115 = vld [vmem:[%s1 + $0x5c] sm:$0xf]
    %v116 = vld [vmem:[%s1 + $0x60] sm:$0xf]
    %v117 = vld [vmem:[%s1 + $0x64] sm:$0xf]
    %v118 = vld [vmem:[%s1 + $0x68] sm:$0xf]
    %v119 = vld [vmem:[%s1 + $0x6c] sm:$0xf]
    %v120 = vld [vmem:[%s1 + $0x70] sm:$0xf]
    %v121 = vld [vmem:[%s1 + $0x74] sm:$0xf]
    %v122 = vld [vmem:[%s1 + $0x78] sm:$0xf]
    %v123 = vld [vmem:[%s1 + $0x7c] sm:$0xf]
    %v124 = vld [vmem:[%s1 + $0x80] sm:$0xf]
    %v125 = vld [vmem:[%s1 + $0x84] sm:$0xf]
    %v126 = vld [vmem:[%s1 + $0x88] sm:$0xf]
    %v127 = vld [vmem:[%s1 + $0x8c] sm:$0xf]
    %v128 = vld [vmem:[%s1 + $0x90] sm:$0xf]
    %v129 = vld [vmem:[%s1 + $0x94] sm:$0xf]
    %v130 = vld [vmem:[%s1 + $0x98] sm:$0xf]
    %v131 = vld [vmem:[%s1 + $0x9c] sm:$0xf]
    %v132 = vld [vmem:[%s1 + $0xa0] sm:$0xf]
    %v133 = vld [vmem:[%s1 + $0xa4] sm:$0xf]
    %v134 = vld [vmem:[%s1 + $0xa8] sm:$0xf]
    %v135 = vld [vmem:[%s1 + $0xac] sm:$0xf]
    %v136 = vld [vmem:[%s1 + $0xb0] sm:$0xf]
    %v137 = vld [vmem:[%s1 + $0xb4] sm:$0xf]
    %v138 = vld [vmem:[%s1 + $0xb8] sm:$0xf]
    %v139 = vld [vmem:[%s1 + $0xbc] sm:$0xf]
    %v140 = vld [vmem:[%s1 + $0xc0] sm:$0xf]
    %v141 = vld [vmem:[%s1 + $0xc4] sm:$0xf]
    %v142 = vld [vmem:[%s1 + $0xc8] sm:$0xf]
    %v143 = vld [vmem:[%s1 + $0xcc] sm:$0xf]
    %v144 = vld [vmem:[%s1 + $0xd0] sm:$0xf]
    %v145 = vld [vmem:[%s1 + $0xd4] sm:$0xf]
    %v146 = vld [vmem:[%s1 + $0xd8] sm:$0xf]
    %v147 = vld [vmem:[%s1 + $0xdc] sm:$0xf]
    %v148 = vld [vmem:[%s1 + $0xe0] sm:$0xf]
    %v149 = vld [vmem:[%s1 + $0xe4] sm:$0xf]
    %v150 = vld [vmem:[%s1 + $0xe8] sm:$0xf]
    %v151 = vld [vmem:[%s1 + $0xec] sm:$0xf]
    %v152 = vld [vmem:[%s1 + $0xf0] sm:$0xf]
    %v153 = vld [vmem:[%s1 + $0xf4] sm:$0xf]
    %v154 = vld [vmem:[%s1 + $0xf8] sm:$0xf]
    %v155 = vld [vmem:[%s1 + $0xfc] sm:$0xf]
    %v156 = vld [vmem:[%s1 + $0x100] sm:$0xf]
    %v157 = vld [vmem:[%s1 + $0x104] sm:$0xf]
    %v158 = vld [vmem:[%s1 + $0x108] sm:$0xf]
    %v159 = vld [vmem:[%s1 + $0x10c] sm:$0xf]
    %v160 = vld [vmem:[%s1 + $0x110] sm:$0xf]
    %v161 = vld [vmem:[%s1 + $0x114] sm:$0xf]
    %v162 = vld [vmem:[%s1 + $0x118] sm:$0xf]
    %v163 = vld [vmem:[%s1 + $0x11c] sm:$0xf]
    %v164 = vld [vmem:[%s1 + $0x120] sm:$0xf]
    %v165 = vld [vmem:[%s1 + $0x124] sm:$0xf]
    %v166 = vld [vmem:[%s1 + $0x128] sm:$0xf]
    %v167 = vld [vmem:[%s1 + $0x12c] sm:$0xf]
    %v168 = vld [vmem:[%s1 + $0x130] sm:$0xf]
    %v169 = vld [vmem:[%s1 + $0x134] sm:$0xf]
    %v170 = vld [vmem:[%s1 + $0x138] sm:$0xf]
    %v171 = vld [vmem:[%s1 + $0x13c] sm:$0xf]
    %v172 = vld [vmem:[%s1 + $0x140] sm:$0xf]
    %v173 = vld [vmem:[%s1 + $0x144] sm:$0xf]
    %v174 = vld [vmem:[%s1 + $0x148] sm:$0xf]
    %v175 = vld [vmem:[%s1 + $0x14c] sm:$0xf]
    %v176 = vld [vmem:[%s1 + $0x150] sm:$0xf]
    %v177 = vld [vmem:[%s1 + $0x154] sm:$0xf]
    %v178 = vld [vmem:[%s1 + $0x158] sm:$0xf]
    %v179 = vld [vmem:[%s1 + $0x15c] sm:$0xf]
    %v180 = vld [vmem:[%s1 + $0x160] sm:$0xf]
    %v181 = vld [vmem:[%s1 + $0x164] sm:$0xf]
    %v182 = vld [vmem:[%s1 + $0x168] sm:$0xf]
    %v183 = vld [vmem:[%s1 + $0x16c] sm:$0xf]
    %v184 = vld [vmem:[%s1 + $0x170] sm:$0xf]
    %v185 = vld [vmem:[%s1 + $0x174] sm:$0xf]
    %v186 = vld [vmem:[%s1 + $0x178] sm:$0xf]
    %v187 = vld [vmem:[%s1 + $0x17c] sm:$0xf]
    %v188 = vld [vmem:[%s1 + $0x180] sm:$0xf]
    %v189 = vld [vmem:[%s1 + $0x184] sm:$0xf]
    %v190 = vld [vmem:[%s1 + $0x188] sm:$0xf]
    %v191 = vld [vmem:[%s1 + $0x18c] sm:$0xf]
    %v192 = vld [vmem:[%s1 + $0x190] sm:$0xf]
    %v193 = vld [vmem:[%s1 + $0x194] sm:$0xf]
    %v194 = vld [vmem:[%s1 + $0x198] sm:$0xf]
    %v195 = vld [vmem:[%s1 + $0x19c] sm:$0xf]
    %v196 = vld [vmem:[%s1 + $0x1a0] sm:$0xf]
    %v197 = vld [vmem:[%s1 + $0x1a4] sm:$0xf]
    %v198 = vld [vmem:[%s1 + $0x1a8] sm:$0xf]
    %v199 = vld [vmem:[%s1 + $0x1ac] sm:$0xf]
    %v200 = vld [vmem:[%s1 + $0x1b0] sm:$0xf]
    %v201 = vld [vmem:[%s1 + $0x1b4] sm:$0xf]
    %v202 = vld [vmem:[%s1 + $0x1b8] sm:$0xf]
    %v203 = vld [vmem:[%s1 + $0x1bc] sm:$0xf]
    %v204 = vld [vmem:[%s1 + $0x1c0] sm:$0xf]
    %v205 = vld [vmem:[%s1 + $0x1c4] sm:$0xf]
    %v206 = vld [vmem:[%s1 + $0x1c8] sm:$0xf]
    %v207 = vld [vmem:[%s1 + $0x1cc] sm:$0xf]
    %v208 = vld [vmem:[%s1 + $0x1d0] sm:$0xf]
    %v209 = vld [vmem:[%s1 + $0x1d4] sm:$0xf]
    %v210 = vld [vmem:[%s1 + $0x1d8] sm:$0xf]
    %v211 = vld [vmem:[%s1 + $0x1dc] sm:$0xf]
    %v212 = vld [vmem:[%s1 + $0x1e0] sm:$0xf]
    %v213 = vld [vmem:[%s1 + $0x1e4] sm:$0xf]
    %v214 = vld [vmem:[%s1 + $0x1e8] sm:$0xf]
    %v215 = vld [vmem:[%s1 + $0x1ec] sm:$0xf]
    %v216 = vld [vmem:[%s1 + $0x1f0] sm:$0xf]
    %v217 = vld [vmem:[%s1 + $0x1f4] sm:$0xf]
    %v218 = vld [vmem:[%s1 + $0x1f8] sm:$0xf]
    %v219 = vld [vmem:[%s1 + $0x1fc] sm:$0xf]
    %v220 = vld [vmem:[#allocation2] sm:$0x1]
    %v222 = vlaneseq
    %v223 = vshrl.u32 %v222, 7
    %v224 = vsub.s32 0, %v223
    %v225 = vrot.slane %v220, %v224
    %v355 = vunpack.c.l.b16 %v92
    %v356 = vunpack.c.l.b16 %v93
    %v357 = vunpack.c.l.b16 %v94
    %v358 = vunpack.c.l.b16 %v95
    %v359 = vunpack.c.l.b16 %v96
    %v360 = vunpack.c.l.b16 %v97
    %v361 = vunpack.c.l.b16 %v98
    %v362 = vunpack.c.l.b16 %v99
    %v363 = vunpack.c.l.b16 %v100
    %v364 = vunpack.c.l.b16 %v101
    %v365 = vunpack.c.l.b16 %v102
    %v366 = vunpack.c.l.b16 %v103
    %v367 = vunpack.c.l.b16 %v104
    %v368 = vunpack.c.l.b16 %v105
    %v369 = vunpack.c.l.b16 %v106
    %v370 = vunpack.c.l.b16 %v107
    %v371 = vunpack.c.l.b16 %v108
    %v372 = vunpack.c.l.b16 %v109
    %v373 = vunpack.c.l.b16 %v110
    %v374 = vunpack.c.l.b16 %v111
    %v375 = vunpack.c.l.b16 %v112
    %v376 = vunpack.c.l.b16 %v113
    %v377 = vunpack.c.l.b16 %v114
    %v378 = vunpack.c.l.b16 %v115
    %v379 = vunpack.c.l.b16 %v116
    %v380 = vunpack.c.l.b16 %v117
    %v381 = vunpack.c.l.b16 %v118
    %v382 = vunpack.c.l.b16 %v119
    %v383 = vunpack.c.l.b16 %v120
    %v384 = vunpack.c.l.b16 %v121
    %v385 = vunpack.c.l.b16 %v122
    %v386 = vunpack.c.l.b16 %v123
    %v387 = vunpack.c.l.b16 %v124
    %v388 = vunpack.c.l.b16 %v125
    %v389 = vunpack.c.l.b16 %v126
    %v390 = vunpack.c.l.b16 %v127
    %v391 = vunpack.c.l.b16 %v128
    %v392 = vunpack.c.l.b16 %v129
    %v393 = vunpack.c.l.b16 %v130
    %v394 = vunpack.c.l.b16 %v131
    %v395 = vunpack.c.l.b16 %v132
    %v396 = vunpack.c.l.b16 %v133
    %v397 = vunpack.c.l.b16 %v134
    %v398 = vunpack.c.l.b16 %v135
    %v399 = vunpack.c.l.b16 %v136
    %v400 = vunpack.c.l.b16 %v137
    %v401 = vunpack.c.l.b16 %v138
    %v402 = vunpack.c.l.b16 %v139
    %v403 = vunpack.c.l.b16 %v140
    %v404 = vunpack.c.l.b16 %v141
    %v405 = vunpack.c.l.b16 %v142
    %v406 = vunpack.c.l.b16 %v143
    %v407 = vunpack.c.l.b16 %v144
    %v408 = vunpack.c.l.b16 %v145
    %v409 = vunpack.c.l.b16 %v146
    %v410 = vunpack.c.l.b16 %v147
    %v411 = vunpack.c.l.b16 %v148
    %v412 = vunpack.c.l.b16 %v149
    %v413 = vunpack.c.l.b16 %v150
    %v414 = vunpack.c.l.b16 %v151
    %v415 = vunpack.c.l.b16 %v152
    %v416 = vunpack.c.l.b16 %v153
    %v417 = vunpack.c.l.b16 %v154
    %v418 = vunpack.c.l.b16 %v155
    %v419 = vunpack.c.l.b16 %v156
    %v420 = vunpack.c.l.b16 %v157
    %v421 = vunpack.c.l.b16 %v158
    %v422 = vunpack.c.l.b16 %v159
    %v423 = vunpack.c.l.b16 %v160
    %v424 = vunpack.c.l.b16 %v161
    %v425 = vunpack.c.l.b16 %v162
    %v426 = vunpack.c.l.b16 %v163
    %v427 = vunpack.c.l.b16 %v164
    %v428 = vunpack.c.l.b16 %v165
    %v429 = vunpack.c.l.b16 %v166
    %v430 = vunpack.c.l.b16 %v167
    %v431 = vunpack.c.l.b16 %v168
    %v432 = vunpack.c.l.b16 %v169
    %v433 = vunpack.c.l.b16 %v170
    %v434 = vunpack.c.l.b16 %v171
    %v435 = vunpack.c.l.b16 %v172
    %v436 = vunpack.c.l.b16 %v173
    %v437 = vunpack.c.l.b16 %v174
    %v438 = vunpack.c.l.b16 %v175
    %v439 = vunpack.c.l.b16 %v176
    %v440 = vunpack.c.l.b16 %v177
    %v441 = vunpack.c.l.b16 %v178
    %v442 = vunpack.c.l.b16 %v179
    %v443 = vunpack.c.l.b16 %v180
    %v444 = vunpack.c.l.b16 %v181
    %v445 = vunpack.c.l.b16 %v182
    %v446 = vunpack.c.l.b16 %v183
    %v447 = vunpack.c.l.b16 %v184
    %v448 = vunpack.c.l.b16 %v185
    %v449 = vunpack.c.l.b16 %v186
    %v450 = vunpack.c.l.b16 %v187
    %v451 = vunpack.c.l.b16 %v188
    %v452 = vunpack.c.l.b16 %v189
    %v453 = vunpack.c.l.b16 %v190
    %v454 = vunpack.c.l.b16 %v191
    %v455 = vunpack.c.l.b16 %v192
    %v456 = vunpack.c.l.b16 %v193
    %v457 = vunpack.c.l.b16 %v194
    %v458 = vunpack.c.l.b16 %v195
    %v459 = vunpack.c.l.b16 %v196
    %v460 = vunpack.c.l.b16 %v197
    %v461 = vunpack.c.l.b16 %v198
    %v462 = vunpack.c.l.b16 %v199
    %v463 = vunpack.c.l.b16 %v200
    %v464 = vunpack.c.l.b16 %v201
    %v465 = vunpack.c.l.b16 %v202
    %v466 = vunpack.c.l.b16 %v203
    %v467 = vunpack.c.l.b16 %v204
    %v468 = vunpack.c.l.b16 %v205
    %v469 = vunpack.c.l.b16 %v206
    %v470 = vunpack.c.l.b16 %v207
    %v471 = vunpack.c.l.b16 %v208
    %v472 = vunpack.c.l.b16 %v209
    %v473 = vunpack.c.l.b16 %v210
    %v474 = vunpack.c.l.b16 %v211
    %v475 = vunpack.c.l.b16 %v212
    %v476 = vunpack.c.l.b16 %v213
    %v477 = vunpack.c.l.b16 %v214
    %v478 = vunpack.c.l.b16 %v215
    %v479 = vunpack.c.l.b16 %v216
    %v480 = vunpack.c.l.b16 %v217
    %v481 = vunpack.c.l.b16 %v218
    %v482 = vunpack.c.l.b16 %v219
    %v483 = vpack.c.b16 %v356, %v355
    %v484 = vpack.c.b16 %v358, %v357
    %v485 = vpack.c.b16 %v360, %v359
    %v486 = vpack.c.b16 %v362, %v361
    %v487 = vpack.c.b16 %v364, %v363
    %v488 = vpack.c.b16 %v366, %v365
    %v489 = vpack.c.b16 %v368, %v367
    %v490 = vpack.c.b16 %v370, %v369
    %v491 = vpack.c.b16 %v372, %v371
    %v492 = vpack.c.b16 %v374, %v373
    %v493 = vpack.c.b16 %v376, %v375
    %v494 = vpack.c.b16 %v378, %v377
    %v495 = vpack.c.b16 %v380, %v379
    %v496 = vpack.c.b16 %v382, %v381
    %v497 = vpack.c.b16 %v384, %v383
    %v498 = vpack.c.b16 %v386, %v385
    %v499 = vpack.c.b16 %v388, %v387
    %v500 = vpack.c.b16 %v390, %v389
    %v501 = vpack.c.b16 %v392, %v391
    %v502 = vpack.c.b16 %v394, %v393
    %v503 = vpack.c.b16 %v396, %v395
    %v504 = vpack.c.b16 %v398, %v397
    %v505 = vpack.c.b16 %v400, %v399
    %v506 = vpack.c.b16 %v402, %v401
    %v507 = vpack.c.b16 %v404, %v403
    %v508 = vpack.c.b16 %v406, %v405
    %v509 = vpack.c.b16 %v408, %v407
    %v510 = vpack.c.b16 %v410, %v409
    %v511 = vpack.c.b16 %v412, %v411
    %v512 = vpack.c.b16 %v414, %v413
    %v513 = vpack.c.b16 %v416, %v415
    %v514 = vpack.c.b16 %v418, %v417
    %v515 = vpack.c.b16 %v420, %v419
    %v516 = vpack.c.b16 %v422, %v421
    %v517 = vpack.c.b16 %v424, %v423
    %v518 = vpack.c.b16 %v426, %v425
    %v519 = vpack.c.b16 %v428, %v427
    %v520 = vpack.c.b16 %v430, %v429
    %v521 = vpack.c.b16 %v432, %v431
    %v522 = vpack.c.b16 %v434, %v433
    %v523 = vpack.c.b16 %v436, %v435
    %v524 = vpack.c.b16 %v438, %v437
    %v525 = vpack.c.b16 %v440, %v439
    %v526 = vpack.c.b16 %v442, %v441
    %v527 = vpack.c.b16 %v444, %v443
    %v528 = vpack.c.b16 %v446, %v445
    %v529 = vpack.c.b16 %v448, %v447
    %v530 = vpack.c.b16 %v450, %v449
    %v531 = vpack.c.b16 %v452, %v451
    %v532 = vpack.c.b16 %v454, %v453
    %v533 = vpack.c.b16 %v456, %v455
    %v534 = vpack.c.b16 %v458, %v457
    %v535 = vpack.c.b16 %v460, %v459
    %v536 = vpack.c.b16 %v462, %v461
    %v537 = vpack.c.b16 %v464, %v463
    %v538 = vpack.c.b16 %v466, %v465
    %v539 = vpack.c.b16 %v468, %v467
    %v540 = vpack.c.b16 %v470, %v469
    %v541 = vpack.c.b16 %v472, %v471
    %v542 = vpack.c.b16 %v474, %v473
    %v543 = vpack.c.b16 %v476, %v475
    %v544 = vpack.c.b16 %v478, %v477
    %v545 = vpack.c.b16 %v480, %v479
    %v546 = vpack.c.b16 %v482, %v481
    %611 = vmatprep.subr.bf16.mxu0 0
    %612 = vmatpush1.bf16.msra.mxu0 %v490
    %613 = vmatprep.subr.bf16.mxu0 0
    %614 = vmatpush1.bf16.msra.mxu0 %v489
    %615 = vmatprep.subr.bf16.mxu0 0
    %616 = vmatpush1.bf16.msra.mxu0 %v488
    %617 = vmatprep.subr.bf16.mxu0 0
    %618 = vmatpush1.bf16.msra.mxu0 %v487
    %619 = vmatprep.subr.bf16.mxu0 0
    %620 = vmatpush1.bf16.msra.mxu0 %v486
    %621 = vmatprep.subr.bf16.mxu0 0
    %622 = vmatpush1.bf16.msra.mxu0 %v485
    %623 = vmatprep.subr.bf16.mxu0 0
    %624 = vmatpush1.bf16.msra.mxu0 %v484
    %625 = vmatprep.subr.bf16.mxu0 0
    %626 = vmatpush1.bf16.msra.mxu0 %v483
    %627 = vmatprep.subr.bf16.mxu0 0
    %628 = vmatpush2.bf16.msra.mxu0 %v498
    %629 = vmatprep.subr.bf16.mxu0 0
    %630 = vmatpush2.bf16.msra.mxu0 %v497
    %631 = vmatprep.subr.bf16.mxu0 0
    %632 = vmatpush2.bf16.msra.mxu0 %v496
    %633 = vmatprep.subr.bf16.mxu0 0
    %634 = vmatpush2.bf16.msra.mxu0 %v495
    %635 = vmatprep.subr.bf16.mxu0 0
    %636 = vmatpush2.bf16.msra.mxu0 %v494
    %637 = vmatprep.subr.bf16.mxu0 0
    %638 = vmatpush2.bf16.msra.mxu0 %v493
    %639 = vmatprep.subr.bf16.mxu0 0
    %640 = vmatpush2.bf16.msra.mxu0 %v492
    %641 = vmatprep.subr.bf16.mxu0 0
    %642 = vmatpush2.bf16.msra.mxu0 %v491
    %643 = vmatprep.mubr.bf16.mxu0 %v85
    %644 = vmatmul.mubr.bf16.gmra.mxu0 %v84
    %v645 = vpop.f32.mrf.mxu0
    %v646 = vadd.f32 %v225, %v645
    %v647 = vpop.f32.mrf.mxu0
    %v648 = vpop.f32.mrf.mxu0
    %v649 = vadd.f32 %v225, %v648
    %v650 = vpop.f32.mrf.mxu0
    %651 = vdwg.mxu0
    %652 = vmatprep.subr.bf16.mxu0 0
    %653 = vmatpush1.bf16.msra.mxu0 %v506
    %654 = vmatprep.subr.bf16.mxu0 0
    %655 = vmatpush1.bf16.msra.mxu0 %v505
    %656 = vmatprep.subr.bf16.mxu0 0
    %657 = vmatpush1.bf16.msra.mxu0 %v504
    %658 = vmatprep.subr.bf16.mxu0 0
    %659 = vmatpush1.bf16.msra.mxu0 %v503
    %660 = vmatprep.subr.bf16.mxu0 0
    %661 = vmatpush1.bf16.msra.mxu0 %v502
    %662 = vmatprep.subr.bf16.mxu0 0
    %663 = vmatpush1.bf16.msra.mxu0 %v501
    %664 = vmatprep.subr.bf16.mxu0 0
    %665 = vmatpush1.bf16.msra.mxu0 %v500
    %666 = vmatprep.subr.bf16.mxu0 0
    %667 = vmatpush1.bf16.msra.mxu0 %v499
    %668 = vmatprep.subr.bf16.mxu0 0
    %669 = vmatpush2.bf16.msra.mxu0 %v514
    %670 = vmatprep.subr.bf16.mxu0 0
    %671 = vmatpush2.bf16.msra.mxu0 %v513
    %672 = vmatprep.subr.bf16.mxu0 0
    %673 = vmatpush2.bf16.msra.mxu0 %v512
    %674 = vmatprep.subr.bf16.mxu0 0
    %675 = vmatpush2.bf16.msra.mxu0 %v511
    %676 = vmatprep.subr.bf16.mxu0 0
    %677 = vmatpush2.bf16.msra.mxu0 %v510
    %678 = vmatprep.subr.bf16.mxu0 0
    %679 = vmatpush2.bf16.msra.mxu0 %v509
    %680 = vmatprep.subr.bf16.mxu0 0
    %681 = vmatpush2.bf16.msra.mxu0 %v508
    %682 = vmatprep.subr.bf16.mxu0 0
    %683 = vmatpush2.bf16.msra.mxu0 %v507
    %684 = vmatprep.mubr.bf16.mxu0 %v87
    %685 = vmatmul.mubr.bf16.gmra.mxu0 %v86
    %v686 = vpop.f32.mrf.mxu0
    %v687 = vadd.f32 %v646, %v686
    %v688 = vpop.f32.mrf.mxu0
    %v689 = vpop.f32.mrf.mxu0
    %v690 = vadd.f32 %v649, %v689
    %v691 = vpop.f32.mrf.mxu0
    %692 = vdwg.mxu0
    %693 = vmatprep.subr.bf16.mxu0 0
    %694 = vmatpush1.bf16.msra.mxu0 %v522
    %695 = vmatprep.subr.bf16.mxu0 0
    %696 = vmatpush1.bf16.msra.mxu0 %v521
    %697 = vmatprep.subr.bf16.mxu0 0
    %698 = vmatpush1.bf16.msra.mxu0 %v520
    %699 = vmatprep.subr.bf16.mxu0 0
    %700 = vmatpush1.bf16.msra.mxu0 %v519
    %701 = vmatprep.subr.bf16.mxu0 0
    %702 = vmatpush1.bf16.msra.mxu0 %v518
    %703 = vmatprep.subr.bf16.mxu0 0
    %704 = vmatpush1.bf16.msra.mxu0 %v517
    %705 = vmatprep.subr.bf16.mxu0 0
    %706 = vmatpush1.bf16.msra.mxu0 %v516
    %707 = vmatprep.subr.bf16.mxu0 0
    %708 = vmatpush1.bf16.msra.mxu0 %v515
    %709 = vmatprep.subr.bf16.mxu0 0
    %710 = vmatpush2.bf16.msra.mxu0 %v530
    %711 = vmatprep.subr.bf16.mxu0 0
    %712 = vmatpush2.bf16.msra.mxu0 %v529
    %713 = vmatprep.subr.bf16.mxu0 0
    %714 = vmatpush2.bf16.msra.mxu0 %v528
    %715 = vmatprep.subr.bf16.mxu0 0
    %716 = vmatpush2.bf16.msra.mxu0 %v527
    %717 = vmatprep.subr.bf16.mxu0 0
    %718 = vmatpush2.bf16.msra.mxu0 %v526
    %719 = vmatprep.subr.bf16.mxu0 0
    %720 = vmatpush2.bf16.msra.mxu0 %v525
    %721 = vmatprep.subr.bf16.mxu0 0
    %722 = vmatpush2.bf16.msra.mxu0 %v524
    %723 = vmatprep.subr.bf16.mxu0 0
    %724 = vmatpush2.bf16.msra.mxu0 %v523
    %725 = vmatprep.mubr.bf16.mxu0 %v89
    %726 = vmatmul.mubr.bf16.gmra.mxu0 %v88
    %v727 = vpop.f32.mrf.mxu0
    %v728 = vadd.f32 %v687, %v727
    %v729 = vpop.f32.mrf.mxu0
    %v730 = vpop.f32.mrf.mxu0
    %v731 = vadd.f32 %v690, %v730
    %v732 = vpop.f32.mrf.mxu0
    %733 = vdwg.mxu0
    %734 = vmatprep.subr.bf16.mxu0 0
    %735 = vmatpush1.bf16.msra.mxu0 %v538
    %736 = vmatprep.subr.bf16.mxu0 0
    %737 = vmatpush1.bf16.msra.mxu0 %v537
    %738 = vmatprep.subr.bf16.mxu0 0
    %739 = vmatpush1.bf16.msra.mxu0 %v536
    %740 = vmatprep.subr.bf16.mxu0 0
    %741 = vmatpush1.bf16.msra.mxu0 %v535
    %742 = vmatprep.subr.bf16.mxu0 0
    %743 = vmatpush1.bf16.msra.mxu0 %v534
    %744 = vmatprep.subr.bf16.mxu0 0
    %745 = vmatpush1.bf16.msra.mxu0 %v533
    %746 = vmatprep.subr.bf16.mxu0 0
    %747 = vmatpush1.bf16.msra.mxu0 %v532
    %748 = vmatprep.subr.bf16.mxu0 0
    %749 = vmatpush1.bf16.msra.mxu0 %v531
    %750 = vmatprep.subr.bf16.mxu0 0
    %751 = vmatpush2.bf16.msra.mxu0 %v546
    %752 = vmatprep.subr.bf16.mxu0 0
    %753 = vmatpush2.bf16.msra.mxu0 %v545
    %754 = vmatprep.subr.bf16.mxu0 0
    %755 = vmatpush2.bf16.msra.mxu0 %v544
    %756 = vmatprep.subr.bf16.mxu0 0
    %757 = vmatpush2.bf16.msra.mxu0 %v543
    %758 = vmatprep.subr.bf16.mxu0 0
    %759 = vmatpush2.bf16.msra.mxu0 %v542
    %760 = vmatprep.subr.bf16.mxu0 0
    %761 = vmatpush2.bf16.msra.mxu0 %v541
    %762 = vmatprep.subr.bf16.mxu0 0
    %763 = vmatpush2.bf16.msra.mxu0 %v540
    %764 = vmatprep.subr.bf16.mxu0 0
    %765 = vmatpush2.bf16.msra.mxu0 %v539
    %766 = vmatprep.mubr.bf16.mxu0 %v91
    %767 = vmatmul.mubr.bf16.gmra.mxu0 %v90
    %v768 = vpop.f32.mrf.mxu0
    %v769 = vadd.f32 %v728, %v768
    %v770 = vpop.f32.mrf.mxu0
    %v771 = vpop.f32.mrf.mxu0
    %v772 = vadd.f32 %v731, %v771
    %v773 = vpop.f32.mrf.mxu0
    %774 = vdwg.mxu0
    %v775 = vmax.f32 %v769, 0.0
    %v776 = vmax.f32 %v772, 0.0
    %v777 = vpack.c.bf16 %v776, %v775
    %v778 = vld [vmem:[%s3] sm:$0xf]
    %v779 = vld [vmem:[%s3 + $0x4] sm:$0xf]
    %v780 = vld [vmem:[%s3 + $0x8] sm:$0xf]
    %v781 = vld [vmem:[%s3 + $0xc] sm:$0xf]
    %v782 = vld [vmem:[%s3 + $0x10] sm:$0xf]
    %v783 = vld [vmem:[%s3 + $0x14] sm:$0xf]
    %v784 = vld [vmem:[%s3 + $0x18] sm:$0xf]
    %v785 = vld [vmem:[%s3 + $0x1c] sm:$0xf]
    %v786 = vld [vmem:[%s3 + $0x20] sm:$0xf]
    %v787 = vld [vmem:[%s3 + $0x24] sm:$0xf]
    %v788 = vld [vmem:[%s3 + $0x28] sm:$0xf]
    %v789 = vld [vmem:[%s3 + $0x2c] sm:$0xf]
    %v790 = vld [vmem:[%s3 + $0x30] sm:$0xf]
    %v791 = vld [vmem:[%s3 + $0x34] sm:$0xf]
    %v792 = vld [vmem:[%s3 + $0x38] sm:$0xf]
    %v793 = vld [vmem:[%s3 + $0x3c] sm:$0xf]
    %v794 = vld [vmem:[#allocation4] sm:$0x1]
    %v796 = vlaneseq
    %v797 = vshrl.u32 %v796, 7
    %v798 = vsub.s32 0, %v797
    %v799 = vrot.slane %v794, %v798
    %v817 = vunpack.c.l.b16 %v778
    %v818 = vunpack.c.l.b16 %v779
    %v819 = vunpack.c.l.b16 %v780
    %v820 = vunpack.c.l.b16 %v781
    %v821 = vunpack.c.l.b16 %v782
    %v822 = vunpack.c.l.b16 %v783
    %v823 = vunpack.c.l.b16 %v784
    %v824 = vunpack.c.l.b16 %v785
    %v825 = vunpack.c.l.b16 %v786
    %v826 = vunpack.c.l.b16 %v787
    %v827 = vunpack.c.l.b16 %v788
    %v828 = vunpack.c.l.b16 %v789
    %v829 = vunpack.c.l.b16 %v790
    %v830 = vunpack.c.l.b16 %v791
    %v831 = vunpack.c.l.b16 %v792
    %v832 = vunpack.c.l.b16 %v793
    %v833 = vpack.c.b16 %v818, %v817
    %v834 = vpack.c.b16 %v820, %v819
    %v835 = vpack.c.b16 %v822, %v821
    %v836 = vpack.c.b16 %v824, %v823
    %v837 = vpack.c.b16 %v826, %v825
    %v838 = vpack.c.b16 %v828, %v827
    %v839 = vpack.c.b16 %v830, %v829
    %v840 = vpack.c.b16 %v832, %v831
    %849 = vmatprep.subr.bf16.mxu0 0
    %850 = vmatpush1.bf16.msra.mxu0 %v840
    %851 = vmatprep.subr.bf16.mxu0 0
    %852 = vmatpush1.bf16.msra.mxu0 %v839
    %853 = vmatprep.subr.bf16.mxu0 0
    %854 = vmatpush1.bf16.msra.mxu0 %v838
    %855 = vmatprep.subr.bf16.mxu0 0
    %856 = vmatpush1.bf16.msra.mxu0 %v837
    %857 = vmatprep.subr.bf16.mxu0 0
    %858 = vmatpush1.bf16.msra.mxu0 %v836
    %859 = vmatprep.subr.bf16.mxu0 0
    %860 = vmatpush1.bf16.msra.mxu0 %v835
    %861 = vmatprep.subr.bf16.mxu0 0
    %862 = vmatpush1.bf16.msra.mxu0 %v834
    %863 = vmatprep.subr.bf16.mxu0 0
    %864 = vmatpush1.bf16.msra.mxu0 %v833
    %865 = vmatprep.subr.bf16.mxu0 0
    %866 = vmatpush2.bf16.msra.mxu0 0
    %867 = vmatprep.subr.bf16.mxu0 0
    %868 = vmatpush2.bf16.msra.mxu0 0
    %869 = vmatprep.subr.bf16.mxu0 0
    %870 = vmatpush2.bf16.msra.mxu0 0
    %871 = vmatprep.subr.bf16.mxu0 0
    %872 = vmatpush2.bf16.msra.mxu0 0
    %873 = vmatprep.subr.bf16.mxu0 0
    %874 = vmatpush2.bf16.msra.mxu0 0
    %875 = vmatprep.subr.bf16.mxu0 0
    %876 = vmatpush2.bf16.msra.mxu0 0
    %877 = vmatprep.subr.bf16.mxu0 0
    %878 = vmatpush2.bf16.msra.mxu0 0
    %879 = vmatprep.subr.bf16.mxu0 0
    %880 = vmatpush2.bf16.msra.mxu0 0
    %881 = vmatprep.mubr.bf16.mxu0 0
    %882 = vmatmul.mubr.bf16.gmra.mxu0 %v777
    %v883 = vpop.f32.mrf.mxu0
    %v884 = vadd.f32 %v799, %v883
    %v885 = vpop.f32.mrf.mxu0
    %v886 = vpop.f32.mrf.mxu0
    %v887 = vadd.f32 %v799, %v886
    %v888 = vpop.f32.mrf.mxu0
    %889 = vdwg.mxu0
    %v890 = vpack.c.bf16 %v887, %v884
    %v891 = vld [vmem:[%s5] sm:$0xf]
    %v892 = vld [vmem:[%s5 + $0x4] sm:$0xf]
    %v893 = vld [vmem:[%s5 + $0x8] sm:$0xf]
    %v894 = vld [vmem:[%s5 + $0xc] sm:$0xf]
    %v895 = vld [vmem:[%s5 + $0x10] sm:$0xf]
    %v896 = vld [vmem:[%s5 + $0x14] sm:$0xf]
    %v897 = vld [vmem:[%s5 + $0x18] sm:$0xf]
    %v898 = vld [vmem:[%s5 + $0x1c] sm:$0xf]
    %v899 = vld [vmem:[%s5 + $0x20] sm:$0xf]
    %v900 = vld [vmem:[%s5 + $0x24] sm:$0xf]
    %v901 = vld [vmem:[%s5 + $0x28] sm:$0xf]
    %v902 = vld [vmem:[%s5 + $0x2c] sm:$0xf]
    %v903 = vld [vmem:[%s5 + $0x30] sm:$0xf]
    %v904 = vld [vmem:[%s5 + $0x34] sm:$0xf]
    %v905 = vld [vmem:[%s5 + $0x38] sm:$0xf]
    %v906 = vld [vmem:[%s5 + $0x3c] sm:$0xf]
    %v907 = vld [vmem:[#allocation6] sm:$0x1]
    %v909 = vlaneseq
    %v910 = vshrl.u32 %v909, 7
    %v911 = vsub.s32 0, %v910
    %v912 = vrot.slane %v907, %v911
    %v930 = vunpack.c.l.b16 %v891
    %v931 = vunpack.c.l.b16 %v892
    %v932 = vunpack.c.l.b16 %v893
    %v933 = vunpack.c.l.b16 %v894
    %v934 = vunpack.c.l.b16 %v895
    %v935 = vunpack.c.l.b16 %v896
    %v936 = vunpack.c.l.b16 %v897
    %v937 = vunpack.c.l.b16 %v898
    %v938 = vunpack.c.l.b16 %v899
    %v939 = vunpack.c.l.b16 %v900
    %v940 = vunpack.c.l.b16 %v901
    %v941 = vunpack.c.l.b16 %v902
    %v942 = vunpack.c.l.b16 %v903
    %v943 = vunpack.c.l.b16 %v904
    %v944 = vunpack.c.l.b16 %v905
    %v945 = vunpack.c.l.b16 %v906
    %v946 = vpack.c.b16 %v931, %v930
    %v947 = vpack.c.b16 %v933, %v932
    %v948 = vpack.c.b16 %v935, %v934
    %v949 = vpack.c.b16 %v937, %v936
    %v950 = vpack.c.b16 %v939, %v938
    %v951 = vpack.c.b16 %v941, %v940
    %v952 = vpack.c.b16 %v943, %v942
    %v953 = vpack.c.b16 %v945, %v944
    %962 = vmatprep.subr.bf16.mxu0 0
    %963 = vmatpush1.bf16.msra.mxu0 %v953
    %964 = vmatprep.subr.bf16.mxu0 0
    %965 = vmatpush1.bf16.msra.mxu0 %v952
    %966 = vmatprep.subr.bf16.mxu0 0
    %967 = vmatpush1.bf16.msra.mxu0 %v951
    %968 = vmatprep.subr.bf16.mxu0 0
    %969 = vmatpush1.bf16.msra.mxu0 %v950
    %970 = vmatprep.subr.bf16.mxu0 0
    %971 = vmatpush1.bf16.msra.mxu0 %v949
    %972 = vmatprep.subr.bf16.mxu0 0
    %973 = vmatpush1.bf16.msra.mxu0 %v948
    %974 = vmatprep.subr.bf16.mxu0 0
    %975 = vmatpush1.bf16.msra.mxu0 %v947
    %976 = vmatprep.subr.bf16.mxu0 0
    %977 = vmatpush1.bf16.msra.mxu0 %v946
    %978 = vmatprep.subr.bf16.mxu0 0
    %979 = vmatpush2.bf16.msra.mxu0 0
    %980 = vmatprep.subr.bf16.mxu0 0
    %981 = vmatpush2.bf16.msra.mxu0 0
    %982 = vmatprep.subr.bf16.mxu0 0
    %983 = vmatpush2.bf16.msra.mxu0 0
    %984 = vmatprep.subr.bf16.mxu0 0
    %985 = vmatpush2.bf16.msra.mxu0 0
    %986 = vmatprep.subr.bf16.mxu0 0
    %987 = vmatpush2.bf16.msra.mxu0 0
    %988 = vmatprep.subr.bf16.mxu0 0
    %989 = vmatpush2.bf16.msra.mxu0 0
    %990 = vmatprep.subr.bf16.mxu0 0
    %991 = vmatpush2.bf16.msra.mxu0 0
    %992 = vmatprep.subr.bf16.mxu0 0
    %993 = vmatpush2.bf16.msra.mxu0 0
    %994 = vmatprep.mubr.bf16.mxu0 0
    %995 = vmatmul.mubr.bf16.gmra.mxu0 %v890
    %v996 = vpop.f32.mrf.mxu0
    %v997 = vadd.f32 %v912, %v996
    %v998 = vpop.f32.mrf.mxu0
    %v999 = vpop.f32.mrf.mxu0
    %v1000 = vadd.f32 %v912, %v999
    %v1001 = vpop.f32.mrf.mxu0
    %1002 = vdwg.mxu0
    %v1003 = vmax.f32 %v997, 0.0
    %v1004 = vmax.f32 %v1000, 0.0
    %v1005 = vpack.c.bf16 %v1004, %v1003
    %v1006 = vld [vmem:[%s7] sm:$0xff]
    %v1007 = vld [vmem:[%s7 + $0x8] sm:$0xff]
    %v1008 = vld [vmem:[%s7 + $0x10] sm:$0xff]
    %v1009 = vld [vmem:[%s7 + $0x18] sm:$0xff]
    %v1010 = vld [vmem:[%s7 + $0x20] sm:$0xff]
    %v1011 = vld [vmem:[%s7 + $0x28] sm:$0xff]
    %v1012 = vld [vmem:[%s7 + $0x30] sm:$0xff]
    %v1013 = vld [vmem:[%s7 + $0x38] sm:$0xff]
    %v1014 = vld [vmem:[%s7 + $0x40] sm:$0xff]
    %v1015 = vld [vmem:[%s7 + $0x48] sm:$0xff]
    %v1016 = vld [vmem:[%s7 + $0x50] sm:$0xff]
    %v1017 = vld [vmem:[%s7 + $0x58] sm:$0xff]
    %v1018 = vld [vmem:[%s7 + $0x60] sm:$0xff]
    %v1019 = vld [vmem:[%s7 + $0x68] sm:$0xff]
    %v1020 = vld [vmem:[%s7 + $0x70] sm:$0xff]
    %v1021 = vld [vmem:[%s7 + $0x78] sm:$0xff]
    %v1022 = vld [vmem:[%s7 + $0x80] sm:$0xff]
    %v1023 = vld [vmem:[%s7 + $0x88] sm:$0xff]
    %v1024 = vld [vmem:[%s7 + $0x90] sm:$0xff]
    %v1025 = vld [vmem:[%s7 + $0x98] sm:$0xff]
    %v1026 = vld [vmem:[%s7 + $0xa0] sm:$0xff]
    %v1027 = vld [vmem:[%s7 + $0xa8] sm:$0xff]
    %v1028 = vld [vmem:[%s7 + $0xb0] sm:$0xff]
    %v1029 = vld [vmem:[%s7 + $0xb8] sm:$0xff]
    %v1030 = vld [vmem:[%s7 + $0xc0] sm:$0xff]
    %v1031 = vld [vmem:[%s7 + $0xc8] sm:$0xff]
    %v1032 = vld [vmem:[%s7 + $0xd0] sm:$0xff]
    %v1033 = vld [vmem:[%s7 + $0xd8] sm:$0xff]
    %v1034 = vld [vmem:[%s7 + $0xe0] sm:$0xff]
    %v1035 = vld [vmem:[%s7 + $0xe8] sm:$0xff]
    %v1036 = vld [vmem:[%s7 + $0xf0] sm:$0xff]
    %v1037 = vld [vmem:[%s7 + $0xf8] sm:$0xff]
    %v1038 = vld [vmem:[%s7 + $0x100] sm:$0xff]
    %v1039 = vld [vmem:[%s7 + $0x108] sm:$0xff]
    %v1040 = vld [vmem:[%s7 + $0x110] sm:$0xff]
    %v1041 = vld [vmem:[%s7 + $0x118] sm:$0xff]
    %v1042 = vld [vmem:[%s7 + $0x120] sm:$0xff]
    %v1043 = vld [vmem:[%s7 + $0x128] sm:$0xff]
    %v1044 = vld [vmem:[%s7 + $0x130] sm:$0xff]
    %v1045 = vld [vmem:[%s7 + $0x138] sm:$0xff]
    %v1046 = vld [vmem:[%s7 + $0x140] sm:$0xff]
    %v1047 = vld [vmem:[%s7 + $0x148] sm:$0xff]
    %v1048 = vld [vmem:[%s7 + $0x150] sm:$0xff]
    %v1049 = vld [vmem:[%s7 + $0x158] sm:$0xff]
    %v1050 = vld [vmem:[%s7 + $0x160] sm:$0xff]
    %v1051 = vld [vmem:[%s7 + $0x168] sm:$0xff]
    %v1052 = vld [vmem:[%s7 + $0x170] sm:$0xff]
    %v1053 = vld [vmem:[%s7 + $0x178] sm:$0xff]
    %v1054 = vld [vmem:[%s7 + $0x180] sm:$0xff]
    %v1055 = vld [vmem:[%s7 + $0x188] sm:$0xff]
    %v1056 = vld [vmem:[%s7 + $0x190] sm:$0xff]
    %v1057 = vld [vmem:[%s7 + $0x198] sm:$0xff]
    %v1058 = vld [vmem:[%s7 + $0x1a0] sm:$0xff]
    %v1059 = vld [vmem:[%s7 + $0x1a8] sm:$0xff]
    %v1060 = vld [vmem:[%s7 + $0x1b0] sm:$0xff]
    %v1061 = vld [vmem:[%s7 + $0x1b8] sm:$0xff]
    %v1062 = vld [vmem:[%s7 + $0x1c0] sm:$0xff]
    %v1063 = vld [vmem:[%s7 + $0x1c8] sm:$0xff]
    %v1064 = vld [vmem:[%s7 + $0x1d0] sm:$0xff]
    %v1065 = vld [vmem:[%s7 + $0x1d8] sm:$0xff]
    %v1066 = vld [vmem:[%s7 + $0x1e0] sm:$0xff]
    %v1067 = vld [vmem:[%s7 + $0x1e8] sm:$0xff]
    %v1068 = vld [vmem:[%s7 + $0x1f0] sm:$0xff]
    %v1069 = vld [vmem:[%s7 + $0x1f8] sm:$0xff]
    %v1070 = vld [vmem:[%s8] sm:$0xff]
    %v1072 = vlaneseq
    %v1073 = vshrl.u32 %v1072, 7
    %v1074 = vsub.s32 0, %v1073
    %v1075 = vrot.slane %v1070, %v1074
    %v1076 = vlaneseq
    %v1077 = vshrl.u32 %v1076, 7
    %v1078 = vsub.s32 1, %v1077
    %v1079 = vrot.slane %v1070, %v1078
    %v1080 = vlaneseq
    %v1081 = vshrl.u32 %v1080, 7
    %v1082 = vsub.s32 2, %v1081
    %v1083 = vrot.slane %v1070, %v1082
    %v1084 = vlaneseq
    %v1085 = vshrl.u32 %v1084, 7
    %v1086 = vsub.s32 3, %v1085
    %v1087 = vrot.slane %v1070, %v1086
    %v1088 = vlaneseq
    %v1089 = vshrl.u32 %v1088, 7
    %v1090 = vsub.s32 4, %v1089
    %v1091 = vrot.slane %v1070, %v1090
    %v1092 = vlaneseq
    %v1093 = vshrl.u32 %v1092, 7
    %v1094 = vsub.s32 5, %v1093
    %v1095 = vrot.slane %v1070, %v1094
    %v1096 = vlaneseq
    %v1097 = vshrl.u32 %v1096, 7
    %v1098 = vsub.s32 6, %v1097
    %v1099 = vrot.slane %v1070, %v1098
    %v1100 = vlaneseq
    %v1101 = vshrl.u32 %v1100, 7
    %v1102 = vsub.s32 7, %v1101
    %v1103 = vrot.slane %v1070, %v1102
    %v1176 = vunpack.c.l.b16 %v1006
    %v1177 = vunpack.c.h.b16 %v1006
    %v1178 = vunpack.c.l.b16 %v1007
    %v1179 = vunpack.c.h.b16 %v1007
    %v1180 = vunpack.c.l.b16 %v1008
    %v1181 = vunpack.c.h.b16 %v1008
    %v1182 = vunpack.c.l.b16 %v1009
    %v1183 = vunpack.c.h.b16 %v1009
    %v1184 = vunpack.c.l.b16 %v1010
    %v1185 = vunpack.c.h.b16 %v1010
    %v1186 = vunpack.c.l.b16 %v1011
    %v1187 = vunpack.c.h.b16 %v1011
    %v1188 = vunpack.c.l.b16 %v1012
    %v1189 = vunpack.c.h.b16 %v1012
    %v1190 = vunpack.c.l.b16 %v1013
    %v1191 = vunpack.c.h.b16 %v1013
    %v1192 = vunpack.c.l.b16 %v1014
    %v1193 = vunpack.c.h.b16 %v1014
    %v1194 = vunpack.c.l.b16 %v1015
    %v1195 = vunpack.c.h.b16 %v1015
    %v1196 = vunpack.c.l.b16 %v1016
    %v1197 = vunpack.c.h.b16 %v1016
    %v1198 = vunpack.c.l.b16 %v1017
    %v1199 = vunpack.c.h.b16 %v1017
    %v1200 = vunpack.c.l.b16 %v1018
    %v1201 = vunpack.c.h.b16 %v1018
    %v1202 = vunpack.c.l.b16 %v1019
    %v1203 = vunpack.c.h.b16 %v1019
    %v1204 = vunpack.c.l.b16 %v1020
    %v1205 = vunpack.c.h.b16 %v1020
    %v1206 = vunpack.c.l.b16 %v1021
    %v1207 = vunpack.c.h.b16 %v1021
    %v1208 = vunpack.c.l.b16 %v1022
    %v1209 = vunpack.c.h.b16 %v1022
    %v1210 = vunpack.c.l.b16 %v1023
    %v1211 = vunpack.c.h.b16 %v1023
    %v1212 = vunpack.c.l.b16 %v1024
    %v1213 = vunpack.c.h.b16 %v1024
    %v1214 = vunpack.c.l.b16 %v1025
    %v1215 = vunpack.c.h.b16 %v1025
    %v1216 = vunpack.c.l.b16 %v1026
    %v1217 = vunpack.c.h.b16 %v1026
    %v1218 = vunpack.c.l.b16 %v1027
    %v1219 = vunpack.c.h.b16 %v1027
    %v1220 = vunpack.c.l.b16 %v1028
    %v1221 = vunpack.c.h.b16 %v1028
    %v1222 = vunpack.c.l.b16 %v1029
    %v1223 = vunpack.c.h.b16 %v1029
    %v1224 = vunpack.c.l.b16 %v1030
    %v1225 = vunpack.c.h.b16 %v1030
    %v1226 = vunpack.c.l.b16 %v1031
    %v1227 = vunpack.c.h.b16 %v1031
    %v1228 = vunpack.c.l.b16 %v1032
    %v1229 = vunpack.c.h.b16 %v1032
    %v1230 = vunpack.c.l.b16 %v1033
    %v1231 = vunpack.c.h.b16 %v1033
    %v1232 = vunpack.c.l.b16 %v1034
    %v1233 = vunpack.c.h.b16 %v1034
    %v1234 = vunpack.c.l.b16 %v1035
    %v1235 = vunpack.c.h.b16 %v1035
    %v1236 = vunpack.c.l.b16 %v1036
    %v1237 = vunpack.c.h.b16 %v1036
    %v1238 = vunpack.c.l.b16 %v1037
    %v1239 = vunpack.c.h.b16 %v1037
    %v1240 = vunpack.c.l.b16 %v1038
    %v1241 = vunpack.c.h.b16 %v1038
    %v1242 = vunpack.c.l.b16 %v1039
    %v1243 = vunpack.c.h.b16 %v1039
    %v1244 = vunpack.c.l.b16 %v1040
    %v1245 = vunpack.c.h.b16 %v1040
    %v1246 = vunpack.c.l.b16 %v1041
    %v1247 = vunpack.c.h.b16 %v1041
    %v1248 = vunpack.c.l.b16 %v1042
    %v1249 = vunpack.c.h.b16 %v1042
    %v1250 = vunpack.c.l.b16 %v1043
    %v1251 = vunpack.c.h.b16 %v1043
    %v1252 = vunpack.c.l.b16 %v1044
    %v1253 = vunpack.c.h.b16 %v1044
    %v1254 = vunpack.c.l.b16 %v1045
    %v1255 = vunpack.c.h.b16 %v1045
    %v1256 = vunpack.c.l.b16 %v1046
    %v1257 = vunpack.c.h.b16 %v1046
    %v1258 = vunpack.c.l.b16 %v1047
    %v1259 = vunpack.c.h.b16 %v1047
    %v1260 = vunpack.c.l.b16 %v1048
    %v1261 = vunpack.c.h.b16 %v1048
    %v1262 = vunpack.c.l.b16 %v1049
    %v1263 = vunpack.c.h.b16 %v1049
    %v1264 = vunpack.c.l.b16 %v1050
    %v1265 = vunpack.c.h.b16 %v1050
    %v1266 = vunpack.c.l.b16 %v1051
    %v1267 = vunpack.c.h.b16 %v1051
    %v1268 = vunpack.c.l.b16 %v1052
    %v1269 = vunpack.c.h.b16 %v1052
    %v1270 = vunpack.c.l.b16 %v1053
    %v1271 = vunpack.c.h.b16 %v1053
    %v1272 = vunpack.c.l.b16 %v1054
    %v1273 = vunpack.c.h.b16 %v1054
    %v1274 = vunpack.c.l.b16 %v1055
    %v1275 = vunpack.c.h.b16 %v1055
    %v1276 = vunpack.c.l.b16 %v1056
    %v1277 = vunpack.c.h.b16 %v1056
    %v1278 = vunpack.c.l.b16 %v1057
    %v1279 = vunpack.c.h.b16 %v1057
    %v1280 = vunpack.c.l.b16 %v1058
    %v1281 = vunpack.c.h.b16 %v1058
    %v1282 = vunpack.c.l.b16 %v1059
    %v1283 = vunpack.c.h.b16 %v1059
    %v1284 = vunpack.c.l.b16 %v1060
    %v1285 = vunpack.c.h.b16 %v1060
    %v1286 = vunpack.c.l.b16 %v1061
    %v1287 = vunpack.c.h.b16 %v1061
    %v1288 = vunpack.c.l.b16 %v1062
    %v1289 = vunpack.c.h.b16 %v1062
    %v1290 = vunpack.c.l.b16 %v1063
    %v1291 = vunpack.c.h.b16 %v1063
    %v1292 = vunpack.c.l.b16 %v1064
    %v1293 = vunpack.c.h.b16 %v1064
    %v1294 = vunpack.c.l.b16 %v1065
    %v1295 = vunpack.c.h.b16 %v1065
    %v1296 = vunpack.c.l.b16 %v1066
    %v1297 = vunpack.c.h.b16 %v1066
    %v1298 = vunpack.c.l.b16 %v1067
    %v1299 = vunpack.c.h.b16 %v1067
    %v1300 = vunpack.c.l.b16 %v1068
    %v1301 = vunpack.c.h.b16 %v1068
    %v1302 = vunpack.c.l.b16 %v1069
    %v1303 = vunpack.c.h.b16 %v1069
    %v1304 = vpack.c.b16 %v1184, %v1176
    %v1305 = vpack.c.b16 %v1185, %v1177
    %v1306 = vpack.c.b16 %v1186, %v1178
    %v1307 = vpack.c.b16 %v1187, %v1179
    %v1308 = vpack.c.b16 %v1188, %v1180
    %v1309 = vpack.c.b16 %v1189, %v1181
    %v1310 = vpack.c.b16 %v1190, %v1182
    %v1311 = vpack.c.b16 %v1191, %v1183
    %v1312 = vpack.c.b16 %v1200, %v1192
    %v1313 = vpack.c.b16 %v1201, %v1193
    %v1314 = vpack.c.b16 %v1202, %v1194
    %v1315 = vpack.c.b16 %v1203, %v1195
    %v1316 = vpack.c.b16 %v1204, %v1196
    %v1317 = vpack.c.b16 %v1205, %v1197
    %v1318 = vpack.c.b16 %v1206, %v1198
    %v1319 = vpack.c.b16 %v1207, %v1199
    %v1320 = vpack.c.b16 %v1216, %v1208
    %v1321 = vpack.c.b16 %v1217, %v1209
    %v1322 = vpack.c.b16 %v1218, %v1210
    %v1323 = vpack.c.b16 %v1219, %v1211
    %v1324 = vpack.c.b16 %v1220, %v1212
    %v1325 = vpack.c.b16 %v1221, %v1213
    %v1326 = vpack.c.b16 %v1222, %v1214
    %v1327 = vpack.c.b16 %v1223, %v1215
    %v1328 = vpack.c.b16 %v1232, %v1224
    %v1329 = vpack.c.b16 %v1233, %v1225
    %v1330 = vpack.c.b16 %v1234, %v1226
    %v1331 = vpack.c.b16 %v1235, %v1227
    %v1332 = vpack.c.b16 %v1236, %v1228
    %v1333 = vpack.c.b16 %v1237, %v1229
    %v1334 = vpack.c.b16 %v1238, %v1230
    %v1335 = vpack.c.b16 %v1239, %v1231
    %v1336 = vpack.c.b16 %v1248, %v1240
    %v1337 = vpack.c.b16 %v1249, %v1241
    %v1338 = vpack.c.b16 %v1250, %v1242
    %v1339 = vpack.c.b16 %v1251, %v1243
    %v1340 = vpack.c.b16 %v1252, %v1244
    %v1341 = vpack.c.b16 %v1253, %v1245
    %v1342 = vpack.c.b16 %v1254, %v1246
    %v1343 = vpack.c.b16 %v1255, %v1247
    %v1344 = vpack.c.b16 %v1264, %v1256
    %v1345 = vpack.c.b16 %v1265, %v1257
    %v1346 = vpack.c.b16 %v1266, %v1258
    %v1347 = vpack.c.b16 %v1267, %v1259
    %v1348 = vpack.c.b16 %v1268, %v1260
    %v1349 = vpack.c.b16 %v1269, %v1261
    %v1350 = vpack.c.b16 %v1270, %v1262
    %v1351 = vpack.c.b16 %v1271, %v1263
    %v1352 = vpack.c.b16 %v1280, %v1272
    %v1353 = vpack.c.b16 %v1281, %v1273
    %v1354 = vpack.c.b16 %v1282, %v1274
    %v1355 = vpack.c.b16 %v1283, %v1275
    %v1356 = vpack.c.b16 %v1284, %v1276
    %v1357 = vpack.c.b16 %v1285, %v1277
    %v1358 = vpack.c.b16 %v1286, %v1278
    %v1359 = vpack.c.b16 %v1287, %v1279
    %v1360 = vpack.c.b16 %v1296, %v1288
    %v1361 = vpack.c.b16 %v1297, %v1289
    %v1362 = vpack.c.b16 %v1298, %v1290
    %v1363 = vpack.c.b16 %v1299, %v1291
    %v1364 = vpack.c.b16 %v1300, %v1292
    %v1365 = vpack.c.b16 %v1301, %v1293
    %v1366 = vpack.c.b16 %v1302, %v1294
    %v1367 = vpack.c.b16 %v1303, %v1295
    %1432 = vmatprep.subr.bf16.mxu0 %v1361
    %1433 = vmatpush1.bf16.msra.mxu0 %v1360
    %1434 = vmatprep.subr.bf16.mxu0 %v1353
    %1435 = vmatpush1.bf16.msra.mxu0 %v1352
    %1436 = vmatprep.subr.bf16.mxu0 %v1345
    %1437 = vmatpush1.bf16.msra.mxu0 %v1344
    %1438 = vmatprep.subr.bf16.mxu0 %v1337
    %1439 = vmatpush1.bf16.msra.mxu0 %v1336
    %1440 = vmatprep.subr.bf16.mxu0 %v1329
    %1441 = vmatpush1.bf16.msra.mxu0 %v1328
    %1442 = vmatprep.subr.bf16.mxu0 %v1321
    %1443 = vmatpush1.bf16.msra.mxu0 %v1320
    %1444 = vmatprep.subr.bf16.mxu0 %v1313
    %1445 = vmatpush1.bf16.msra.mxu0 %v1312
    %1446 = vmatprep.subr.bf16.mxu0 %v1305
    %1447 = vmatpush1.bf16.msra.mxu0 %v1304
    %1448 = vmatprep.subr.bf16.mxu0 0
    %1449 = vmatpush2.bf16.msra.mxu0 0
    %1450 = vmatprep.subr.bf16.mxu0 0
    %1451 = vmatpush2.bf16.msra.mxu0 0
    %1452 = vmatprep.subr.bf16.mxu0 0
    %1453 = vmatpush2.bf16.msra.mxu0 0
    %1454 = vmatprep.subr.bf16.mxu0 0
    %1455 = vmatpush2.bf16.msra.mxu0 0
    %1456 = vmatprep.subr.bf16.mxu0 0
    %1457 = vmatpush2.bf16.msra.mxu0 0
    %1458 = vmatprep.subr.bf16.mxu0 0
    %1459 = vmatpush2.bf16.msra.mxu0 0
    %1460 = vmatprep.subr.bf16.mxu0 0
    %1461 = vmatpush2.bf16.msra.mxu0 0
    %1462 = vmatprep.subr.bf16.mxu0 0
    %1463 = vmatpush2.bf16.msra.mxu0 0
    %1464 = vmatprep.mubr.bf16.mxu0 0
    %1465 = vmatmul.mubr.bf16.gmra.mxu0 %v1005
    %v1466 = vpop.f32.mrf.mxu0
    %v1467 = vadd.f32 %v1075, %v1466
    %v1468 = vpop.f32.mrf.mxu0
    %v1469 = vadd.f32 %v1079, %v1468
    %v1470 = vpop.f32.mrf.mxu0
    %v1471 = vadd.f32 %v1075, %v1470
    %v1472 = vpop.f32.mrf.mxu0
    %v1473 = vadd.f32 %v1079, %v1472
    %1474 = vdwg.mxu0
    %1475 = vmatprep.subr.bf16.mxu0 %v1363
    %1476 = vmatpush1.bf16.msra.mxu0 %v1362
    %1477 = vmatprep.subr.bf16.mxu0 %v1355
    %1478 = vmatpush1.bf16.msra.mxu0 %v1354
    %1479 = vmatprep.subr.bf16.mxu0 %v1347
    %1480 = vmatpush1.bf16.msra.mxu0 %v1346
    %1481 = vmatprep.subr.bf16.mxu0 %v1339
    %1482 = vmatpush1.bf16.msra.mxu0 %v1338
    %1483 = vmatprep.subr.bf16.mxu0 %v1331
    %1484 = vmatpush1.bf16.msra.mxu0 %v1330
    %1485 = vmatprep.subr.bf16.mxu0 %v1323
    %1486 = vmatpush1.bf16.msra.mxu0 %v1322
    %1487 = vmatprep.subr.bf16.mxu0 %v1315
    %1488 = vmatpush1.bf16.msra.mxu0 %v1314
    %1489 = vmatprep.subr.bf16.mxu0 %v1307
    %1490 = vmatpush1.bf16.msra.mxu0 %v1306
    %1491 = vmatprep.subr.bf16.mxu0 0
    %1492 = vmatpush2.bf16.msra.mxu0 0
    %1493 = vmatprep.subr.bf16.mxu0 0
    %1494 = vmatpush2.bf16.msra.mxu0 0
    %1495 = vmatprep.subr.bf16.mxu0 0
    %1496 = vmatpush2.bf16.msra.mxu0 0
    %1497 = vmatprep.subr.bf16.mxu0 0
    %1498 = vmatpush2.bf16.msra.mxu0 0
    %1499 = vmatprep.subr.bf16.mxu0 0
    %1500 = vmatpush2.bf16.msra.mxu0 0
    %1501 = vmatprep.subr.bf16.mxu0 0
    %1502 = vmatpush2.bf16.msra.mxu0 0
    %1503 = vmatprep.subr.bf16.mxu0 0
    %1504 = vmatpush2.bf16.msra.mxu0 0
    %1505 = vmatprep.subr.bf16.mxu0 0
    %1506 = vmatpush2.bf16.msra.mxu0 0
    %1507 = vmatprep.mubr.bf16.mxu0 0
    %1508 = vmatmul.mubr.bf16.gmra.mxu0 %v1005
    %v1509 = vpop.f32.mrf.mxu0
    %v1510 = vadd.f32 %v1083, %v1509
    %v1511 = vpop.f32.mrf.mxu0
    %v1512 = vadd.f32 %v1087, %v1511
    %v1513 = vpop.f32.mrf.mxu0
    %v1514 = vadd.f32 %v1083, %v1513
    %v1515 = vpop.f32.mrf.mxu0
    %v1516 = vadd.f32 %v1087, %v1515
    %1517 = vdwg.mxu0
    %1518 = vmatprep.subr.bf16.mxu0 %v1365
    %1519 = vmatpush1.bf16.msra.mxu0 %v1364
    %1520 = vmatprep.subr.bf16.mxu0 %v1357
    %1521 = vmatpush1.bf16.msra.mxu0 %v1356
    %1522 = vmatprep.subr.bf16.mxu0 %v1349
    %1523 = vmatpush1.bf16.msra.mxu0 %v1348
    %1524 = vmatprep.subr.bf16.mxu0 %v1341
    %1525 = vmatpush1.bf16.msra.mxu0 %v1340
    %1526 = vmatprep.subr.bf16.mxu0 %v1333
    %1527 = vmatpush1.bf16.msra.mxu0 %v1332
    %1528 = vmatprep.subr.bf16.mxu0 %v1325
    %1529 = vmatpush1.bf16.msra.mxu0 %v1324
    %1530 = vmatprep.subr.bf16.mxu0 %v1317
    %1531 = vmatpush1.bf16.msra.mxu0 %v1316
    %1532 = vmatprep.subr.bf16.mxu0 %v1309
    %1533 = vmatpush1.bf16.msra.mxu0 %v1308
    %1534 = vmatprep.subr.bf16.mxu0 0
    %1535 = vmatpush2.bf16.msra.mxu0 0
    %1536 = vmatprep.subr.bf16.mxu0 0
    %1537 = vmatpush2.bf16.msra.mxu0 0
    %1538 = vmatprep.subr.bf16.mxu0 0
    %1539 = vmatpush2.bf16.msra.mxu0 0
    %1540 = vmatprep.subr.bf16.mxu0 0
    %1541 = vmatpush2.bf16.msra.mxu0 0
    %1542 = vmatprep.subr.bf16.mxu0 0
    %1543 = vmatpush2.bf16.msra.mxu0 0
    %1544 = vmatprep.subr.bf16.mxu0 0
    %1545 = vmatpush2.bf16.msra.mxu0 0
    %1546 = vmatprep.subr.bf16.mxu0 0
    %1547 = vmatpush2.bf16.msra.mxu0 0
    %1548 = vmatprep.subr.bf16.mxu0 0
    %1549 = vmatpush2.bf16.msra.mxu0 0
    %1550 = vmatprep.mubr.bf16.mxu0 0
    %1551 = vmatmul.mubr.bf16.gmra.mxu0 %v1005
    %v1552 = vpop.f32.mrf.mxu0
    %v1553 = vadd.f32 %v1091, %v1552
    %v1554 = vpop.f32.mrf.mxu0
    %v1555 = vadd.f32 %v1095, %v1554
    %v1556 = vpop.f32.mrf.mxu0
    %v1557 = vadd.f32 %v1091, %v1556
    %v1558 = vpop.f32.mrf.mxu0
    %v1559 = vadd.f32 %v1095, %v1558
    %1560 = vdwg.mxu0
    %1561 = vmatprep.subr.bf16.mxu0 %v1367
    %1562 = vmatpush1.bf16.msra.mxu0 %v1366
    %1563 = vmatprep.subr.bf16.mxu0 %v1359
    %1564 = vmatpush1.bf16.msra.mxu0 %v1358
    %1565 = vmatprep.subr.bf16.mxu0 %v1351
    %1566 = vmatpush1.bf16.msra.mxu0 %v1350
    %1567 = vmatprep.subr.bf16.mxu0 %v1343
    %1568 = vmatpush1.bf16.msra.mxu0 %v1342
    %1569 = vmatprep.subr.bf16.mxu0 %v1335
    %1570 = vmatpush1.bf16.msra.mxu0 %v1334
    %1571 = vmatprep.subr.bf16.mxu0 %v1327
    %1572 = vmatpush1.bf16.msra.mxu0 %v1326
    %1573 = vmatprep.subr.bf16.mxu0 %v1319
    %1574 = vmatpush1.bf16.msra.mxu0 %v1318
    %1575 = vmatprep.subr.bf16.mxu0 %v1311
    %1576 = vmatpush1.bf16.msra.mxu0 %v1310
    %1577 = vmatprep.subr.bf16.mxu0 0
    %1578 = vmatpush2.bf16.msra.mxu0 0
    %1579 = vmatprep.subr.bf16.mxu0 0
    %1580 = vmatpush2.bf16.msra.mxu0 0
    %1581 = vmatprep.subr.bf16.mxu0 0
    %1582 = vmatpush2.bf16.msra.mxu0 0
    %1583 = vmatprep.subr.bf16.mxu0 0
    %1584 = vmatpush2.bf16.msra.mxu0 0
    %1585 = vmatprep.subr.bf16.mxu0 0
    %1586 = vmatpush2.bf16.msra.mxu0 0
    %1587 = vmatprep.subr.bf16.mxu0 0
    %1588 = vmatpush2.bf16.msra.mxu0 0
    %1589 = vmatprep.subr.bf16.mxu0 0
    %1590 = vmatpush2.bf16.msra.mxu0 0
    %1591 = vmatprep.subr.bf16.mxu0 0
    %1592 = vmatpush2.bf16.msra.mxu0 0
    %1593 = vmatprep.mubr.bf16.mxu0 0
    %1594 = vmatmul.mubr.bf16.gmra.mxu0 %v1005
    %v1595 = vpop.f32.mrf.mxu0
    %v1596 = vadd.f32 %v1099, %v1595
    %v1597 = vpop.f32.mrf.mxu0
    %v1598 = vadd.f32 %v1103, %v1597
    %v1599 = vpop.f32.mrf.mxu0
    %v1600 = vadd.f32 %v1099, %v1599
    %v1601 = vpop.f32.mrf.mxu0
    %v1602 = vadd.f32 %v1103, %v1601
    %1603 = vdwg.mxu0
    %v1604 = vmul.f32 %v1467, 0.5
    %v1605 = vmul.f32 %v1469, 0.5
    %v1606 = vmul.f32 %v1510, 0.5
    %v1607 = vmul.f32 %v1512, 0.5
    %v1608 = vmul.f32 %v1553, 0.5
    %v1609 = vmul.f32 %v1555, 0.5
    %v1610 = vmul.f32 %v1596, 0.5
    %v1611 = vmul.f32 %v1598, 0.5
    %v1612 = vmul.f32 %v1471, 0.5
    %v1613 = vmul.f32 %v1473, 0.5
    %v1614 = vmul.f32 %v1514, 0.5
    %v1615 = vmul.f32 %v1516, 0.5
    %v1616 = vmul.f32 %v1557, 0.5
    %v1617 = vmul.f32 %v1559, 0.5
    %v1618 = vmul.f32 %v1600, 0.5
    %v1619 = vmul.f32 %v1602, 0.5
    %v1620 = vtanh.pop %v1604
    %v1621 = vtanh.pop %v1605
    %v1622 = vtanh.pop %v1606
    %v1623 = vtanh.pop %v1607
    %v1624 = vtanh.pop %v1608
    %v1625 = vtanh.pop %v1609
    %v1626 = vtanh.pop %v1610
    %v1627 = vtanh.pop %v1611
    %v1628 = vtanh.pop %v1612
    %v1629 = vtanh.pop %v1613
    %v1630 = vtanh.pop %v1614
    %v1631 = vtanh.pop %v1615
    %v1632 = vtanh.pop %v1616
    %v1633 = vtanh.pop %v1617
    %v1634 = vtanh.pop %v1618
    %v1635 = vtanh.pop %v1619
    %v1636 = vadd.f32 %v1620, 1.0
    %v1637 = vadd.f32 %v1621, 1.0
    %v1638 = vadd.f32 %v1622, 1.0
    %v1639 = vadd.f32 %v1623, 1.0
    %v1640 = vadd.f32 %v1624, 1.0
    %v1641 = vadd.f32 %v1625, 1.0
    %v1642 = vadd.f32 %v1626, 1.0
    %v1643 = vadd.f32 %v1627, 1.0
    %v1644 = vadd.f32 %v1628, 1.0
    %v1645 = vadd.f32 %v1629, 1.0
    %v1646 = vadd.f32 %v1630, 1.0
    %v1647 = vadd.f32 %v1631, 1.0
    %v1648 = vadd.f32 %v1632, 1.0
    %v1649 = vadd.f32 %v1633, 1.0
    %v1650 = vadd.f32 %v1634, 1.0
    %v1651 = vadd.f32 %v1635, 1.0
    %v1652 = vmul.f32 %v1636, 0.5
    %v1653 = vmul.f32 %v1637, 0.5
    %v1654 = vmul.f32 %v1638, 0.5
    %v1655 = vmul.f32 %v1639, 0.5
    %v1656 = vmul.f32 %v1640, 0.5
    %v1657 = vmul.f32 %v1641, 0.5
    %v1658 = vmul.f32 %v1642, 0.5
    %v1659 = vmul.f32 %v1643, 0.5
    %v1660 = vmul.f32 %v1644, 0.5
    %v1661 = vmul.f32 %v1645, 0.5
    %v1662 = vmul.f32 %v1646, 0.5
    %v1663 = vmul.f32 %v1647, 0.5
    %v1664 = vmul.f32 %v1648, 0.5
    %v1665 = vmul.f32 %v1649, 0.5
    %v1666 = vmul.f32 %v1650, 0.5
    %v1667 = vmul.f32 %v1651, 0.5
    %1668 = vst [vmem:[%s9] sm:$0xff] %v1652
    %1669 = vst [vmem:[%s9 + $0x8] sm:$0xff] %v1653
    %1670 = vst [vmem:[%s9 + $0x10] sm:$0xff] %v1654
    %1671 = vst [vmem:[%s9 + $0x18] sm:$0xff] %v1655
    %1672 = vst [vmem:[%s9 + $0x20] sm:$0xff] %v1656
    %1673 = vst [vmem:[%s9 + $0x28] sm:$0xff] %v1657
    %1674 = vst [vmem:[%s9 + $0x30] sm:$0xff] %v1658
    %1675 = vst [vmem:[%s9 + $0x38] sm:$0xff] %v1659
    %1676 = vst [vmem:[%s9 + $0x40] sm:$0xff] %v1660
    %1677 = vst [vmem:[%s9 + $0x48] sm:$0xff] %v1661
    %1678 = vst [vmem:[%s9 + $0x50] sm:$0xff] %v1662
    %1679 = vst [vmem:[%s9 + $0x58] sm:$0xff] %v1663
    %1680 = vst [vmem:[%s9 + $0x60] sm:$0xff] %v1664
    %1681 = vst [vmem:[%s9 + $0x68] sm:$0xff] %v1665
    %1682 = vst [vmem:[%s9 + $0x70] sm:$0xff] %v1666
    %1683 = vst [vmem:[%s9 + $0x78] sm:$0xff] %v1667
    // Predicated region
    $region50: #{ae_forward.1} parent=1 // pred_check
      _
    $region51: #{ae_forward.1} parent=1 // pred_check_branch
      %1685 = sbr.rel (0) target = $region53
    $region52: #{ae_forward.1} parent=1 // pred_region
      _
    $region53: #{ae_forward.1} parent=1 // pred_fallthru
      _
    // Predicated region
    $region54: #{ae_forward.1} parent=1 // pred_check
      _
    $region55: #{ae_forward.1} parent=1 // pred_check_branch
      %1687 = sbr.rel (0) target = $region57
    $region56: #{ae_forward.1} parent=1 // pred_region
      _
    $region57: #{ae_forward.1} parent=1 // pred_fallthru
      _
    %1688 = vsyncpa [#allocation3], 1
    %1689 = vsyncpa [#allocation5], 1

// kernel: ae_forward.1
$region0: #{ae_forward.1}
  #allocation0 [shape = 'u32[]', space=smem, size = 0x4, offset = 0x4, fixed_abs, tag = 'smem constant byte address 0x4 - core index']
  #allocation1 [shape = 'u32[144,128]{1,0:T(1,128)}', space=vmem, size = 0x12000, scoped, tag = 'internal scratch']
  %s0 = inlined_call_operand.vmem [shape: f32[16,1024], index: 0, kind: input, shape index: {}]
  %s1 = inlined_call_operand.vmem [shape: bf16[1024,128], index: 1, kind: input, shape index: {}]
  %s2 = inlined_call_operand.hbm [shape: f32[1,128], index: 2, kind: input, shape index: {}]
  %s3 = inlined_call_operand.vmem [shape: bf16[128,128], index: 3, kind: input, shape index: {}]
  %s4 = inlined_call_operand.hbm [shape: f32[1,128], index: 4, kind: input, shape index: {}]
  %s5 = inlined_call_operand.vmem [shape: bf16[128,128], index: 5, kind: input, shape index: {}]
  %s6 = inlined_call_operand.hbm [shape: f32[1,128], index: 6, kind: input, shape index: {}]
  %s7 = inlined_call_operand.vmem [shape: bf16[128,1024], index: 7, kind: input, shape index: {}]
  %s8 = inlined_call_operand.vmem [shape: f32[1,1024], index: 8, kind: input, shape index: {}]
  %s9 = inlined_call_operand.vmem [shape: f32[16,1024], index: 9, kind: output, shape index: {}]
  %s10 = sld [smem:[#allocation0]]
  $region58: #{ae_forward.1} parent=0
    _
  %s12 = ssub.s32 1, %s10
  %s13 = scalar_select 0, %s12, %s10
  $region1: #{ae_forward.1} parent=0
    #allocation2 [shape = 'u8[512]{0}', space=vmem, size = 0x400, scoped, tag = 'input window, operand 2, single buffered']
    #allocation3 [shape = 's32[1]{0}', space=sflag, size = 0x4, scoped, tag = 'scoped memory for ae_forward.1']
    #allocation4 [shape = 'u8[512]{0}', space=vmem, size = 0x400, scoped, tag = 'input window, operand 4, single buffered']
    #allocation5 [shape = 's32[1]{0}', space=sflag, size = 0x4, scoped, tag = 'scoped memory for ae_forward.1']
    #allocation6 [shape = 'u8[512]{0}', space=vmem, size = 0x400, scoped, tag = 'input window, operand 6, single buffered']
    %14 = vsyncpa [#allocation3], 0
    %15 = vsyncpa [#allocation5], 0
    // Predicated region
    $region2: #{ae_forward.1} parent=1 // pred_check
      _
    $region3: #{ae_forward.1} parent=1 // pred_check_branch
      %17 = sbr.rel (0) target = $region5
    $region4: #{ae_forward.1} parent=1 // pred_region
      _
    $region5: #{ae_forward.1} parent=1 // pred_fallthru
      _
    // Predicated region
    $region6: #{ae_forward.1} parent=1 // pred_check
      _
    $region7: #{ae_forward.1} parent=1 // pred_check_branch
      %19 = sbr.rel (0) target = $region9
    $region8: #{ae_forward.1} parent=1 // pred_region
      _
    $region9: #{ae_forward.1} parent=1 // pred_fallthru
      _
    // Predicated region
    $region10: #{ae_forward.1} parent=1 // pred_check
      _
    $region11: #{ae_forward.1} parent=1 // pred_check_branch
      %21 = sbr.rel (0) target = $region13
    $region12: #{ae_forward.1} parent=1 // pred_region
      %s23 = ssub.s32 16, 16
      %24 = vsyncadd [#allocation3], %s23
      %s26 = sshll.u32 [#allocation2], 4
      %s27 = int_to_ptr.vmem [resolvable:$true] %s26
      %29 = dma.hbm_to_vmem [thread:$0]  %s2, 16, %s27, [#allocation3]
    $region13: #{ae_forward.1} parent=1 // pred_fallthru
      _
    // Predicated region
    $region14: #{ae_forward.1} parent=1 // pred_check
      _
    $region15: #{ae_forward.1} parent=1 // pred_check_branch
      %31 = sbr.rel (0) target = $region17
    $region16: #{ae_forward.1} parent=1 // pred_region
      _
    $region17: #{ae_forward.1} parent=1 // pred_fallthru
      _
    // Predicated region
    $region18: #{ae_forward.1} parent=1 // pred_check
      _
    $region19: #{ae_forward.1} parent=1 // pred_check_branch
      %33 = sbr.rel (0) target = $region21
    $region20: #{ae_forward.1} parent=1 // pred_region
      %s35 = ssub.s32 16, 16
      %36 = vsyncadd [#allocation5], %s35
      %s38 = sshll.u32 [#allocation4], 4
      %s39 = int_to_ptr.vmem [resolvable:$true] %s38
      %41 = dma.hbm_to_vmem [thread:$0]  %s4, 16, %s39, [#allocation5]
    $region21: #{ae_forward.1} parent=1 // pred_fallthru
      _
    // Predicated region
    $region22: #{ae_forward.1} parent=1 // pred_check
      _
    $region23: #{ae_forward.1} parent=1 // pred_check_branch
      %43 = sbr.rel (0) target = $region25
    $region24: #{ae_forward.1} parent=1 // pred_region
      _
    $region25: #{ae_forward.1} parent=1 // pred_fallthru
      _
    // Predicated region
    $region26: #{ae_forward.1} parent=1 // pred_check
      _
    $region27: #{ae_forward.1} parent=1 // pred_check_branch
      %45 = sbr.rel (0) target = $region29
    $region28: #{ae_forward.1} parent=1 // pred_region
      %s47 = ssub.s32 16, 16
      %48 = vsyncadd [#allocation5], %s47
      %s50 = sshll.u32 [#allocation6], 4
      %s51 = int_to_ptr.vmem [resolvable:$true] %s50
      %53 = dma.hbm_to_vmem [thread:$0]  %s6, 16, %s51, [#allocation5]
    $region29: #{ae_forward.1} parent=1 // pred_fallthru
      _
    // Predicated region
    $region30: #{ae_forward.1} parent=1 // pred_check
      _
    $region31: #{ae_forward.1} parent=1 // pred_check_branch
      %55 = sbr.rel (0) target = $region33
    $region32: #{ae_forward.1} parent=1 // pred_region
      _
    $region33: #{ae_forward.1} parent=1 // pred_fallthru
      _
    // Predicated region
    $region34: #{ae_forward.1} parent=1 // pred_check
      _
    $region35: #{ae_forward.1} parent=1 // pred_check_branch
      %57 = sbr.rel (0) target = $region37
    $region36: #{ae_forward.1} parent=1 // pred_region
      _
    $region37: #{ae_forward.1} parent=1 // pred_fallthru
      _
    // Predicated region
    $region38: #{ae_forward.1} parent=1 // pred_check
      _
    $region39: #{ae_forward.1} parent=1 // pred_check_branch
      %59 = sbr.rel (0) target = $region41
    $region40: #{ae_forward.1} parent=1 // pred_region
      %60 = dma.done [#allocation3], 16
    $region41: #{ae_forward.1} parent=1 // pred_fallthru
      _
    // Predicated region
    $region42: #{ae_forward.1} parent=1 // pred_check
      _
    $region43: #{ae_forward.1} parent=1 // pred_check_branch
      %62 = sbr.rel (0) target = $region45
    $region44: #{ae_forward.1} parent=1 // pred_region
      %63 = dma.done [#allocation5], 16
    $region45: #{ae_forward.1} parent=1 // pred_fallthru
      _
    // Predicated region
    $region46: #{ae_forward.1} parent=1 // pred_check
      _
    $region47: #{ae_forward.1} parent=1 // pred_check_branch
      %65 = sbr.rel (0) target = $region49
    $region48: #{ae_forward.1} parent=1 // pred_region
      %66 = dma.done [#allocation5], 16
    $region49: #{ae_forward.1} parent=1 // pred_fallthru
      _
    %v68 = vld [vmem:[%s0] sm:$0xff]
    %v69 = vld [vmem:[%s0 + $0x8] sm:$0xff]
    %v70 = vld [vmem:[%s0 + $0x10] sm:$0xff]
    %v71 = vld [vmem:[%s0 + $0x18] sm:$0xff]
    %v72 = vld [vmem:[%s0 + $0x20] sm:$0xff]
    %v73 = vld [vmem:[%s0 + $0x28] sm:$0xff]
    %v74 = vld [vmem:[%s0 + $0x30] sm:$0xff]
    %v75 = vld [vmem:[%s0 + $0x38] sm:$0xff]
    %v76 = vld [vmem:[%s0 + $0x40] sm:$0xff]
    %v77 = vld [vmem:[%s0 + $0x48] sm:$0xff]
    %v78 = vld [vmem:[%s0 + $0x50] sm:$0xff]
    %v79 = vld [vmem:[%s0 + $0x58] sm:$0xff]
    %v80 = vld [vmem:[%s0 + $0x60] sm:$0xff]
    %v81 = vld [vmem:[%s0 + $0x68] sm:$0xff]
    %v82 = vld [vmem:[%s0 + $0x70] sm:$0xff]
    %v83 = vld [vmem:[%s0 + $0x78] sm:$0xff]
    %v84 = vpack.c.bf16 %v76, %v68
    %v85 = vpack.c.bf16 %v77, %v69
    %v86 = vpack.c.bf16 %v78, %v70
    %v87 = vpack.c.bf16 %v79, %v71
    %v88 = vpack.c.bf16 %v80, %v72
    %v89 = vpack.c.bf16 %v81, %v73
    %v90 = vpack.c.bf16 %v82, %v74
    %v91 = vpack.c.bf16 %v83, %v75
    %v92 = vld [vmem:[%s1] sm:$0xf]
    %v93 = vld [vmem:[%s1 + $0x4] sm:$0xf]
    %v94 = vld [vmem:[%s1 + $0x8] sm:$0xf]
    %v95 = vld [vmem:[%s1 + $0xc] sm:$0xf]
    %v96 = vld [vmem:[%s1 + $0x10] sm:$0xf]
    %v97 = vld [vmem:[%s1 + $0x14] sm:$0xf]
    %v98 = vld [vmem:[%s1 + $0x18] sm:$0xf]
    %v99 = vld [vmem:[%s1 + $0x1c] sm:$0xf]
    %v100 = vld [vmem:[%s1 + $0x20] sm:$0xf]
    %v101 = vld [vmem:[%s1 + $0x24] sm:$0xf]
    %v102 = vld [vmem:[%s1 + $0x28] sm:$0xf]
    %v103 = vld [vmem:[%s1 + $0x2c] sm:$0xf]
    %v104 = vld [vmem:[%s1 + $0x30] sm:$0xf]
    %v105 = vld [vmem:[%s1 + $0x34] sm:$0xf]
    %v106 = vld [vmem:[%s1 + $0x38] sm:$0xf]
    %v107 = vld [vmem:[%s1 + $0x3c] sm:$0xf]
    %v108 = vld [vmem:[%s1 + $0x40] sm:$0xf]
    %v109 = vld [vmem:[%s1 + $0x44] sm:$0xf]
    %v110 = vld [vmem:[%s1 + $0x48] sm:$0xf]
    %v111 = vld [vmem:[%s1 + $0x4c] sm:$0xf]
    %v112 = vld [vmem:[%s1 + $0x50] sm:$0xf]
    %v113 = vld [vmem:[%s1 + $0x54] sm:$0xf]
    %v114 = vld [vmem:[%s1 + $0x58] sm:$0xf]
    %v115 = vld [vmem:[%s1 + $0x5c] sm:$0xf]
    %v116 = vld [vmem:[%s1 + $0x60] sm:$0xf]
    %v117 = vld [vmem:[%s1 + $0x64] sm:$0xf]
    %v118 = vld [vmem:[%s1 + $0x68] sm:$0xf]
    %v119 = vld [vmem:[%s1 + $0x6c] sm:$0xf]
    %v120 = vld [vmem:[%s1 + $0x70] sm:$0xf]
    %v121 = vld [vmem:[%s1 + $0x74] sm:$0xf]
    %v122 = vld [vmem:[%s1 + $0x78] sm:$0xf]
    %v123 = vld [vmem:[%s1 + $0x7c] sm:$0xf]
    %v124 = vld [vmem:[%s1 + $0x80] sm:$0xf]
    %v125 = vld [vmem:[%s1 + $0x84] sm:$0xf]
    %v126 = vld [vmem:[%s1 + $0x88] sm:$0xf]
    %v127 = vld [vmem:[%s1 + $0x8c] sm:$0xf]
    %v128 = vld [vmem:[%s1 + $0x90] sm:$0xf]
    %v129 = vld [vmem:[%s1 + $0x94] sm:$0xf]
    %v130 = vld [vmem:[%s1 + $0x98] sm:$0xf]
    %v131 = vld [vmem:[%s1 + $0x9c] sm:$0xf]
    %v132 = vld [vmem:[%s1 + $0xa0] sm:$0xf]
    %v133 = vld [vmem:[%s1 + $0xa4] sm:$0xf]
    %v134 = vld [vmem:[%s1 + $0xa8] sm:$0xf]
    %v135 = vld [vmem:[%s1 + $0xac] sm:$0xf]
    %v136 = vld [vmem:[%s1 + $0xb0] sm:$0xf]
    %v137 = vld [vmem:[%s1 + $0xb4] sm:$0xf]
    %v138 = vld [vmem:[%s1 + $0xb8] sm:$0xf]
    %v139 = vld [vmem:[%s1 + $0xbc] sm:$0xf]
    %v140 = vld [vmem:[%s1 + $0xc0] sm:$0xf]
    %v141 = vld [vmem:[%s1 + $0xc4] sm:$0xf]
    %v142 = vld [vmem:[%s1 + $0xc8] sm:$0xf]
    %v143 = vld [vmem:[%s1 + $0xcc] sm:$0xf]
    %v144 = vld [vmem:[%s1 + $0xd0] sm:$0xf]
    %v145 = vld [vmem:[%s1 + $0xd4] sm:$0xf]
    %v146 = vld [vmem:[%s1 + $0xd8] sm:$0xf]
    %v147 = vld [vmem:[%s1 + $0xdc] sm:$0xf]
    %v148 = vld [vmem:[%s1 + $0xe0] sm:$0xf]
    %v149 = vld [vmem:[%s1 + $0xe4] sm:$0xf]
    %v150 = vld [vmem:[%s1 + $0xe8] sm:$0xf]
    %v151 = vld [vmem:[%s1 + $0xec] sm:$0xf]
    %v152 = vld [vmem:[%s1 + $0xf0] sm:$0xf]
    %v153 = vld [vmem:[%s1 + $0xf4] sm:$0xf]
    %v154 = vld [vmem:[%s1 + $0xf8] sm:$0xf]
    %v155 = vld [vmem:[%s1 + $0xfc] sm:$0xf]
    %v156 = vld [vmem:[%s1 + $0x100] sm:$0xf]
    %v157 = vld [vmem:[%s1 + $0x104] sm:$0xf]
    %v158 = vld [vmem:[%s1 + $0x108] sm:$0xf]
    %v159 = vld [vmem:[%s1 + $0x10c] sm:$0xf]
    %v160 = vld [vmem:[%s1 + $0x110] sm:$0xf]
    %v161 = vld [vmem:[%s1 + $0x114] sm:$0xf]
    %v162 = vld [vmem:[%s1 + $0x118] sm:$0xf]
    %v163 = vld [vmem:[%s1 + $0x11c] sm:$0xf]
    %v164 = vld [vmem:[%s1 + $0x120] sm:$0xf]
    %v165 = vld [vmem:[%s1 + $0x124] sm:$0xf]
    %v166 = vld [vmem:[%s1 + $0x128] sm:$0xf]
    %v167 = vld [vmem:[%s1 + $0x12c] sm:$0xf]
    %v168 = vld [vmem:[%s1 + $0x130] sm:$0xf]
    %v169 = vld [vmem:[%s1 + $0x134] sm:$0xf]
    %v170 = vld [vmem:[%s1 + $0x138] sm:$0xf]
    %v171 = vld [vmem:[%s1 + $0x13c] sm:$0xf]
    %v172 = vld [vmem:[%s1 + $0x140] sm:$0xf]
    %v173 = vld [vmem:[%s1 + $0x144] sm:$0xf]
    %v174 = vld [vmem:[%s1 + $0x148] sm:$0xf]
    %v175 = vld [vmem:[%s1 + $0x14c] sm:$0xf]
    %v176 = vld [vmem:[%s1 + $0x150] sm:$0xf]
    %v177 = vld [vmem:[%s1 + $0x154] sm:$0xf]
    %v178 = vld [vmem:[%s1 + $0x158] sm:$0xf]
    %v179 = vld [vmem:[%s1 + $0x15c] sm:$0xf]
    %v180 = vld [vmem:[%s1 + $0x160] sm:$0xf]
    %v181 = vld [vmem:[%s1 + $0x164] sm:$0xf]
    %v182 = vld [vmem:[%s1 + $0x168] sm:$0xf]
    %v183 = vld [vmem:[%s1 + $0x16c] sm:$0xf]
    %v184 = vld [vmem:[%s1 + $0x170] sm:$0xf]
    %v185 = vld [vmem:[%s1 + $0x174] sm:$0xf]
    %v186 = vld [vmem:[%s1 + $0x178] sm:$0xf]
    %v187 = vld [vmem:[%s1 + $0x17c] sm:$0xf]
    %v188 = vld [vmem:[%s1 + $0x180] sm:$0xf]
    %v189 = vld [vmem:[%s1 + $0x184] sm:$0xf]
    %v190 = vld [vmem:[%s1 + $0x188] sm:$0xf]
    %v191 = vld [vmem:[%s1 + $0x18c] sm:$0xf]
    %v192 = vld [vmem:[%s1 + $0x190] sm:$0xf]
    %v193 = vld [vmem:[%s1 + $0x194] sm:$0xf]
    %v194 = vld [vmem:[%s1 + $0x198] sm:$0xf]
    %v195 = vld [vmem:[%s1 + $0x19c] sm:$0xf]
    %v196 = vld [vmem:[%s1 + $0x1a0] sm:$0xf]
    %v197 = vld [vmem:[%s1 + $0x1a4] sm:$0xf]
    %v198 = vld [vmem:[%s1 + $0x1a8] sm:$0xf]
    %v199 = vld [vmem:[%s1 + $0x1ac] sm:$0xf]
    %v200 = vld [vmem:[%s1 + $0x1b0] sm:$0xf]
    %v201 = vld [vmem:[%s1 + $0x1b4] sm:$0xf]
    %v202 = vld [vmem:[%s1 + $0x1b8] sm:$0xf]
    %v203 = vld [vmem:[%s1 + $0x1bc] sm:$0xf]
    %v204 = vld [vmem:[%s1 + $0x1c0] sm:$0xf]
    %v205 = vld [vmem:[%s1 + $0x1c4] sm:$0xf]
    %v206 = vld [vmem:[%s1 + $0x1c8] sm:$0xf]
    %v207 = vld [vmem:[%s1 + $0x1cc] sm:$0xf]
    %v208 = vld [vmem:[%s1 + $0x1d0] sm:$0xf]
    %v209 = vld [vmem:[%s1 + $0x1d4] sm:$0xf]
    %v210 = vld [vmem:[%s1 + $0x1d8] sm:$0xf]
    %v211 = vld [vmem:[%s1 + $0x1dc] sm:$0xf]
    %v212 = vld [vmem:[%s1 + $0x1e0] sm:$0xf]
    %v213 = vld [vmem:[%s1 + $0x1e4] sm:$0xf]
    %v214 = vld [vmem:[%s1 + $0x1e8] sm:$0xf]
    %v215 = vld [vmem:[%s1 + $0x1ec] sm:$0xf]
    %v216 = vld [vmem:[%s1 + $0x1f0] sm:$0xf]
    %v217 = vld [vmem:[%s1 + $0x1f4] sm:$0xf]
    %v218 = vld [vmem:[%s1 + $0x1f8] sm:$0xf]
    %v219 = vld [vmem:[%s1 + $0x1fc] sm:$0xf]
    %v220 = vld [vmem:[#allocation2] sm:$0x1]
    %v222 = vlaneseq
    %v223 = vshrl.u32 %v222, 7
    %v224 = vsub.s32 0, %v223
    %v225 = vrot.slane %v220, %v224
    %v355 = vunpack.c.l.b16 %v92
    %v356 = vunpack.c.l.b16 %v93
    %v357 = vunpack.c.l.b16 %v94
    %v358 = vunpack.c.l.b16 %v95
    %v359 = vunpack.c.l.b16 %v96
    %v360 = vunpack.c.l.b16 %v97
    %v361 = vunpack.c.l.b16 %v98
    %v362 = vunpack.c.l.b16 %v99
    %v363 = vunpack.c.l.b16 %v100
    %v364 = vunpack.c.l.b16 %v101
    %v365 = vunpack.c.l.b16 %v102
    %v366 = vunpack.c.l.b16 %v103
    %v367 = vunpack.c.l.b16 %v104
    %v368 = vunpack.c.l.b16 %v105
    %v369 = vunpack.c.l.b16 %v106
    %v370 = vunpack.c.l.b16 %v107
    %v371 = vunpack.c.l.b16 %v108
    %v372 = vunpack.c.l.b16 %v109
    %v373 = vunpack.c.l.b16 %v110
    %v374 = vunpack.c.l.b16 %v111
    %v375 = vunpack.c.l.b16 %v112
    %v376 = vunpack.c.l.b16 %v113
    %v377 = vunpack.c.l.b16 %v114
    %v378 = vunpack.c.l.b16 %v115
    %v379 = vunpack.c.l.b16 %v116
    %v380 = vunpack.c.l.b16 %v117
    %v381 = vunpack.c.l.b16 %v118
    %v382 = vunpack.c.l.b16 %v119
    %v383 = vunpack.c.l.b16 %v120
    %v384 = vunpack.c.l.b16 %v121
    %v385 = vunpack.c.l.b16 %v122
    %v386 = vunpack.c.l.b16 %v123
    %v387 = vunpack.c.l.b16 %v124
    %v388 = vunpack.c.l.b16 %v125
    %v389 = vunpack.c.l.b16 %v126
    %v390 = vunpack.c.l.b16 %v127
    %v391 = vunpack.c.l.b16 %v128
    %v392 = vunpack.c.l.b16 %v129
    %v393 = vunpack.c.l.b16 %v130
    %v394 = vunpack.c.l.b16 %v131
    %v395 = vunpack.c.l.b16 %v132
    %v396 = vunpack.c.l.b16 %v133
    %v397 = vunpack.c.l.b16 %v134
    %v398 = vunpack.c.l.b16 %v135
    %v399 = vunpack.c.l.b16 %v136
    %v400 = vunpack.c.l.b16 %v137
    %v401 = vunpack.c.l.b16 %v138
    %v402 = vunpack.c.l.b16 %v139
    %v403 = vunpack.c.l.b16 %v140
    %v404 = vunpack.c.l.b16 %v141
    %v405 = vunpack.c.l.b16 %v142
    %v406 = vunpack.c.l.b16 %v143
    %v407 = vunpack.c.l.b16 %v144
    %v408 = vunpack.c.l.b16 %v145
    %v409 = vunpack.c.l.b16 %v146
    %v410 = vunpack.c.l.b16 %v147
    %v411 = vunpack.c.l.b16 %v148
    %v412 = vunpack.c.l.b16 %v149
    %v413 = vunpack.c.l.b16 %v150
    %v414 = vunpack.c.l.b16 %v151
    %v415 = vunpack.c.l.b16 %v152
    %v416 = vunpack.c.l.b16 %v153
    %v417 = vunpack.c.l.b16 %v154
    %v418 = vunpack.c.l.b16 %v155
    %v419 = vunpack.c.l.b16 %v156
    %v420 = vunpack.c.l.b16 %v157
    %v421 = vunpack.c.l.b16 %v158
    %v422 = vunpack.c.l.b16 %v159
    %v423 = vunpack.c.l.b16 %v160
    %v424 = vunpack.c.l.b16 %v161
    %v425 = vunpack.c.l.b16 %v162
    %v426 = vunpack.c.l.b16 %v163
    %v427 = vunpack.c.l.b16 %v164
    %v428 = vunpack.c.l.b16 %v165
    %v429 = vunpack.c.l.b16 %v166
    %v430 = vunpack.c.l.b16 %v167
    %v431 = vunpack.c.l.b16 %v168
    %v432 = vunpack.c.l.b16 %v169
    %v433 = vunpack.c.l.b16 %v170
    %v434 = vunpack.c.l.b16 %v171
    %v435 = vunpack.c.l.b16 %v172
    %v436 = vunpack.c.l.b16 %v173
    %v437 = vunpack.c.l.b16 %v174
    %v438 = vunpack.c.l.b16 %v175
    %v439 = vunpack.c.l.b16 %v176
    %v440 = vunpack.c.l.b16 %v177
    %v441 = vunpack.c.l.b16 %v178
    %v442 = vunpack.c.l.b16 %v179
    %v443 = vunpack.c.l.b16 %v180
    %v444 = vunpack.c.l.b16 %v181
    %v445 = vunpack.c.l.b16 %v182
    %v446 = vunpack.c.l.b16 %v183
    %v447 = vunpack.c.l.b16 %v184
    %v448 = vunpack.c.l.b16 %v185
    %v449 = vunpack.c.l.b16 %v186
    %v450 = vunpack.c.l.b16 %v187
    %v451 = vunpack.c.l.b16 %v188
    %v452 = vunpack.c.l.b16 %v189
    %v453 = vunpack.c.l.b16 %v190
    %v454 = vunpack.c.l.b16 %v191
    %v455 = vunpack.c.l.b16 %v192
    %v456 = vunpack.c.l.b16 %v193
    %v457 = vunpack.c.l.b16 %v194
    %v458 = vunpack.c.l.b16 %v195
    %v459 = vunpack.c.l.b16 %v196
    %v460 = vunpack.c.l.b16 %v197
    %v461 = vunpack.c.l.b16 %v198
    %v462 = vunpack.c.l.b16 %v199
    %v463 = vunpack.c.l.b16 %v200
    %v464 = vunpack.c.l.b16 %v201
    %v465 = vunpack.c.l.b16 %v202
    %v466 = vunpack.c.l.b16 %v203
    %v467 = vunpack.c.l.b16 %v204
    %v468 = vunpack.c.l.b16 %v205
    %v469 = vunpack.c.l.b16 %v206
    %v470 = vunpack.c.l.b16 %v207
    %v471 = vunpack.c.l.b16 %v208
    %v472 = vunpack.c.l.b16 %v209
    %v473 = vunpack.c.l.b16 %v210
    %v474 = vunpack.c.l.b16 %v211
    %v475 = vunpack.c.l.b16 %v212
    %v476 = vunpack.c.l.b16 %v213
    %v477 = vunpack.c.l.b16 %v214
    %v478 = vunpack.c.l.b16 %v215
    %v479 = vunpack.c.l.b16 %v216
    %v480 = vunpack.c.l.b16 %v217
    %v481 = vunpack.c.l.b16 %v218
    %v482 = vunpack.c.l.b16 %v219
    %v483 = vpack.c.b16 %v356, %v355
    %v484 = vpack.c.b16 %v358, %v357
    %v485 = vpack.c.b16 %v360, %v359
    %v486 = vpack.c.b16 %v362, %v361
    %v487 = vpack.c.b16 %v364, %v363
    %v488 = vpack.c.b16 %v366, %v365
    %v489 = vpack.c.b16 %v368, %v367
    %v490 = vpack.c.b16 %v370, %v369
    %v491 = vpack.c.b16 %v372, %v371
    %v492 = vpack.c.b16 %v374, %v373
    %v493 = vpack.c.b16 %v376, %v375
    %v494 = vpack.c.b16 %v378, %v377
    %v495 = vpack.c.b16 %v380, %v379
    %v496 = vpack.c.b16 %v382, %v381
    %v497 = vpack.c.b16 %v384, %v383
    %v498 = vpack.c.b16 %v386, %v385
    %v499 = vpack.c.b16 %v388, %v387
    %v500 = vpack.c.b16 %v390, %v389
    %v501 = vpack.c.b16 %v392, %v391
    %v502 = vpack.c.b16 %v394, %v393
    %v503 = vpack.c.b16 %v396, %v395
    %v504 = vpack.c.b16 %v398, %v397
    %v505 = vpack.c.b16 %v400, %v399
    %v506 = vpack.c.b16 %v402, %v401
    %v507 = vpack.c.b16 %v404, %v403
    %v508 = vpack.c.b16 %v406, %v405
    %v509 = vpack.c.b16 %v408, %v407
    %v510 = vpack.c.b16 %v410, %v409
    %v511 = vpack.c.b16 %v412, %v411
    %v512 = vpack.c.b16 %v414, %v413
    %v513 = vpack.c.b16 %v416, %v415
    %v514 = vpack.c.b16 %v418, %v417
    %v515 = vpack.c.b16 %v420, %v419
    %v516 = vpack.c.b16 %v422, %v421
    %v517 = vpack.c.b16 %v424, %v423
    %v518 = vpack.c.b16 %v426, %v425
    %v519 = vpack.c.b16 %v428, %v427
    %v520 = vpack.c.b16 %v430, %v429
    %v521 = vpack.c.b16 %v432, %v431
    %v522 = vpack.c.b16 %v434, %v433
    %v523 = vpack.c.b16 %v436, %v435
    %v524 = vpack.c.b16 %v438, %v437
    %v525 = vpack.c.b16 %v440, %v439
    %v526 = vpack.c.b16 %v442, %v441
    %v527 = vpack.c.b16 %v444, %v443
    %v528 = vpack.c.b16 %v446, %v445
    %v529 = vpack.c.b16 %v448, %v447
    %v530 = vpack.c.b16 %v450, %v449
    %v531 = vpack.c.b16 %v452, %v451
    %v532 = vpack.c.b16 %v454, %v453
    %v533 = vpack.c.b16 %v456, %v455
    %v534 = vpack.c.b16 %v458, %v457
    %v535 = vpack.c.b16 %v460, %v459
    %v536 = vpack.c.b16 %v462, %v461
    %v537 = vpack.c.b16 %v464, %v463
    %v538 = vpack.c.b16 %v466, %v465
    %v539 = vpack.c.b16 %v468, %v467
    %v540 = vpack.c.b16 %v470, %v469
    %v541 = vpack.c.b16 %v472, %v471
    %v542 = vpack.c.b16 %v474, %v473
    %v543 = vpack.c.b16 %v476, %v475
    %v544 = vpack.c.b16 %v478, %v477
    %v545 = vpack.c.b16 %v480, %v479
    %v546 = vpack.c.b16 %v482, %v481
    %611 = vmatprep.subr.bf16.mxu0 0
    %612 = vmatpush1.bf16.msra.mxu0 %v490
    %613 = vmatprep.subr.bf16.mxu0 0
    %614 = vmatpush1.bf16.msra.mxu0 %v489
    %615 = vmatprep.subr.bf16.mxu0 0
    %616 = vmatpush1.bf16.msra.mxu0 %v488
    %617 = vmatprep.subr.bf16.mxu0 0
    %618 = vmatpush1.bf16.msra.mxu0 %v487
    %619 = vmatprep.subr.bf16.mxu0 0
    %620 = vmatpush1.bf16.msra.mxu0 %v486
    %621 = vmatprep.subr.bf16.mxu0 0
    %622 = vmatpush1.bf16.msra.mxu0 %v485
    %623 = vmatprep.subr.bf16.mxu0 0
    %624 = vmatpush1.bf16.msra.mxu0 %v484
    %625 = vmatprep.subr.bf16.mxu0 0
    %626 = vmatpush1.bf16.msra.mxu0 %v483
    %627 = vmatprep.subr.bf16.mxu0 0
    %628 = vmatpush2.bf16.msra.mxu0 %v498
    %629 = vmatprep.subr.bf16.mxu0 0
    %630 = vmatpush2.bf16.msra.mxu0 %v497
    %631 = vmatprep.subr.bf16.mxu0 0
    %632 = vmatpush2.bf16.msra.mxu0 %v496
    %633 = vmatprep.subr.bf16.mxu0 0
    %634 = vmatpush2.bf16.msra.mxu0 %v495
    %635 = vmatprep.subr.bf16.mxu0 0
    %636 = vmatpush2.bf16.msra.mxu0 %v494
    %637 = vmatprep.subr.bf16.mxu0 0
    %638 = vmatpush2.bf16.msra.mxu0 %v493
    %639 = vmatprep.subr.bf16.mxu0 0
    %640 = vmatpush2.bf16.msra.mxu0 %v492
    %641 = vmatprep.subr.bf16.mxu0 0
    %642 = vmatpush2.bf16.msra.mxu0 %v491
    %643 = vmatprep.mubr.bf16.mxu0 %v85
    %644 = vmatmul.mubr.bf16.gmra.mxu0 %v84
    %v645 = vpop.f32.mrf.mxu0
    %v646 = vadd.f32 %v225, %v645
    %v647 = vpop.f32.mrf.mxu0
    %v648 = vpop.f32.mrf.mxu0
    %v649 = vadd.f32 %v225, %v648
    %v650 = vpop.f32.mrf.mxu0
    %651 = vdwg.mxu0
    %652 = vmatprep.subr.bf16.mxu0 0
    %653 = vmatpush1.bf16.msra.mxu0 %v506
    %654 = vmatprep.subr.bf16.mxu0 0
    %655 = vmatpush1.bf16.msra.mxu0 %v505
    %656 = vmatprep.subr.bf16.mxu0 0
    %657 = vmatpush1.bf16.msra.mxu0 %v504
    %658 = vmatprep.subr.bf16.mxu0 0
    %659 = vmatpush1.bf16.msra.mxu0 %v503
    %660 = vmatprep.subr.bf16.mxu0 0
    %661 = vmatpush1.bf16.msra.mxu0 %v502
    %662 = vmatprep.subr.bf16.mxu0 0
    %663 = vmatpush1.bf16.msra.mxu0 %v501
    %664 = vmatprep.subr.bf16.mxu0 0
    %665 = vmatpush1.bf16.msra.mxu0 %v500
    %666 = vmatprep.subr.bf16.mxu0 0
    %667 = vmatpush1.bf16.msra.mxu0 %v499
    %668 = vmatprep.subr.bf16.mxu0 0
    %669 = vmatpush2.bf16.msra.mxu0 %v514
    %670 = vmatprep.subr.bf16.mxu0 0
    %671 = vmatpush2.bf16.msra.mxu0 %v513
    %672 = vmatprep.subr.bf16.mxu0 0
    %673 = vmatpush2.bf16.msra.mxu0 %v512
    %674 = vmatprep.subr.bf16.mxu0 0
    %675 = vmatpush2.bf16.msra.mxu0 %v511
    %676 = vmatprep.subr.bf16.mxu0 0
    %677 = vmatpush2.bf16.msra.mxu0 %v510
    %678 = vmatprep.subr.bf16.mxu0 0
    %679 = vmatpush2.bf16.msra.mxu0 %v509
    %680 = vmatprep.subr.bf16.mxu0 0
    %681 = vmatpush2.bf16.msra.mxu0 %v508
    %682 = vmatprep.subr.bf16.mxu0 0
    %683 = vmatpush2.bf16.msra.mxu0 %v507
    %684 = vmatprep.mubr.bf16.mxu0 %v87
    %685 = vmatmul.mubr.bf16.gmra.mxu0 %v86
    %v686 = vpop.f32.mrf.mxu0
    %v687 = vadd.f32 %v646, %v686
    %v688 = vpop.f32.mrf.mxu0
    %v689 = vpop.f32.mrf.mxu0
    %v690 = vadd.f32 %v649, %v689
    %v691 = vpop.f32.mrf.mxu0
    %692 = vdwg.mxu0
    %693 = vmatprep.subr.bf16.mxu0 0
    %694 = vmatpush1.bf16.msra.mxu0 %v522
    %695 = vmatprep.subr.bf16.mxu0 0
    %696 = vmatpush1.bf16.msra.mxu0 %v521
    %697 = vmatprep.subr.bf16.mxu0 0
    %698 = vmatpush1.bf16.msra.mxu0 %v520
    %699 = vmatprep.subr.bf16.mxu0 0
    %700 = vmatpush1.bf16.msra.mxu0 %v519
    %701 = vmatprep.subr.bf16.mxu0 0
    %702 = vmatpush1.bf16.msra.mxu0 %v518
    %703 = vmatprep.subr.bf16.mxu0 0
    %704 = vmatpush1.bf16.msra.mxu0 %v517
    %705 = vmatprep.subr.bf16.mxu0 0
    %706 = vmatpush1.bf16.msra.mxu0 %v516
    %707 = vmatprep.subr.bf16.mxu0 0
    %708 = vmatpush1.bf16.msra.mxu0 %v515
    %709 = vmatprep.subr.bf16.mxu0 0
    %710 = vmatpush2.bf16.msra.mxu0 %v530
    %711 = vmatprep.subr.bf16.mxu0 0
    %712 = vmatpush2.bf16.msra.mxu0 %v529
    %713 = vmatprep.subr.bf16.mxu0 0
    %714 = vmatpush2.bf16.msra.mxu0 %v528
    %715 = vmatprep.subr.bf16.mxu0 0
    %716 = vmatpush2.bf16.msra.mxu0 %v527
    %717 = vmatprep.subr.bf16.mxu0 0
    %718 = vmatpush2.bf16.msra.mxu0 %v526
    %719 = vmatprep.subr.bf16.mxu0 0
    %720 = vmatpush2.bf16.msra.mxu0 %v525
    %721 = vmatprep.subr.bf16.mxu0 0
    %722 = vmatpush2.bf16.msra.mxu0 %v524
    %723 = vmatprep.subr.bf16.mxu0 0
    %724 = vmatpush2.bf16.msra.mxu0 %v523
    %725 = vmatprep.mubr.bf16.mxu0 %v89
    %726 = vmatmul.mubr.bf16.gmra.mxu0 %v88
    %v727 = vpop.f32.mrf.mxu0
    %v728 = vadd.f32 %v687, %v727
    %v729 = vpop.f32.mrf.mxu0
    %v730 = vpop.f32.mrf.mxu0
    %v731 = vadd.f32 %v690, %v730
    %v732 = vpop.f32.mrf.mxu0
    %733 = vdwg.mxu0
    %734 = vmatprep.subr.bf16.mxu0 0
    %735 = vmatpush1.bf16.msra.mxu0 %v538
    %736 = vmatprep.subr.bf16.mxu0 0
    %737 = vmatpush1.bf16.msra.mxu0 %v537
    %738 = vmatprep.subr.bf16.mxu0 0
    %739 = vmatpush1.bf16.msra.mxu0 %v536
    %740 = vmatprep.subr.bf16.mxu0 0
    %741 = vmatpush1.bf16.msra.mxu0 %v535
    %742 = vmatprep.subr.bf16.mxu0 0
    %743 = vmatpush1.bf16.msra.mxu0 %v534
    %744 = vmatprep.subr.bf16.mxu0 0
    %745 = vmatpush1.bf16.msra.mxu0 %v533
    %746 = vmatprep.subr.bf16.mxu0 0
    %747 = vmatpush1.bf16.msra.mxu0 %v532
    %748 = vmatprep.subr.bf16.mxu0 0
    %749 = vmatpush1.bf16.msra.mxu0 %v531
    %750 = vmatprep.subr.bf16.mxu0 0
    %751 = vmatpush2.bf16.msra.mxu0 %v546
    %752 = vmatprep.subr.bf16.mxu0 0
    %753 = vmatpush2.bf16.msra.mxu0 %v545
    %754 = vmatprep.subr.bf16.mxu0 0
    %755 = vmatpush2.bf16.msra.mxu0 %v544
    %756 = vmatprep.subr.bf16.mxu0 0
    %757 = vmatpush2.bf16.msra.mxu0 %v543
    %758 = vmatprep.subr.bf16.mxu0 0
    %759 = vmatpush2.bf16.msra.mxu0 %v542
    %760 = vmatprep.subr.bf16.mxu0 0
    %761 = vmatpush2.bf16.msra.mxu0 %v541
    %762 = vmatprep.subr.bf16.mxu0 0
    %763 = vmatpush2.bf16.msra.mxu0 %v540
    %764 = vmatprep.subr.bf16.mxu0 0
    %765 = vmatpush2.bf16.msra.mxu0 %v539
    %766 = vmatprep.mubr.bf16.mxu0 %v91
    %767 = vmatmul.mubr.bf16.gmra.mxu0 %v90
    %v768 = vpop.f32.mrf.mxu0
    %v769 = vadd.f32 %v728, %v768
    %v770 = vpop.f32.mrf.mxu0
    %v771 = vpop.f32.mrf.mxu0
    %v772 = vadd.f32 %v731, %v771
    %v773 = vpop.f32.mrf.mxu0
    %774 = vdwg.mxu0
    %v775 = vmax.f32 %v769, 0.0
    %v776 = vmax.f32 %v772, 0.0
    %v777 = vpack.c.bf16 %v776, %v775
    %v778 = vld [vmem:[%s3] sm:$0xf]
    %v779 = vld [vmem:[%s3 + $0x4] sm:$0xf]
    %v780 = vld [vmem:[%s3 + $0x8] sm:$0xf]
    %v781 = vld [vmem:[%s3 + $0xc] sm:$0xf]
    %v782 = vld [vmem:[%s3 + $0x10] sm:$0xf]
    %v783 = vld [vmem:[%s3 + $0x14] sm:$0xf]
    %v784 = vld [vmem:[%s3 + $0x18] sm:$0xf]
    %v785 = vld [vmem:[%s3 + $0x1c] sm:$0xf]
    %v786 = vld [vmem:[%s3 + $0x20] sm:$0xf]
    %v787 = vld [vmem:[%s3 + $0x24] sm:$0xf]
    %v788 = vld [vmem:[%s3 + $0x28] sm:$0xf]
    %v789 = vld [vmem:[%s3 + $0x2c] sm:$0xf]
    %v790 = vld [vmem:[%s3 + $0x30] sm:$0xf]
    %v791 = vld [vmem:[%s3 + $0x34] sm:$0xf]
    %v792 = vld [vmem:[%s3 + $0x38] sm:$0xf]
    %v793 = vld [vmem:[%s3 + $0x3c] sm:$0xf]
    %v794 = vld [vmem:[#allocation4] sm:$0x1]
    %v796 = vlaneseq
    %v797 = vshrl.u32 %v796, 7
    %v798 = vsub.s32 0, %v797
    %v799 = vrot.slane %v794, %v798
    %v817 = vunpack.c.l.b16 %v778
    %v818 = vunpack.c.l.b16 %v779
    %v819 = vunpack.c.l.b16 %v780
    %v820 = vunpack.c.l.b16 %v781
    %v821 = vunpack.c.l.b16 %v782
    %v822 = vunpack.c.l.b16 %v783
    %v823 = vunpack.c.l.b16 %v784
    %v824 = vunpack.c.l.b16 %v785
    %v825 = vunpack.c.l.b16 %v786
    %v826 = vunpack.c.l.b16 %v787
    %v827 = vunpack.c.l.b16 %v788
    %v828 = vunpack.c.l.b16 %v789
    %v829 = vunpack.c.l.b16 %v790
    %v830 = vunpack.c.l.b16 %v791
    %v831 = vunpack.c.l.b16 %v792
    %v832 = vunpack.c.l.b16 %v793
    %v833 = vpack.c.b16 %v818, %v817
    %v834 = vpack.c.b16 %v820, %v819
    %v835 = vpack.c.b16 %v822, %v821
    %v836 = vpack.c.b16 %v824, %v823
    %v837 = vpack.c.b16 %v826, %v825
    %v838 = vpack.c.b16 %v828, %v827
    %v839 = vpack.c.b16 %v830, %v829
    %v840 = vpack.c.b16 %v832, %v831
    %849 = vmatprep.subr.bf16.mxu0 0
    %850 = vmatpush1.bf16.msra.mxu0 %v840
    %851 = vmatprep.subr.bf16.mxu0 0
    %852 = vmatpush1.bf16.msra.mxu0 %v839
    %853 = vmatprep.subr.bf16.mxu0 0
    %854 = vmatpush1.bf16.msra.mxu0 %v838
    %855 = vmatprep.subr.bf16.mxu0 0
    %856 = vmatpush1.bf16.msra.mxu0 %v837
    %857 = vmatprep.subr.bf16.mxu0 0
    %858 = vmatpush1.bf16.msra.mxu0 %v836
    %859 = vmatprep.subr.bf16.mxu0 0
    %860 = vmatpush1.bf16.msra.mxu0 %v835
    %861 = vmatprep.subr.bf16.mxu0 0
    %862 = vmatpush1.bf16.msra.mxu0 %v834
    %863 = vmatprep.subr.bf16.mxu0 0
    %864 = vmatpush1.bf16.msra.mxu0 %v833
    %865 = vmatprep.subr.bf16.mxu0 0
    %866 = vmatpush2.bf16.msra.mxu0 0
    %867 = vmatprep.subr.bf16.mxu0 0
    %868 = vmatpush2.bf16.msra.mxu0 0
    %869 = vmatprep.subr.bf16.mxu0 0
    %870 = vmatpush2.bf16.msra.mxu0 0
    %871 = vmatprep.subr.bf16.mxu0 0
    %872 = vmatpush2.bf16.msra.mxu0 0
    %873 = vmatprep.subr.bf16.mxu0 0
    %874 = vmatpush2.bf16.msra.mxu0 0
    %875 = vmatprep.subr.bf16.mxu0 0
    %876 = vmatpush2.bf16.msra.mxu0 0
    %877 = vmatprep.subr.bf16.mxu0 0
    %878 = vmatpush2.bf16.msra.mxu0 0
    %879 = vmatprep.subr.bf16.mxu0 0
    %880 = vmatpush2.bf16.msra.mxu0 0
    %881 = vmatprep.mubr.bf16.mxu0 0
    %882 = vmatmul.mubr.bf16.gmra.mxu0 %v777
    %v883 = vpop.f32.mrf.mxu0
    %v884 = vadd.f32 %v799, %v883
    %v885 = vpop.f32.mrf.mxu0
    %v886 = vpop.f32.mrf.mxu0
    %v887 = vadd.f32 %v799, %v886
    %v888 = vpop.f32.mrf.mxu0
    %889 = vdwg.mxu0
    %v890 = vpack.c.bf16 %v887, %v884
    %v891 = vld [vmem:[%s5] sm:$0xf]
    %v892 = vld [vmem:[%s5 + $0x4] sm:$0xf]
    %v893 = vld [vmem:[%s5 + $0x8] sm:$0xf]
    %v894 = vld [vmem:[%s5 + $0xc] sm:$0xf]
    %v895 = vld [vmem:[%s5 + $0x10] sm:$0xf]
    %v896 = vld [vmem:[%s5 + $0x14] sm:$0xf]
    %v897 = vld [vmem:[%s5 + $0x18] sm:$0xf]
    %v898 = vld [vmem:[%s5 + $0x1c] sm:$0xf]
    %v899 = vld [vmem:[%s5 + $0x20] sm:$0xf]
    %v900 = vld [vmem:[%s5 + $0x24] sm:$0xf]
    %v901 = vld [vmem:[%s5 + $0x28] sm:$0xf]
    %v902 = vld [vmem:[%s5 + $0x2c] sm:$0xf]
    %v903 = vld [vmem:[%s5 + $0x30] sm:$0xf]
    %v904 = vld [vmem:[%s5 + $0x34] sm:$0xf]
    %v905 = vld [vmem:[%s5 + $0x38] sm:$0xf]
    %v906 = vld [vmem:[%s5 + $0x3c] sm:$0xf]
    %v907 = vld [vmem:[#allocation6] sm:$0x1]
    %v909 = vlaneseq
    %v910 = vshrl.u32 %v909, 7
    %v911 = vsub.s32 0, %v910
    %v912 = vrot.slane %v907, %v911
    %v930 = vunpack.c.l.b16 %v891
    %v931 = vunpack.c.l.b16 %v892
    %v932 = vunpack.c.l.b16 %v893
    %v933 = vunpack.c.l.b16 %v894
    %v934 = vunpack.c.l.b16 %v895
    %v935 = vunpack.c.l.b16 %v896
    %v936 = vunpack.c.l.b16 %v897
    %v937 = vunpack.c.l.b16 %v898
    %v938 = vunpack.c.l.b16 %v899
    %v939 = vunpack.c.l.b16 %v900
    %v940 = vunpack.c.l.b16 %v901
    %v941 = vunpack.c.l.b16 %v902
    %v942 = vunpack.c.l.b16 %v903
    %v943 = vunpack.c.l.b16 %v904
    %v944 = vunpack.c.l.b16 %v905
    %v945 = vunpack.c.l.b16 %v906
    %v946 = vpack.c.b16 %v931, %v930
    %v947 = vpack.c.b16 %v933, %v932
    %v948 = vpack.c.b16 %v935, %v934
    %v949 = vpack.c.b16 %v937, %v936
    %v950 = vpack.c.b16 %v939, %v938
    %v951 = vpack.c.b16 %v941, %v940
    %v952 = vpack.c.b16 %v943, %v942
    %v953 = vpack.c.b16 %v945, %v944
    %962 = vmatprep.subr.bf16.mxu0 0
    %963 = vmatpush1.bf16.msra.mxu0 %v953
    %964 = vmatprep.subr.bf16.mxu0 0
    %965 = vmatpush1.bf16.msra.mxu0 %v952
    %966 = vmatprep.subr.bf16.mxu0 0
    %967 = vmatpush1.bf16.msra.mxu0 %v951
    %968 = vmatprep.subr.bf16.mxu0 0
    %969 = vmatpush1.bf16.msra.mxu0 %v950
    %970 = vmatprep.subr.bf16.mxu0 0
    %971 = vmatpush1.bf16.msra.mxu0 %v949
    %972 = vmatprep.subr.bf16.mxu0 0
    %973 = vmatpush1.bf16.msra.mxu0 %v948
    %974 = vmatprep.subr.bf16.mxu0 0
    %975 = vmatpush1.bf16.msra.mxu0 %v947
    %976 = vmatprep.subr.bf16.mxu0 0
    %977 = vmatpush1.bf16.msra.mxu0 %v946
    %978 = vmatprep.subr.bf16.mxu0 0
    %979 = vmatpush2.bf16.msra.mxu0 0
    %980 = vmatprep.subr.bf16.mxu0 0
    %981 = vmatpush2.bf16.msra.mxu0 0
    %982 = vmatprep.subr.bf16.mxu0 0
    %983 = vmatpush2.bf16.msra.mxu0 0
    %984 = vmatprep.subr.bf16.mxu0 0
    %985 = vmatpush2.bf16.msra.mxu0 0
    %986 = vmatprep.subr.bf16.mxu0 0
    %987 = vmatpush2.bf16.msra.mxu0 0
    %988 = vmatprep.subr.bf16.mxu0 0
    %989 = vmatpush2.bf16.msra.mxu0 0
    %990 = vmatprep.subr.bf16.mxu0 0
    %991 = vmatpush2.bf16.msra.mxu0 0
    %992 = vmatprep.subr.bf16.mxu0 0
    %993 = vmatpush2.bf16.msra.mxu0 0
    %994 = vmatprep.mubr.bf16.mxu0 0
    %995 = vmatmul.mubr.bf16.gmra.mxu0 %v890
    %v996 = vpop.f32.mrf.mxu0
    %v997 = vadd.f32 %v912, %v996
    %v998 = vpop.f32.mrf.mxu0
    %v999 = vpop.f32.mrf.mxu0
    %v1000 = vadd.f32 %v912, %v999
    %v1001 = vpop.f32.mrf.mxu0
    %1002 = vdwg.mxu0
    %v1003 = vmax.f32 %v997, 0.0
    %v1004 = vmax.f32 %v1000, 0.0
    %v1005 = vpack.c.bf16 %v1004, %v1003
    %v1006 = vld [vmem:[%s7] sm:$0xff]
    %v1007 = vld [vmem:[%s7 + $0x8] sm:$0xff]
    %v1008 = vld [vmem:[%s7 + $0x10] sm:$0xff]
    %v1009 = vld [vmem:[%s7 + $0x18] sm:$0xff]
    %v1010 = vld [vmem:[%s7 + $0x20] sm:$0xff]
    %v1011 = vld [vmem:[%s7 + $0x28] sm:$0xff]
    %v1012 = vld [vmem:[%s7 + $0x30] sm:$0xff]
    %v1013 = vld [vmem:[%s7 + $0x38] sm:$0xff]
    %v1014 = vld [vmem:[%s7 + $0x40] sm:$0xff]
    %v1015 = vld [vmem:[%s7 + $0x48] sm:$0xff]
    %v1016 = vld [vmem:[%s7 + $0x50] sm:$0xff]
    %v1017 = vld [vmem:[%s7 + $0x58] sm:$0xff]
    %v1018 = vld [vmem:[%s7 + $0x60] sm:$0xff]
    %v1019 = vld [vmem:[%s7 + $0x68] sm:$0xff]
    %v1020 = vld [vmem:[%s7 + $0x70] sm:$0xff]
    %v1021 = vld [vmem:[%s7 + $0x78] sm:$0xff]
    %v1022 = vld [vmem:[%s7 + $0x80] sm:$0xff]
    %v1023 = vld [vmem:[%s7 + $0x88] sm:$0xff]
    %v1024 = vld [vmem:[%s7 + $0x90] sm:$0xff]
    %v1025 = vld [vmem:[%s7 + $0x98] sm:$0xff]
    %v1026 = vld [vmem:[%s7 + $0xa0] sm:$0xff]
    %v1027 = vld [vmem:[%s7 + $0xa8] sm:$0xff]
    %v1028 = vld [vmem:[%s7 + $0xb0] sm:$0xff]
    %v1029 = vld [vmem:[%s7 + $0xb8] sm:$0xff]
    %v1030 = vld [vmem:[%s7 + $0xc0] sm:$0xff]
    %v1031 = vld [vmem:[%s7 + $0xc8] sm:$0xff]
    %v1032 = vld [vmem:[%s7 + $0xd0] sm:$0xff]
    %v1033 = vld [vmem:[%s7 + $0xd8] sm:$0xff]
    %v1034 = vld [vmem:[%s7 + $0xe0] sm:$0xff]
    %v1035 = vld [vmem:[%s7 + $0xe8] sm:$0xff]
    %v1036 = vld [vmem:[%s7 + $0xf0] sm:$0xff]
    %v1037 = vld [vmem:[%s7 + $0xf8] sm:$0xff]
    %v1038 = vld [vmem:[%s7 + $0x100] sm:$0xff]
    %v1039 = vld [vmem:[%s7 + $0x108] sm:$0xff]
    %v1040 = vld [vmem:[%s7 + $0x110] sm:$0xff]
    %v1041 = vld [vmem:[%s7 + $0x118] sm:$0xff]
    %v1042 = vld [vmem:[%s7 + $0x120] sm:$0xff]
    %v1043 = vld [vmem:[%s7 + $0x128] sm:$0xff]
    %v1044 = vld [vmem:[%s7 + $0x130] sm:$0xff]
    %v1045 = vld [vmem:[%s7 + $0x138] sm:$0xff]
    %v1046 = vld [vmem:[%s7 + $0x140] sm:$0xff]
    %v1047 = vld [vmem:[%s7 + $0x148] sm:$0xff]
    %v1048 = vld [vmem:[%s7 + $0x150] sm:$0xff]
    %v1049 = vld [vmem:[%s7 + $0x158] sm:$0xff]
    %v1050 = vld [vmem:[%s7 + $0x160] sm:$0xff]
    %v1051 = vld [vmem:[%s7 + $0x168] sm:$0xff]
    %v1052 = vld [vmem:[%s7 + $0x170] sm:$0xff]
    %v1053 = vld [vmem:[%s7 + $0x178] sm:$0xff]
    %v1054 = vld [vmem:[%s7 + $0x180] sm:$0xff]
    %v1055 = vld [vmem:[%s7 + $0x188] sm:$0xff]
    %v1056 = vld [vmem:[%s7 + $0x190] sm:$0xff]
    %v1057 = vld [vmem:[%s7 + $0x198] sm:$0xff]
    %v1058 = vld [vmem:[%s7 + $0x1a0] sm:$0xff]
    %v1059 = vld [vmem:[%s7 + $0x1a8] sm:$0xff]
    %v1060 = vld [vmem:[%s7 + $0x1b0] sm:$0xff]
    %v1061 = vld [vmem:[%s7 + $0x1b8] sm:$0xff]
    %v1062 = vld [vmem:[%s7 + $0x1c0] sm:$0xff]
    %v1063 = vld [vmem:[%s7 + $0x1c8] sm:$0xff]
    %v1064 = vld [vmem:[%s7 + $0x1d0] sm:$0xff]
    %v1065 = vld [vmem:[%s7 + $0x1d8] sm:$0xff]
    %v1066 = vld [vmem:[%s7 + $0x1e0] sm:$0xff]
    %v1067 = vld [vmem:[%s7 + $0x1e8] sm:$0xff]
    %v1068 = vld [vmem:[%s7 + $0x1f0] sm:$0xff]
    %v1069 = vld [vmem:[%s7 + $0x1f8] sm:$0xff]
    %v1070 = vld [vmem:[%s8] sm:$0xff]
    %v1072 = vlaneseq
    %v1073 = vshrl.u32 %v1072, 7
    %v1074 = vsub.s32 0, %v1073
    %v1075 = vrot.slane %v1070, %v1074
    %v1076 = vlaneseq
    %v1077 = vshrl.u32 %v1076, 7
    %v1078 = vsub.s32 1, %v1077
    %v1079 = vrot.slane %v1070, %v1078
    %v1080 = vlaneseq
    %v1081 = vshrl.u32 %v1080, 7
    %v1082 = vsub.s32 2, %v1081
    %v1083 = vrot.slane %v1070, %v1082
    %v1084 = vlaneseq
    %v1085 = vshrl.u32 %v1084, 7
    %v1086 = vsub.s32 3, %v1085
    %v1087 = vrot.slane %v1070, %v1086
    %v1088 = vlaneseq
    %v1089 = vshrl.u32 %v1088, 7
    %v1090 = vsub.s32 4, %v1089
    %v1091 = vrot.slane %v1070, %v1090
    %v1092 = vlaneseq
    %v1093 = vshrl.u32 %v1092, 7
    %v1094 = vsub.s32 5, %v1093
    %v1095 = vrot.slane %v1070, %v1094
    %v1096 = vlaneseq
    %v1097 = vshrl.u32 %v1096, 7
    %v1098 = vsub.s32 6, %v1097
    %v1099 = vrot.slane %v1070, %v1098
    %v1100 = vlaneseq
    %v1101 = vshrl.u32 %v1100, 7
    %v1102 = vsub.s32 7, %v1101
    %v1103 = vrot.slane %v1070, %v1102
    %v1176 = vunpack.c.l.b16 %v1006
    %v1177 = vunpack.c.h.b16 %v1006
    %v1178 = vunpack.c.l.b16 %v1007
    %v1179 = vunpack.c.h.b16 %v1007
    %v1180 = vunpack.c.l.b16 %v1008
    %v1181 = vunpack.c.h.b16 %v1008
    %v1182 = vunpack.c.l.b16 %v1009
    %v1183 = vunpack.c.h.b16 %v1009
    %v1184 = vunpack.c.l.b16 %v1010
    %v1185 = vunpack.c.h.b16 %v1010
    %v1186 = vunpack.c.l.b16 %v1011
    %v1187 = vunpack.c.h.b16 %v1011
    %v1188 = vunpack.c.l.b16 %v1012
    %v1189 = vunpack.c.h.b16 %v1012
    %v1190 = vunpack.c.l.b16 %v1013
    %v1191 = vunpack.c.h.b16 %v1013
    %v1192 = vunpack.c.l.b16 %v1014
    %v1193 = vunpack.c.h.b16 %v1014
    %v1194 = vunpack.c.l.b16 %v1015
    %v1195 = vunpack.c.h.b16 %v1015
    %v1196 = vunpack.c.l.b16 %v1016
    %v1197 = vunpack.c.h.b16 %v1016
    %v1198 = vunpack.c.l.b16 %v1017
    %v1199 = vunpack.c.h.b16 %v1017
    %v1200 = vunpack.c.l.b16 %v1018
    %v1201 = vunpack.c.h.b16 %v1018
    %v1202 = vunpack.c.l.b16 %v1019
    %v1203 = vunpack.c.h.b16 %v1019
    %v1204 = vunpack.c.l.b16 %v1020
    %v1205 = vunpack.c.h.b16 %v1020
    %v1206 = vunpack.c.l.b16 %v1021
    %v1207 = vunpack.c.h.b16 %v1021
    %v1208 = vunpack.c.l.b16 %v1022
    %v1209 = vunpack.c.h.b16 %v1022
    %v1210 = vunpack.c.l.b16 %v1023
    %v1211 = vunpack.c.h.b16 %v1023
    %v1212 = vunpack.c.l.b16 %v1024
    %v1213 = vunpack.c.h.b16 %v1024
    %v1214 = vunpack.c.l.b16 %v1025
    %v1215 = vunpack.c.h.b16 %v1025
    %v1216 = vunpack.c.l.b16 %v1026
    %v1217 = vunpack.c.h.b16 %v1026
    %v1218 = vunpack.c.l.b16 %v1027
    %v1219 = vunpack.c.h.b16 %v1027
    %v1220 = vunpack.c.l.b16 %v1028
    %v1221 = vunpack.c.h.b16 %v1028
    %v1222 = vunpack.c.l.b16 %v1029
    %v1223 = vunpack.c.h.b16 %v1029
    %v1224 = vunpack.c.l.b16 %v1030
    %v1225 = vunpack.c.h.b16 %v1030
    %v1226 = vunpack.c.l.b16 %v1031
    %v1227 = vunpack.c.h.b16 %v1031
    %v1228 = vunpack.c.l.b16 %v1032
    %v1229 = vunpack.c.h.b16 %v1032
    %v1230 = vunpack.c.l.b16 %v1033
    %v1231 = vunpack.c.h.b16 %v1033
    %v1232 = vunpack.c.l.b16 %v1034
    %v1233 = vunpack.c.h.b16 %v1034
    %v1234 = vunpack.c.l.b16 %v1035
    %v1235 = vunpack.c.h.b16 %v1035
    %v1236 = vunpack.c.l.b16 %v1036
    %v1237 = vunpack.c.h.b16 %v1036
    %v1238 = vunpack.c.l.b16 %v1037
    %v1239 = vunpack.c.h.b16 %v1037
    %v1240 = vunpack.c.l.b16 %v1038
    %v1241 = vunpack.c.h.b16 %v1038
    %v1242 = vunpack.c.l.b16 %v1039
    %v1243 = vunpack.c.h.b16 %v1039
    %v1244 = vunpack.c.l.b16 %v1040
    %v1245 = vunpack.c.h.b16 %v1040
    %v1246 = vunpack.c.l.b16 %v1041
    %v1247 = vunpack.c.h.b16 %v1041
    %v1248 = vunpack.c.l.b16 %v1042
    %v1249 = vunpack.c.h.b16 %v1042
    %v1250 = vunpack.c.l.b16 %v1043
    %v1251 = vunpack.c.h.b16 %v1043
    %v1252 = vunpack.c.l.b16 %v1044
    %v1253 = vunpack.c.h.b16 %v1044
    %v1254 = vunpack.c.l.b16 %v1045
    %v1255 = vunpack.c.h.b16 %v1045
    %v1256 = vunpack.c.l.b16 %v1046
    %v1257 = vunpack.c.h.b16 %v1046
    %v1258 = vunpack.c.l.b16 %v1047
    %v1259 = vunpack.c.h.b16 %v1047
    %v1260 = vunpack.c.l.b16 %v1048
    %v1261 = vunpack.c.h.b16 %v1048
    %v1262 = vunpack.c.l.b16 %v1049
    %v1263 = vunpack.c.h.b16 %v1049
    %v1264 = vunpack.c.l.b16 %v1050
    %v1265 = vunpack.c.h.b16 %v1050
    %v1266 = vunpack.c.l.b16 %v1051
    %v1267 = vunpack.c.h.b16 %v1051
    %v1268 = vunpack.c.l.b16 %v1052
    %v1269 = vunpack.c.h.b16 %v1052
    %v1270 = vunpack.c.l.b16 %v1053
    %v1271 = vunpack.c.h.b16 %v1053
    %v1272 = vunpack.c.l.b16 %v1054
    %v1273 = vunpack.c.h.b16 %v1054
    %v1274 = vunpack.c.l.b16 %v1055
    %v1275 = vunpack.c.h.b16 %v1055
    %v1276 = vunpack.c.l.b16 %v1056
    %v1277 = vunpack.c.h.b16 %v1056
    %v1278 = vunpack.c.l.b16 %v1057
    %v1279 = vunpack.c.h.b16 %v1057
    %v1280 = vunpack.c.l.b16 %v1058
    %v1281 = vunpack.c.h.b16 %v1058
    %v1282 = vunpack.c.l.b16 %v1059
    %v1283 = vunpack.c.h.b16 %v1059
    %v1284 = vunpack.c.l.b16 %v1060
    %v1285 = vunpack.c.h.b16 %v1060
    %v1286 = vunpack.c.l.b16 %v1061
    %v1287 = vunpack.c.h.b16 %v1061
    %v1288 = vunpack.c.l.b16 %v1062
    %v1289 = vunpack.c.h.b16 %v1062
    %v1290 = vunpack.c.l.b16 %v1063
    %v1291 = vunpack.c.h.b16 %v1063
    %v1292 = vunpack.c.l.b16 %v1064
    %v1293 = vunpack.c.h.b16 %v1064
    %v1294 = vunpack.c.l.b16 %v1065
    %v1295 = vunpack.c.h.b16 %v1065
    %v1296 = vunpack.c.l.b16 %v1066
    %v1297 = vunpack.c.h.b16 %v1066
    %v1298 = vunpack.c.l.b16 %v1067
    %v1299 = vunpack.c.h.b16 %v1067
    %v1300 = vunpack.c.l.b16 %v1068
    %v1301 = vunpack.c.h.b16 %v1068
    %v1302 = vunpack.c.l.b16 %v1069
    %v1303 = vunpack.c.h.b16 %v1069
    %v1304 = vpack.c.b16 %v1184, %v1176
    %v1305 = vpack.c.b16 %v1185, %v1177
    %v1306 = vpack.c.b16 %v1186, %v1178
    %v1307 = vpack.c.b16 %v1187, %v1179
    %v1308 = vpack.c.b16 %v1188, %v1180
    %v1309 = vpack.c.b16 %v1189, %v1181
    %v1310 = vpack.c.b16 %v1190, %v1182
    %v1311 = vpack.c.b16 %v1191, %v1183
    %v1312 = vpack.c.b16 %v1200, %v1192
    %v1313 = vpack.c.b16 %v1201, %v1193
    %v1314 = vpack.c.b16 %v1202, %v1194
    %v1315 = vpack.c.b16 %v1203, %v1195
    %v1316 = vpack.c.b16 %v1204, %v1196
    %v1317 = vpack.c.b16 %v1205, %v1197
    %v1318 = vpack.c.b16 %v1206, %v1198
    %v1319 = vpack.c.b16 %v1207, %v1199
    %v1320 = vpack.c.b16 %v1216, %v1208
    %v1321 = vpack.c.b16 %v1217, %v1209
    %v1322 = vpack.c.b16 %v1218, %v1210
    %v1323 = vpack.c.b16 %v1219, %v1211
    %v1324 = vpack.c.b16 %v1220, %v1212
    %v1325 = vpack.c.b16 %v1221, %v1213
    %v1326 = vpack.c.b16 %v1222, %v1214
    %v1327 = vpack.c.b16 %v1223, %v1215
    %v1328 = vpack.c.b16 %v1232, %v1224
    %v1329 = vpack.c.b16 %v1233, %v1225
    %v1330 = vpack.c.b16 %v1234, %v1226
    %v1331 = vpack.c.b16 %v1235, %v1227
    %v1332 = vpack.c.b16 %v1236, %v1228
    %v1333 = vpack.c.b16 %v1237, %v1229
    %v1334 = vpack.c.b16 %v1238, %v1230
    %v1335 = vpack.c.b16 %v1239, %v1231
    %v1336 = vpack.c.b16 %v1248, %v1240
    %v1337 = vpack.c.b16 %v1249, %v1241
    %v1338 = vpack.c.b16 %v1250, %v1242
    %v1339 = vpack.c.b16 %v1251, %v1243
    %v1340 = vpack.c.b16 %v1252, %v1244
    %v1341 = vpack.c.b16 %v1253, %v1245
    %v1342 = vpack.c.b16 %v1254, %v1246
    %v1343 = vpack.c.b16 %v1255, %v1247
    %v1344 = vpack.c.b16 %v1264, %v1256
    %v1345 = vpack.c.b16 %v1265, %v1257
    %v1346 = vpack.c.b16 %v1266, %v1258
    %v1347 = vpack.c.b16 %v1267, %v1259
    %v1348 = vpack.c.b16 %v1268, %v1260
    %v1349 = vpack.c.b16 %v1269, %v1261
    %v1350 = vpack.c.b16 %v1270, %v1262
    %v1351 = vpack.c.b16 %v1271, %v1263
    %v1352 = vpack.c.b16 %v1280, %v1272
    %v1353 = vpack.c.b16 %v1281, %v1273
    %v1354 = vpack.c.b16 %v1282, %v1274
    %v1355 = vpack.c.b16 %v1283, %v1275
    %v1356 = vpack.c.b16 %v1284, %v1276
    %v1357 = vpack.c.b16 %v1285, %v1277
    %v1358 = vpack.c.b16 %v1286, %v1278
    %v1359 = vpack.c.b16 %v1287, %v1279
    %v1360 = vpack.c.b16 %v1296, %v1288
    %v1361 = vpack.c.b16 %v1297, %v1289
    %v1362 = vpack.c.b16 %v1298, %v1290
    %v1363 = vpack.c.b16 %v1299, %v1291
    %v1364 = vpack.c.b16 %v1300, %v1292
    %v1365 = vpack.c.b16 %v1301, %v1293
    %v1366 = vpack.c.b16 %v1302, %v1294
    %v1367 = vpack.c.b16 %v1303, %v1295
    %1432 = vmatprep.subr.bf16.mxu0 %v1361
    %1433 = vmatpush1.bf16.msra.mxu0 %v1360
    %1434 = vmatprep.subr.bf16.mxu0 %v1353
    %1435 = vmatpush1.bf16.msra.mxu0 %v1352
    %1436 = vmatprep.subr.bf16.mxu0 %v1345
    %1437 = vmatpush1.bf16.msra.mxu0 %v1344
    %1438 = vmatprep.subr.bf16.mxu0 %v1337
    %1439 = vmatpush1.bf16.msra.mxu0 %v1336
    %1440 = vmatprep.subr.bf16.mxu0 %v1329
    %1441 = vmatpush1.bf16.msra.mxu0 %v1328
    %1442 = vmatprep.subr.bf16.mxu0 %v1321
    %1443 = vmatpush1.bf16.msra.mxu0 %v1320
    %1444 = vmatprep.subr.bf16.mxu0 %v1313
    %1445 = vmatpush1.bf16.msra.mxu0 %v1312
    %1446 = vmatprep.subr.bf16.mxu0 %v1305
    %1447 = vmatpush1.bf16.msra.mxu0 %v1304
    %1448 = vmatprep.subr.bf16.mxu0 0
    %1449 = vmatpush2.bf16.msra.mxu0 0
    %1450 = vmatprep.subr.bf16.mxu0 0
    %1451 = vmatpush2.bf16.msra.mxu0 0
    %1452 = vmatprep.subr.bf16.mxu0 0
    %1453 = vmatpush2.bf16.msra.mxu0 0
    %1454 = vmatprep.subr.bf16.mxu0 0
    %1455 = vmatpush2.bf16.msra.mxu0 0
    %1456 = vmatprep.subr.bf16.mxu0 0
    %1457 = vmatpush2.bf16.msra.mxu0 0
    %1458 = vmatprep.subr.bf16.mxu0 0
    %1459 = vmatpush2.bf16.msra.mxu0 0
    %1460 = vmatprep.subr.bf16.mxu0 0
    %1461 = vmatpush2.bf16.msra.mxu0 0
    %1462 = vmatprep.subr.bf16.mxu0 0
    %1463 = vmatpush2.bf16.msra.mxu0 0
    %1464 = vmatprep.mubr.bf16.mxu0 0
    %1465 = vmatmul.mubr.bf16.gmra.mxu0 %v1005
    %v1466 = vpop.f32.mrf.mxu0
    %v1467 = vadd.f32 %v1075, %v1466
    %v1468 = vpop.f32.mrf.mxu0
    %v1469 = vadd.f32 %v1079, %v1468
    %v1470 = vpop.f32.mrf.mxu0
    %v1471 = vadd.f32 %v1075, %v1470
    %v1472 = vpop.f32.mrf.mxu0
    %v1473 = vadd.f32 %v1079, %v1472
    %1474 = vdwg.mxu0
    %1475 = vmatprep.subr.bf16.mxu0 %v1363
    %1476 = vmatpush1.bf16.msra.mxu0 %v1362
    %1477 = vmatprep.subr.bf16.mxu0 %v1355
    %1478 = vmatpush1.bf16.msra.mxu0 %v1354
    %1479 = vmatprep.subr.bf16.mxu0 %v1347
    %1480 = vmatpush1.bf16.msra.mxu0 %v1346
    %1481 = vmatprep.subr.bf16.mxu0 %v1339
    %1482 = vmatpush1.bf16.msra.mxu0 %v1338
    %1483 = vmatprep.subr.bf16.mxu0 %v1331
    %1484 = vmatpush1.bf16.msra.mxu0 %v1330
    %1485 = vmatprep.subr.bf16.mxu0 %v1323
    %1486 = vmatpush1.bf16.msra.mxu0 %v1322
    %1487 = vmatprep.subr.bf16.mxu0 %v1315
    %1488 = vmatpush1.bf16.msra.mxu0 %v1314
    %1489 = vmatprep.subr.bf16.mxu0 %v1307
    %1490 = vmatpush1.bf16.msra.mxu0 %v1306
    %1491 = vmatprep.subr.bf16.mxu0 0
    %1492 = vmatpush2.bf16.msra.mxu0 0
    %1493 = vmatprep.subr.bf16.mxu0 0
    %1494 = vmatpush2.bf16.msra.mxu0 0
    %1495 = vmatprep.subr.bf16.mxu0 0
    %1496 = vmatpush2.bf16.msra.mxu0 0
    %1497 = vmatprep.subr.bf16.mxu0 0
    %1498 = vmatpush2.bf16.msra.mxu0 0
    %1499 = vmatprep.subr.bf16.mxu0 0
    %1500 = vmatpush2.bf16.msra.mxu0 0
    %1501 = vmatprep.subr.bf16.mxu0 0
    %1502 = vmatpush2.bf16.msra.mxu0 0
    %1503 = vmatprep.subr.bf16.mxu0 0
    %1504 = vmatpush2.bf16.msra.mxu0 0
    %1505 = vmatprep.subr.bf16.mxu0 0
    %1506 = vmatpush2.bf16.msra.mxu0 0
    %1507 = vmatprep.mubr.bf16.mxu0 0
    %1508 = vmatmul.mubr.bf16.gmra.mxu0 %v1005
    %v1509 = vpop.f32.mrf.mxu0
    %v1510 = vadd.f32 %v1083, %v1509
    %v1511 = vpop.f32.mrf.mxu0
    %v1512 = vadd.f32 %v1087, %v1511
    %v1513 = vpop.f32.mrf.mxu0
    %v1514 = vadd.f32 %v1083, %v1513
    %v1515 = vpop.f32.mrf.mxu0
    %v1516 = vadd.f32 %v1087, %v1515
    %1517 = vdwg.mxu0
    %1518 = vmatprep.subr.bf16.mxu0 %v1365
    %1519 = vmatpush1.bf16.msra.mxu0 %v1364
    %1520 = vmatprep.subr.bf16.mxu0 %v1357
    %1521 = vmatpush1.bf16.msra.mxu0 %v1356
    %1522 = vmatprep.subr.bf16.mxu0 %v1349
    %1523 = vmatpush1.bf16.msra.mxu0 %v1348
    %1524 = vmatprep.subr.bf16.mxu0 %v1341
    %1525 = vmatpush1.bf16.msra.mxu0 %v1340
    %1526 = vmatprep.subr.bf16.mxu0 %v1333
    %1527 = vmatpush1.bf16.msra.mxu0 %v1332
    %1528 = vmatprep.subr.bf16.mxu0 %v1325
    %1529 = vmatpush1.bf16.msra.mxu0 %v1324
    %1530 = vmatprep.subr.bf16.mxu0 %v1317
    %1531 = vmatpush1.bf16.msra.mxu0 %v1316
    %1532 = vmatprep.subr.bf16.mxu0 %v1309
    %1533 = vmatpush1.bf16.msra.mxu0 %v1308
    %1534 = vmatprep.subr.bf16.mxu0 0
    %1535 = vmatpush2.bf16.msra.mxu0 0
    %1536 = vmatprep.subr.bf16.mxu0 0
    %1537 = vmatpush2.bf16.msra.mxu0 0
    %1538 = vmatprep.subr.bf16.mxu0 0
    %1539 = vmatpush2.bf16.msra.mxu0 0
    %1540 = vmatprep.subr.bf16.mxu0 0
    %1541 = vmatpush2.bf16.msra.mxu0 0
    %1542 = vmatprep.subr.bf16.mxu0 0
    %1543 = vmatpush2.bf16.msra.mxu0 0
    %1544 = vmatprep.subr.bf16.mxu0 0
    %1545 = vmatpush2.bf16.msra.mxu0 0
    %1546 = vmatprep.subr.bf16.mxu0 0
    %1547 = vmatpush2.bf16.msra.mxu0 0
    %1548 = vmatprep.subr.bf16.mxu0 0
    %1549 = vmatpush2.bf16.msra.mxu0 0
    %1550 = vmatprep.mubr.bf16.mxu0 0
    %1551 = vmatmul.mubr.bf16.gmra.mxu0 %v1005
    %v1552 = vpop.f32.mrf.mxu0
    %v1553 = vadd.f32 %v1091, %v1552
    %v1554 = vpop.f32.mrf.mxu0
    %v1555 = vadd.f32 %v1095, %v1554
    %v1556 = vpop.f32.mrf.mxu0
    %v1557 = vadd.f32 %v1091, %v1556
    %v1558 = vpop.f32.mrf.mxu0
    %v1559 = vadd.f32 %v1095, %v1558
    %1560 = vdwg.mxu0
    %1561 = vmatprep.subr.bf16.mxu0 %v1367
    %1562 = vmatpush1.bf16.msra.mxu0 %v1366
    %1563 = vmatprep.subr.bf16.mxu0 %v1359
    %1564 = vmatpush1.bf16.msra.mxu0 %v1358
    %1565 = vmatprep.subr.bf16.mxu0 %v1351
    %1566 = vmatpush1.bf16.msra.mxu0 %v1350
    %1567 = vmatprep.subr.bf16.mxu0 %v1343
    %1568 = vmatpush1.bf16.msra.mxu0 %v1342
    %1569 = vmatprep.subr.bf16.mxu0 %v1335
    %1570 = vmatpush1.bf16.msra.mxu0 %v1334
    %1571 = vmatprep.subr.bf16.mxu0 %v1327
    %1572 = vmatpush1.bf16.msra.mxu0 %v1326
    %1573 = vmatprep.subr.bf16.mxu0 %v1319
    %1574 = vmatpush1.bf16.msra.mxu0 %v1318
    %1575 = vmatprep.subr.bf16.mxu0 %v1311
    %1576 = vmatpush1.bf16.msra.mxu0 %v1310
    %1577 = vmatprep.subr.bf16.mxu0 0
    %1578 = vmatpush2.bf16.msra.mxu0 0
    %1579 = vmatprep.subr.bf16.mxu0 0
    %1580 = vmatpush2.bf16.msra.mxu0 0
    %1581 = vmatprep.subr.bf16.mxu0 0
    %1582 = vmatpush2.bf16.msra.mxu0 0
    %1583 = vmatprep.subr.bf16.mxu0 0
    %1584 = vmatpush2.bf16.msra.mxu0 0
    %1585 = vmatprep.subr.bf16.mxu0 0
    %1586 = vmatpush2.bf16.msra.mxu0 0
    %1587 = vmatprep.subr.bf16.mxu0 0
    %1588 = vmatpush2.bf16.msra.mxu0 0
    %1589 = vmatprep.subr.bf16.mxu0 0
    %1590 = vmatpush2.bf16.msra.mxu0 0
    %1591 = vmatprep.subr.bf16.mxu0 0
    %1592 = vmatpush2.bf16.msra.mxu0 0
    %1593 = vmatprep.mubr.bf16.mxu0 0
    %1594 = vmatmul.mubr.bf16.gmra.mxu0 %v1005
    %v1595 = vpop.f32.mrf.mxu0
    %v1596 = vadd.f32 %v1099, %v1595
    %v1597 = vpop.f32.mrf.mxu0
    %v1598 = vadd.f32 %v1103, %v1597
    %v1599 = vpop.f32.mrf.mxu0
    %v1600 = vadd.f32 %v1099, %v1599
    %v1601 = vpop.f32.mrf.mxu0
    %v1602 = vadd.f32 %v1103, %v1601
    %1603 = vdwg.mxu0
    %v1604 = vmul.f32 %v1467, 0.5
    %v1605 = vmul.f32 %v1469, 0.5
    %v1606 = vmul.f32 %v1510, 0.5
    %v1607 = vmul.f32 %v1512, 0.5
    %v1608 = vmul.f32 %v1553, 0.5
    %v1609 = vmul.f32 %v1555, 0.5
    %v1610 = vmul.f32 %v1596, 0.5
    %v1611 = vmul.f32 %v1598, 0.5
    %v1612 = vmul.f32 %v1471, 0.5
    %v1613 = vmul.f32 %v1473, 0.5
    %v1614 = vmul.f32 %v1514, 0.5
    %v1615 = vmul.f32 %v1516, 0.5
    %v1616 = vmul.f32 %v1557, 0.5
    %v1617 = vmul.f32 %v1559, 0.5
    %v1618 = vmul.f32 %v1600, 0.5
    %v1619 = vmul.f32 %v1602, 0.5
    %v1620 = vtanh.pop %v1604
    %v1621 = vtanh.pop %v1605
    %v1622 = vtanh.pop %v1606
    %v1623 = vtanh.pop %v1607
    %v1624 = vtanh.pop %v1608
    %v1625 = vtanh.pop %v1609
    %v1626 = vtanh.pop %v1610
    %v1627 = vtanh.pop %v1611
    %v1628 = vtanh.pop %v1612
    %v1629 = vtanh.pop %v1613
    %v1630 = vtanh.pop %v1614
    %v1631 = vtanh.pop %v1615
    %v1632 = vtanh.pop %v1616
    %v1633 = vtanh.pop %v1617
    %v1634 = vtanh.pop %v1618
    %v1635 = vtanh.pop %v1619
    %v1636 = vadd.f32 %v1620, 1.0
    %v1637 = vadd.f32 %v1621, 1.0
    %v1638 = vadd.f32 %v1622, 1.0
    %v1639 = vadd.f32 %v1623, 1.0
    %v1640 = vadd.f32 %v1624, 1.0
    %v1641 = vadd.f32 %v1625, 1.0
    %v1642 = vadd.f32 %v1626, 1.0
    %v1643 = vadd.f32 %v1627, 1.0
    %v1644 = vadd.f32 %v1628, 1.0
    %v1645 = vadd.f32 %v1629, 1.0
    %v1646 = vadd.f32 %v1630, 1.0
    %v1647 = vadd.f32 %v1631, 1.0
    %v1648 = vadd.f32 %v1632, 1.0
    %v1649 = vadd.f32 %v1633, 1.0
    %v1650 = vadd.f32 %v1634, 1.0
    %v1651 = vadd.f32 %v1635, 1.0
    %v1652 = vmul.f32 %v1636, 0.5
    %v1653 = vmul.f32 %v1637, 0.5
    %v1654 = vmul.f32 %v1638, 0.5
    %v1655 = vmul.f32 %v1639, 0.5
    %v1656 = vmul.f32 %v1640, 0.5
    %v1657 = vmul.f32 %v1641, 0.5
    %v1658 = vmul.f32 %v1642, 0.5
    %v1659 = vmul.f32 %v1643, 0.5
    %v1660 = vmul.f32 %v1644, 0.5
    %v1661 = vmul.f32 %v1645, 0.5
    %v1662 = vmul.f32 %v1646, 0.5
    %v1663 = vmul.f32 %v1647, 0.5
    %v1664 = vmul.f32 %v1648, 0.5
    %v1665 = vmul.f32 %v1649, 0.5
    %v1666 = vmul.f32 %v1650, 0.5
    %v1667 = vmul.f32 %v1651, 0.5
    %1668 = vst [vmem:[%s9] sm:$0xff] %v1652
    %1669 = vst [vmem:[%s9 + $0x8] sm:$0xff] %v1653
    %1670 = vst [vmem:[%s9 + $0x10] sm:$0xff] %v1654
    %1671 = vst [vmem:[%s9 + $0x18] sm:$0xff] %v1655
    %1672 = vst [vmem:[%s9 + $0x20] sm:$0xff] %v1656
    %1673 = vst [vmem:[%s9 + $0x28] sm:$0xff] %v1657
    %1674 = vst [vmem:[%s9 + $0x30] sm:$0xff] %v1658
    %1675 = vst [vmem:[%s9 + $0x38] sm:$0xff] %v1659
    %1676 = vst [vmem:[%s9 + $0x40] sm:$0xff] %v1660
    %1677 = vst [vmem:[%s9 + $0x48] sm:$0xff] %v1661
    %1678 = vst [vmem:[%s9 + $0x50] sm:$0xff] %v1662
    %1679 = vst [vmem:[%s9 + $0x58] sm:$0xff] %v1663
    %1680 = vst [vmem:[%s9 + $0x60] sm:$0xff] %v1664
    %1681 = vst [vmem:[%s9 + $0x68] sm:$0xff] %v1665
    %1682 = vst [vmem:[%s9 + $0x70] sm:$0xff] %v1666
    %1683 = vst [vmem:[%s9 + $0x78] sm:$0xff] %v1667
    // Predicated region
    $region50: #{ae_forward.1} parent=1 // pred_check
      _
    $region51: #{ae_forward.1} parent=1 // pred_check_branch
      %1685 = sbr.rel (0) target = $region53
    $region52: #{ae_forward.1} parent=1 // pred_region
      _
    $region53: #{ae_forward.1} parent=1 // pred_fallthru
      _
    // Predicated region
    $region54: #{ae_forward.1} parent=1 // pred_check
      _
    $region55: #{ae_forward.1} parent=1 // pred_check_branch
      %1687 = sbr.rel (0) target = $region57
    $region56: #{ae_forward.1} parent=1 // pred_region
      _
    $region57: #{ae_forward.1} parent=1 // pred_fallthru
      _
    %1688 = vsyncpa [#allocation3], 1
    %1689 = vsyncpa [#allocation5], 1

</llo_original>
